<compile_context>
chip_gen: v5e
topology: v5e:2x2
jax: 0.10.0
libtpu: 0.0.40
codegen_flags: <defaults>
</compile_context>

<pallas_src>
import math
import jax
import jax.numpy as jnp
from jax.experimental import pallas as pl
from jax.experimental.pallas import tpu as pltpu

PART_SZ = 0.5            # Local.partition_sz
LATENT = 32              # SDFModel.latent_size
IN_SIZE = 3
HIDDEN = 128             # SkipConnMLP hidden_size
NUM_LAYERS = 5           # SkipConnMLP num_layers
SKIP1 = 4                # latent MLP skip period (only layer 0 gets the skip)
SKIP2 = 3                # tform MLP skip period (layers 0 and 3)
ENC_OUT = 32             # NNEncoder output dims
OUT_DIM = 1 + LATENT     # 33 (module output width)
OUT_PAD = 128            # lane-dense padded output width
DIM_P2 = IN_SIZE + ENC_OUT + LATENT  # 67 : tform MLP concat input width
MAX_TILE_B = 1024        # points per grid step
MIN_TILE_B = 128
SLOPE = 0.01             # LeakyReLU negative slope


def _local_kernel(
    pts_ref,                                             # (T, 3) query points
    w1ps_ref, b1i_ref, w1h_ref, b1h_ref, w1o_ref, b1o_ref,   # latent MLP
    we_ref, be_ref,                                      # NNEncoder
    w2p_ref, w2e_ref, w2z_ref, b2i_ref, w2h_ref, b2h_ref,    # tform MLP
    w2o_ref, b2o_ref,
    out_ref,                                             # (T, 128) lane-dense
):
    f32 = jnp.float32
    pts = pts_ref[...]                                   # (T, 3) f32

    inv = 1.0 / PART_SZ
    xn = pts * inv                                       # x / part_sz
    local = pts - PART_SZ * jnp.floor(xn)                # x % part_sz (floor-mod)

    def leaky(h):
        return jnp.where(h > 0, h, SLOPE * h)

    def mm_bf16(a, w):                                   # bf16-in / f32-acc MXU
        return jnp.dot(a.astype(jnp.bfloat16), w, preferred_element_type=f32)

    def vpu_proj(v, w):
        # (T, 3) @ (3, N) as 3 broadcast multiply-adds on the VPU; a K=3 LHS
        # would waste 125/128 of the MXU array, so keep the MXU slot free.
        acc = v[:, 0:1] * w[0:1, :]
        for c in range(1, IN_SIZE):
            acc = acc + v[:, c:c + 1] * w[c:c + 1, :]
        return acc

    # ---- latent = SkipConnMLP(in=3, out=32, skip=4)(x / part_sz) ----
    # w1ps packs [w1_init | w1_skip] along N -> one (T, 256) VPU projection.
    xn_proj = vpu_proj(xn, w1ps_ref[...])                # (T, 256) f32
    init1 = xn_proj[:, :HIDDEN]
    skip1 = xn_proj[:, HIDDEN:]

    x = init1 + b1i_ref[...]
    for i in range(NUM_LAYERS):
        h = mm_bf16(x, w1h_ref[i]) + b1h_ref[i]
        if (i % SKIP1) == 0 and i != NUM_LAYERS - 1:
            h = h + skip1                                # concat-skip, decomposed
        x = leaky(h)
    latent = mm_bf16(x, w1o_ref[...]) + b1o_ref[...]     # (T, 32) f32

    # ---- NNEncoder(local) ----
    # TODO(synk): NNEncoder source was not provided; a learned Linear(3->32)
    # + LeakyReLU with output_dims()==32 is used.
    enc = leaky(vpu_proj(local, we_ref[...]) + be_ref[...])   # (T, 32) f32

    # ---- tform = SkipConnMLP(in=3, out=33, latent=32, enc=NNEncoder, skip=3)
    # concat([local, enc, latent]) is never materialized; the init/skip
    # projections are N-batched: (T, 3*128) = local@Wp + enc@We + latent@Wz,
    # then sliced at 128-aligned lane boundaries (no relayout).
    extras = (vpu_proj(local, w2p_ref[...])
              + mm_bf16(enc, w2e_ref[...])
              + mm_bf16(latent, w2z_ref[...]))           # (T, 384) f32

    def extra(j):
        return extras[:, j * HIDDEN:(j + 1) * HIDDEN]

    x = extra(0) + b2i_ref[...]
    si = 1
    for i in range(NUM_LAYERS):
        h = mm_bf16(x, w2h_ref[i]) + b2h_ref[i]
        if (i % SKIP2) == 0 and i != NUM_LAYERS - 1:
            h = h + extra(si)
            si += 1
        x = leaky(h)
    # 128-lane padded head (cols >= 33 are zero weights): unmasked lane-dense store.
    out_ref[...] = (mm_bf16(x, w2o_ref[...]) + b2o_ref[...]).astype(out_ref.dtype)


def pack_params(params):
    """One-time weight packing (bf16 casts, concat splits, output-lane padding).

    Kept out of the forward path so per-ray-batch calls don't redo these XLA
    ops / HBM round-trips.
    """
    f32 = jnp.float32
    bf = lambda w: w.astype(jnp.bfloat16)
    a, b = IN_SIZE, IN_SIZE + ENC_OUT
    w2i, w2s = params["w2_init"], params["w2_skip"]

    # latent-MLP init+skip projections of xn, packed along N -> (3, 256)
    w1ps = jnp.concatenate([params["w1_init"], params["w1_skip"]], axis=1)

    # tform concat weights split per source and N-batched over
    # (init, skip0, skip1) -> columns [0:128 | 128:256 | 256:384]
    w2p = jnp.concatenate([w2i[:a], w2s[0, :a], w2s[1, :a]], axis=1)       # (3, 384)
    w2e = jnp.concatenate([w2i[a:b], w2s[0, a:b], w2s[1, a:b]], axis=1)    # (32, 384)
    w2z = jnp.concatenate([w2i[b:], w2s[0, b:], w2s[1, b:]], axis=1)       # (32, 384)

    # lane-dense output head: zero-pad 33 -> 128
    w2o = jnp.zeros((HIDDEN, OUT_PAD), f32).at[:, :OUT_DIM].set(params["w2_out"])
    b2o = jnp.zeros((1, OUT_PAD), f32).at[:, :OUT_DIM].set(params["b2_out"])

    return {
        "w1ps": w1ps, "b1i": params["b1_init"],
        "w1h": bf(params["w1_h"]), "b1h": params["b1_h"],
        "w1o": bf(params["w1_out"]), "b1o": params["b1_out"],
        "we": params["we_enc"], "be": params["be_enc"],
        "w2p": w2p, "w2e": bf(w2e), "w2z": bf(w2z),
        "b2i": params["b2_init"],
        "w2h": bf(params["w2_h"]), "b2h": params["b2_h"],
        "w2o": bf(w2o), "b2o": b2o,
    }


def _choose_tile(bflat, max_tile=MAX_TILE_B):
    # Big tiles amortize the ~0.35us/step pipeline overhead, but keep >= 2
    # grid steps when possible so v7x can shard the "parallel" axis over both
    # TensorCores (no effect on v5e/v6e).
    tile = pl.next_power_of_2(max(1, bflat // 2))
    return max(MIN_TILE_B, min(max_tile, tile))


def local_forward(p, packed, max_tile=MAX_TILE_B):
    orig_batch = p.shape[:-1]
    pf = p.reshape(-1, IN_SIZE).astype(jnp.float32)
    bflat = pf.shape[0]
    tile_b = _choose_tile(bflat, max_tile)
    steps = pl.cdiv(bflat, tile_b)
    if steps > 1 and steps % 2:
        steps += 1              # even step count -> balanced across v7x's 2 TCs
    bpad = steps * tile_b
    pf = jnp.pad(pf, ((0, bpad - bflat), (0, 0)))

    full2 = lambda i: (0, 0)
    full3 = lambda i: (0, 0, 0)

    out = pl.pallas_call(
        _local_kernel,
        out_shape=jax.ShapeDtypeStruct((bpad, OUT_PAD), jnp.float32),
        grid_spec=pltpu.PrefetchScalarGridSpec(
            num_scalar_prefetch=0,
            grid=(steps,),
            in_specs=[
                pl.BlockSpec((tile_b, IN_SIZE), lambda i: (i, 0)),
                # weights / biases: constant index maps -> DMA'd once, VMEM resident
                pl.BlockSpec((IN_SIZE, 2 * HIDDEN), full2),          # w1ps
                pl.BlockSpec((1, HIDDEN), full2),                    # b1i
                pl.BlockSpec((NUM_LAYERS, HIDDEN, HIDDEN), full3),   # w1h
                pl.BlockSpec((NUM_LAYERS, 1, HIDDEN), full3),        # b1h
                pl.BlockSpec((HIDDEN, LATENT), full2),               # w1o
                pl.BlockSpec((1, LATENT), full2),                    # b1o
                pl.BlockSpec((IN_SIZE, ENC_OUT), full2),             # we
                pl.BlockSpec((1, ENC_OUT), full2),                   # be
                pl.BlockSpec((IN_SIZE, 3 * HIDDEN), full2),          # w2p
                pl.BlockSpec((ENC_OUT, 3 * HIDDEN), full2),          # w2e
                pl.BlockSpec((LATENT, 3 * HIDDEN), full2),           # w2z
                pl.BlockSpec((1, HIDDEN), full2),                    # b2i
                pl.BlockSpec((NUM_LAYERS, HIDDEN, HIDDEN), full3),   # w2h
                pl.BlockSpec((NUM_LAYERS, 1, HIDDEN), full3),        # b2h
                pl.BlockSpec((HIDDEN, OUT_PAD), full2),              # w2o (padded)
                pl.BlockSpec((1, OUT_PAD), full2),                   # b2o (padded)
            ],
            out_specs=pl.BlockSpec((tile_b, OUT_PAD), lambda i: (i, 0)),
        ),
        compiler_params=pltpu.CompilerParams(
            dimension_semantics=("parallel",)),
    )(pf,
      packed["w1ps"], packed["b1i"], packed["w1h"], packed["b1h"],
      packed["w1o"], packed["b1o"],
      packed["we"], packed["be"],
      packed["w2p"], packed["w2e"], packed["w2z"],
      packed["b2i"], packed["w2h"], packed["b2h"],
      packed["w2o"], packed["b2o"])
    return out[:bflat, :OUT_DIM].reshape(orig_batch + (OUT_DIM,))


def init_params(key):
    # TODO(synk): SkipConnMLP / NNEncoder sources were not provided; a standard
    # skip-connection MLP (5 layers, hidden 128, LeakyReLU 0.01) and a learned
    # Linear+LeakyReLU encoder (32 dims) with fan_in-uniform weights and zero
    # biases are used.
    ks = jax.random.split(key, 9)

    def lin_w(k, fan_in, shape):
        lim = 1.0 / math.sqrt(fan_in)
        return jax.random.uniform(k, shape, jnp.float32, -lim, lim)

    return {
        # latent = SkipConnMLP(in=3, out=32, skip=4)
        "w1_init": lin_w(ks[0], IN_SIZE, (IN_SIZE, HIDDEN)),
        "b1_init": jnp.zeros((1, HIDDEN), jnp.float32),
        "w1_h":    lin_w(ks[1], HIDDEN, (NUM_LAYERS, HIDDEN, HIDDEN)),
        "b1_h":    jnp.zeros((NUM_LAYERS, 1, HIDDEN), jnp.float32),
        "w1_skip": lin_w(ks[2], HIDDEN + IN_SIZE, (IN_SIZE, HIDDEN)),
        "w1_out":  lin_w(ks[3], HIDDEN, (HIDDEN, LATENT)),
        "b1_out":  jnp.zeros((1, LATENT), jnp.float32),
        # NNEncoder(input_dims=3)
        "we_enc":  lin_w(ks[4], IN_SIZE, (IN_SIZE, ENC_OUT)),
        "be_enc":  jnp.zeros((1, ENC_OUT), jnp.float32),
        # tform = SkipConnMLP(in=3, out=33, latent=32, enc=NNEncoder)
        "w2_init": lin_w(ks[5], DIM_P2, (DIM_P2, HIDDEN)),
        "b2_init": jnp.zeros((1, HIDDEN), jnp.float32),
        "w2_h":    lin_w(ks[6], HIDDEN, (NUM_LAYERS, HIDDEN, HIDDEN)),
        "b2_h":    jnp.zeros((NUM_LAYERS, 1, HIDDEN), jnp.float32),
        "w2_skip": lin_w(ks[7], HIDDEN + DIM_P2, (2, DIM_P2, HIDDEN)),
        "w2_out":  lin_w(ks[8], HIDDEN, (HIDDEN, OUT_DIM)),
        "b2_out":  jnp.zeros((1, OUT_DIM), jnp.float32),
    }


def reference_forward(p, params):
    """Pure-JAX f32 reference matching the PyTorch Local.forward semantics."""
    pf = p.reshape(-1, IN_SIZE).astype(jnp.float32)
    xn = pf / PART_SZ
    local = pf - PART_SZ * jnp.floor(pf / PART_SZ)       # torch.remainder(x, part_sz)

    leaky = lambda h: jnp.where(h > 0, h, SLOPE * h)

    x = xn @ params["w1_init"] + params["b1_init"]
    for i in range(NUM_LAYERS):
        h = x @ params["w1_h"][i] + params["b1_h"][i]
        if (i % SKIP1) == 0 and i != NUM_LAYERS - 1:
            h = h + xn @ params["w1_skip"]
        x = leaky(h)
    latent = x @ params["w1_out"] + params["b1_out"]

    enc = leaky(local @ params["we_enc"] + params["be_enc"])
    feat = jnp.concatenate([local, enc, latent], axis=-1)          # (B, 67)

    x = feat @ params["w2_init"] + params["b2_init"]
    si = 0
    for i in range(NUM_LAYERS):
        h = x @ params["w2_h"][i] + params["b2_h"][i]
        if (i % SKIP2) == 0 and i != NUM_LAYERS - 1:
            h = h + feat @ params["w2_skip"][si]
            si += 1
        x = leaky(h)
    out = x @ params["w2_out"] + params["b2_out"]
    return out.reshape(p.shape[:-1] + (OUT_DIM,))


if __name__ == "__main__":
    key = jax.random.PRNGKey(0)
    kp, kparams = jax.random.split(key)
    params = init_params(kparams)
    packed = pack_params(params)                         # one-time, outside hot path
    p = 0.5 * jax.random.normal(kp, (2, 128, 3), jnp.float32)   # query points (..., 3)

    got = jax.block_until_ready(local_forward(p, packed))
    want = jax.block_until_ready(reference_forward(p, params))

    assert got.shape == p.shape[:-1] + (OUT_DIM,), got.shape
    # tolerance accounts for bf16-input / f32-accumulate MXU matmuls vs f32 ref
    assert jnp.allclose(got, want, atol=1e-2, rtol=1e-2), \
        float(jnp.max(jnp.abs(got - want)))
    print("KERNEL_OK")
</pallas_src>

<mosaic_0001>
module attributes {stable_mosaic.version = 11 : i64} {
  func.func @_local_kernel(%arg0: i32, %arg1: memref<128x3xf32, #tpu.memory_space<vmem>>, %arg2: memref<3x256xf32, #tpu.memory_space<vmem>>, %arg3: memref<1x128xf32, #tpu.memory_space<vmem>>, %arg4: memref<5x128x128xbf16, #tpu.memory_space<vmem>>, %arg5: memref<5x1x128xf32, #tpu.memory_space<vmem>>, %arg6: memref<128x32xbf16, #tpu.memory_space<vmem>>, %arg7: memref<1x32xf32, #tpu.memory_space<vmem>>, %arg8: memref<3x32xf32, #tpu.memory_space<vmem>>, %arg9: memref<1x32xf32, #tpu.memory_space<vmem>>, %arg10: memref<3x384xf32, #tpu.memory_space<vmem>>, %arg11: memref<32x384xbf16, #tpu.memory_space<vmem>>, %arg12: memref<32x384xbf16, #tpu.memory_space<vmem>>, %arg13: memref<1x128xf32, #tpu.memory_space<vmem>>, %arg14: memref<5x128x128xbf16, #tpu.memory_space<vmem>>, %arg15: memref<5x1x128xf32, #tpu.memory_space<vmem>>, %arg16: memref<128x128xbf16, #tpu.memory_space<vmem>>, %arg17: memref<1x128xf32, #tpu.memory_space<vmem>>, %arg18: memref<128x128xf32, #tpu.memory_space<vmem>>) attributes {dimension_semantics = [#tpu.dimension_semantics<parallel>], iteration_bounds = array<i64: 2>, scalar_prefetch = 0 : i64, scratch_operands = 0 : i64, tpu.core_type = #tpu.core_type<tc>, window_params = [{transform_indices = @transform_0, window_bounds = array<i64: 128, 3>}, {pipeline_mode = #tpu.pipeline_mode<synchronous>, transform_indices = @transform_1, window_bounds = array<i64: 3, 256>}, {pipeline_mode = #tpu.pipeline_mode<synchronous>, transform_indices = @transform_2, window_bounds = array<i64: 1, 128>}, {pipeline_mode = #tpu.pipeline_mode<synchronous>, transform_indices = @transform_3, window_bounds = array<i64: 5, 128, 128>}, {pipeline_mode = #tpu.pipeline_mode<synchronous>, transform_indices = @transform_4, window_bounds = array<i64: 5, 1, 128>}, {pipeline_mode = #tpu.pipeline_mode<synchronous>, transform_indices = @transform_5, window_bounds = array<i64: 128, 32>}, {pipeline_mode = #tpu.pipeline_mode<synchronous>, transform_indices = @transform_6, window_bounds = array<i64: 1, 32>}, {pipeline_mode = #tpu.pipeline_mode<synchronous>, transform_indices = @transform_7, window_bounds = array<i64: 3, 32>}, {pipeline_mode = #tpu.pipeline_mode<synchronous>, transform_indices = @transform_8, window_bounds = array<i64: 1, 32>}, {pipeline_mode = #tpu.pipeline_mode<synchronous>, transform_indices = @transform_9, window_bounds = array<i64: 3, 384>}, {pipeline_mode = #tpu.pipeline_mode<synchronous>, transform_indices = @transform_10, window_bounds = array<i64: 32, 384>}, {pipeline_mode = #tpu.pipeline_mode<synchronous>, transform_indices = @transform_11, window_bounds = array<i64: 32, 384>}, {pipeline_mode = #tpu.pipeline_mode<synchronous>, transform_indices = @transform_12, window_bounds = array<i64: 1, 128>}, {pipeline_mode = #tpu.pipeline_mode<synchronous>, transform_indices = @transform_13, window_bounds = array<i64: 5, 128, 128>}, {pipeline_mode = #tpu.pipeline_mode<synchronous>, transform_indices = @transform_14, window_bounds = array<i64: 5, 1, 128>}, {pipeline_mode = #tpu.pipeline_mode<synchronous>, transform_indices = @transform_15, window_bounds = array<i64: 128, 128>}, {pipeline_mode = #tpu.pipeline_mode<synchronous>, transform_indices = @transform_16, window_bounds = array<i64: 1, 128>}, {transform_indices = @transform_17, window_bounds = array<i64: 128, 128>}]} {
    %c0 = arith.constant 0 : index
    %c0_0 = arith.constant 0 : index
    %0 = vector.load %arg1[%c0, %c0_0] : memref<128x3xf32, #tpu.memory_space<vmem>>, vector<128x3xf32>
    %cst = arith.constant 2.000000e+00 : f32
    %1 = vector.broadcast %cst : f32 to vector<128x3xf32>
    %2 = arith.mulf %0, %1 : vector<128x3xf32>
    %3 = math.floor %2 : vector<128x3xf32>
    %cst_1 = arith.constant 5.000000e-01 : f32
    %4 = vector.broadcast %cst_1 : f32 to vector<128x3xf32>
    %5 = arith.mulf %4, %3 : vector<128x3xf32>
    %6 = arith.subf %0, %5 : vector<128x3xf32>
    %c0_2 = arith.constant 0 : index
    %c0_3 = arith.constant 0 : index
    %7 = vector.load %arg2[%c0_2, %c0_3] : memref<3x256xf32, #tpu.memory_space<vmem>>, vector<3x256xf32>
    %8 = vector.extract_strided_slice %2 {offsets = [0, 0], sizes = [128, 1], strides = [1, 1]} : vector<128x3xf32> to vector<128x1xf32>
    %9 = vector.extract_strided_slice %7 {offsets = [0, 0], sizes = [1, 256], strides = [1, 1]} : vector<3x256xf32> to vector<1x256xf32>
    %10 = vector.broadcast %8 : vector<128x1xf32> to vector<128x256xf32>
    %11 = vector.broadcast %9 : vector<1x256xf32> to vector<128x256xf32>
    %12 = arith.mulf %10, %11 : vector<128x256xf32>
    %13 = vector.extract_strided_slice %2 {offsets = [0, 1], sizes = [128, 1], strides = [1, 1]} : vector<128x3xf32> to vector<128x1xf32>
    %14 = vector.extract_strided_slice %7 {offsets = [1, 0], sizes = [1, 256], strides = [1, 1]} : vector<3x256xf32> to vector<1x256xf32>
    %15 = vector.broadcast %13 : vector<128x1xf32> to vector<128x256xf32>
    %16 = vector.broadcast %14 : vector<1x256xf32> to vector<128x256xf32>
    %17 = arith.mulf %15, %16 : vector<128x256xf32>
    %18 = arith.addf %12, %17 : vector<128x256xf32>
    %19 = vector.extract_strided_slice %2 {offsets = [0, 2], sizes = [128, 1], strides = [1, 1]} : vector<128x3xf32> to vector<128x1xf32>
    %20 = vector.extract_strided_slice %7 {offsets = [2, 0], sizes = [1, 256], strides = [1, 1]} : vector<3x256xf32> to vector<1x256xf32>
    %21 = vector.broadcast %19 : vector<128x1xf32> to vector<128x256xf32>
    %22 = vector.broadcast %20 : vector<1x256xf32> to vector<128x256xf32>
    %23 = arith.mulf %21, %22 : vector<128x256xf32>
    %24 = arith.addf %18, %23 : vector<128x256xf32>
    %25 = vector.extract_strided_slice %24 {offsets = [0, 0], sizes = [128, 128], strides = [1, 1]} : vector<128x256xf32> to vector<128x128xf32>
    %26 = vector.extract_strided_slice %24 {offsets = [0, 128], sizes = [128, 128], strides = [1, 1]} : vector<128x256xf32> to vector<128x128xf32>
    %c0_4 = arith.constant 0 : index
    %c0_5 = arith.constant 0 : index
    %27 = vector.load %arg3[%c0_4, %c0_5] : memref<1x128xf32, #tpu.memory_space<vmem>>, vector<1x128xf32>
    %28 = vector.broadcast %27 : vector<1x128xf32> to vector<128x128xf32>
    %29 = arith.addf %25, %28 : vector<128x128xf32>
    %c0_6 = arith.constant 0 : index
    %c0_7 = arith.constant 0 : index
    %c0_8 = arith.constant 0 : index
    %30 = vector.load %arg4[%c0_6, %c0_7, %c0_8] : memref<5x128x128xbf16, #tpu.memory_space<vmem>>, vector<1x128x128xbf16>
    %31 = vector.shape_cast %30 : vector<1x128x128xbf16> to vector<128x128xbf16>
    %32 = arith.truncf %29 : vector<128x128xf32> to vector<128x128xbf16>
    %cst_9 = arith.constant dense<0.000000e+00> : vector<128x128xf32>
    %33 = tpu.matmul %32, %31, %cst_9 {dimension_numbers = #tpu.dot_dimension_numbers<[1], [0], [0], [1], [0, 0, 1, 1], [], []>} : vector<128x128xbf16>, vector<128x128xbf16>, vector<128x128xf32> -> vector<128x128xf32>
    %c0_10 = arith.constant 0 : index
    %c0_11 = arith.constant 0 : index
    %c0_12 = arith.constant 0 : index
    %34 = vector.load %arg5[%c0_10, %c0_11, %c0_12] : memref<5x1x128xf32, #tpu.memory_space<vmem>>, vector<1x1x128xf32>
    %35 = vector.shape_cast %34 : vector<1x1x128xf32> to vector<1x128xf32>
    %36 = vector.broadcast %35 : vector<1x128xf32> to vector<128x128xf32>
    %37 = arith.addf %33, %36 : vector<128x128xf32>
    %38 = arith.addf %37, %26 : vector<128x128xf32>
    %cst_13 = arith.constant 0.000000e+00 : f32
    %39 = vector.broadcast %cst_13 : f32 to vector<128x128xf32>
    %40 = arith.cmpf ogt, %38, %39 : vector<128x128xf32>
    %cst_14 = arith.constant 0.00999999977 : f32
    %41 = vector.broadcast %cst_14 : f32 to vector<128x128xf32>
    %42 = arith.mulf %41, %38 : vector<128x128xf32>
    %43 = arith.select %40, %38, %42 : vector<128x128xi1>, vector<128x128xf32>
    %c1 = arith.constant 1 : index
    %c0_15 = arith.constant 0 : index
    %c0_16 = arith.constant 0 : index
    %44 = vector.load %arg4[%c1, %c0_15, %c0_16] : memref<5x128x128xbf16, #tpu.memory_space<vmem>>, vector<1x128x128xbf16>
    %45 = vector.shape_cast %44 : vector<1x128x128xbf16> to vector<128x128xbf16>
    %46 = arith.truncf %43 : vector<128x128xf32> to vector<128x128xbf16>
    %cst_17 = arith.constant dense<0.000000e+00> : vector<128x128xf32>
    %47 = tpu.matmul %46, %45, %cst_17 {dimension_numbers = #tpu.dot_dimension_numbers<[1], [0], [0], [1], [0, 0, 1, 1], [], []>} : vector<128x128xbf16>, vector<128x128xbf16>, vector<128x128xf32> -> vector<128x128xf32>
    %c1_18 = arith.constant 1 : index
    %c0_19 = arith.constant 0 : index
    %c0_20 = arith.constant 0 : index
    %48 = vector.load %arg5[%c1_18, %c0_19, %c0_20] : memref<5x1x128xf32, #tpu.memory_space<vmem>>, vector<1x1x128xf32>
    %49 = vector.shape_cast %48 : vector<1x1x128xf32> to vector<1x128xf32>
    %50 = vector.broadcast %49 : vector<1x128xf32> to vector<128x128xf32>
    %51 = arith.addf %47, %50 : vector<128x128xf32>
    %cst_21 = arith.constant 0.000000e+00 : f32
    %52 = vector.broadcast %cst_21 : f32 to vector<128x128xf32>
    %53 = arith.cmpf ogt, %51, %52 : vector<128x128xf32>
    %cst_22 = arith.constant 0.00999999977 : f32
    %54 = vector.broadcast %cst_22 : f32 to vector<128x128xf32>
    %55 = arith.mulf %54, %51 : vector<128x128xf32>
    %56 = arith.select %53, %51, %55 : vector<128x128xi1>, vector<128x128xf32>
    %c2 = arith.constant 2 : index
    %c0_23 = arith.constant 0 : index
    %c0_24 = arith.constant 0 : index
    %57 = vector.load %arg4[%c2, %c0_23, %c0_24] : memref<5x128x128xbf16, #tpu.memory_space<vmem>>, vector<1x128x128xbf16>
    %58 = vector.shape_cast %57 : vector<1x128x128xbf16> to vector<128x128xbf16>
    %59 = arith.truncf %56 : vector<128x128xf32> to vector<128x128xbf16>
    %cst_25 = arith.constant dense<0.000000e+00> : vector<128x128xf32>
    %60 = tpu.matmul %59, %58, %cst_25 {dimension_numbers = #tpu.dot_dimension_numbers<[1], [0], [0], [1], [0, 0, 1, 1], [], []>} : vector<128x128xbf16>, vector<128x128xbf16>, vector<128x128xf32> -> vector<128x128xf32>
    %c2_26 = arith.constant 2 : index
    %c0_27 = arith.constant 0 : index
    %c0_28 = arith.constant 0 : index
    %61 = vector.load %arg5[%c2_26, %c0_27, %c0_28] : memref<5x1x128xf32, #tpu.memory_space<vmem>>, vector<1x1x128xf32>
    %62 = vector.shape_cast %61 : vector<1x1x128xf32> to vector<1x128xf32>
    %63 = vector.broadcast %62 : vector<1x128xf32> to vector<128x128xf32>
    %64 = arith.addf %60, %63 : vector<128x128xf32>
    %cst_29 = arith.constant 0.000000e+00 : f32
    %65 = vector.broadcast %cst_29 : f32 to vector<128x128xf32>
    %66 = arith.cmpf ogt, %64, %65 : vector<128x128xf32>
    %cst_30 = arith.constant 0.00999999977 : f32
    %67 = vector.broadcast %cst_30 : f32 to vector<128x128xf32>
    %68 = arith.mulf %67, %64 : vector<128x128xf32>
    %69 = arith.select %66, %64, %68 : vector<128x128xi1>, vector<128x128xf32>
    %c3 = arith.constant 3 : index
    %c0_31 = arith.constant 0 : index
    %c0_32 = arith.constant 0 : index
    %70 = vector.load %arg4[%c3, %c0_31, %c0_32] : memref<5x128x128xbf16, #tpu.memory_space<vmem>>, vector<1x128x128xbf16>
    %71 = vector.shape_cast %70 : vector<1x128x128xbf16> to vector<128x128xbf16>
    %72 = arith.truncf %69 : vector<128x128xf32> to vector<128x128xbf16>
    %cst_33 = arith.constant dense<0.000000e+00> : vector<128x128xf32>
    %73 = tpu.matmul %72, %71, %cst_33 {dimension_numbers = #tpu.dot_dimension_numbers<[1], [0], [0], [1], [0, 0, 1, 1], [], []>} : vector<128x128xbf16>, vector<128x128xbf16>, vector<128x128xf32> -> vector<128x128xf32>
    %c3_34 = arith.constant 3 : index
    %c0_35 = arith.constant 0 : index
    %c0_36 = arith.constant 0 : index
    %74 = vector.load %arg5[%c3_34, %c0_35, %c0_36] : memref<5x1x128xf32, #tpu.memory_space<vmem>>, vector<1x1x128xf32>
    %75 = vector.shape_cast %74 : vector<1x1x128xf32> to vector<1x128xf32>
    %76 = vector.broadcast %75 : vector<1x128xf32> to vector<128x128xf32>
    %77 = arith.addf %73, %76 : vector<128x128xf32>
    %cst_37 = arith.constant 0.000000e+00 : f32
    %78 = vector.broadcast %cst_37 : f32 to vector<128x128xf32>
    %79 = arith.cmpf ogt, %77, %78 : vector<128x128xf32>
    %cst_38 = arith.constant 0.00999999977 : f32
    %80 = vector.broadcast %cst_38 : f32 to vector<128x128xf32>
    %81 = arith.mulf %80, %77 : vector<128x128xf32>
    %82 = arith.select %79, %77, %81 : vector<128x128xi1>, vector<128x128xf32>
    %c4 = arith.constant 4 : index
    %c0_39 = arith.constant 0 : index
    %c0_40 = arith.constant 0 : index
    %83 = vector.load %arg4[%c4, %c0_39, %c0_40] : memref<5x128x128xbf16, #tpu.memory_space<vmem>>, vector<1x128x128xbf16>
    %84 = vector.shape_cast %83 : vector<1x128x128xbf16> to vector<128x128xbf16>
    %85 = arith.truncf %82 : vector<128x128xf32> to vector<128x128xbf16>
    %cst_41 = arith.constant dense<0.000000e+00> : vector<128x128xf32>
    %86 = tpu.matmul %85, %84, %cst_41 {dimension_numbers = #tpu.dot_dimension_numbers<[1], [0], [0], [1], [0, 0, 1, 1], [], []>} : vector<128x128xbf16>, vector<128x128xbf16>, vector<128x128xf32> -> vector<128x128xf32>
    %c4_42 = arith.constant 4 : index
    %c0_43 = arith.constant 0 : index
    %c0_44 = arith.constant 0 : index
    %87 = vector.load %arg5[%c4_42, %c0_43, %c0_44] : memref<5x1x128xf32, #tpu.memory_space<vmem>>, vector<1x1x128xf32>
    %88 = vector.shape_cast %87 : vector<1x1x128xf32> to vector<1x128xf32>
    %89 = vector.broadcast %88 : vector<1x128xf32> to vector<128x128xf32>
    %90 = arith.addf %86, %89 : vector<128x128xf32>
    %cst_45 = arith.constant 0.000000e+00 : f32
    %91 = vector.broadcast %cst_45 : f32 to vector<128x128xf32>
    %92 = arith.cmpf ogt, %90, %91 : vector<128x128xf32>
    %cst_46 = arith.constant 0.00999999977 : f32
    %93 = vector.broadcast %cst_46 : f32 to vector<128x128xf32>
    %94 = arith.mulf %93, %90 : vector<128x128xf32>
    %95 = arith.select %92, %90, %94 : vector<128x128xi1>, vector<128x128xf32>
    %c0_47 = arith.constant 0 : index
    %c0_48 = arith.constant 0 : index
    %96 = vector.load %arg6[%c0_47, %c0_48] : memref<128x32xbf16, #tpu.memory_space<vmem>>, vector<128x32xbf16>
    %97 = arith.truncf %95 : vector<128x128xf32> to vector<128x128xbf16>
    %cst_49 = arith.constant dense<0.000000e+00> : vector<128x32xf32>
    %98 = tpu.matmul %97, %96, %cst_49 {dimension_numbers = #tpu.dot_dimension_numbers<[1], [0], [0], [1], [0, 0, 1, 1], [], []>} : vector<128x128xbf16>, vector<128x32xbf16>, vector<128x32xf32> -> vector<128x32xf32>
    %c0_50 = arith.constant 0 : index
    %c0_51 = arith.constant 0 : index
    %99 = vector.load %arg7[%c0_50, %c0_51] : memref<1x32xf32, #tpu.memory_space<vmem>>, vector<1x32xf32>
    %100 = vector.broadcast %99 : vector<1x32xf32> to vector<128x32xf32>
    %101 = arith.addf %98, %100 : vector<128x32xf32>
    %c0_52 = arith.constant 0 : index
    %c0_53 = arith.constant 0 : index
    %102 = vector.load %arg8[%c0_52, %c0_53] : memref<3x32xf32, #tpu.memory_space<vmem>>, vector<3x32xf32>
    %103 = vector.extract_strided_slice %6 {offsets = [0, 0], sizes = [128, 1], strides = [1, 1]} : vector<128x3xf32> to vector<128x1xf32>
    %104 = vector.extract_strided_slice %102 {offsets = [0, 0], sizes = [1, 32], strides = [1, 1]} : vector<3x32xf32> to vector<1x32xf32>
    %105 = vector.broadcast %103 : vector<128x1xf32> to vector<128x32xf32>
    %106 = vector.broadcast %104 : vector<1x32xf32> to vector<128x32xf32>
    %107 = arith.mulf %105, %106 : vector<128x32xf32>
    %108 = vector.extract_strided_slice %6 {offsets = [0, 1], sizes = [128, 1], strides = [1, 1]} : vector<128x3xf32> to vector<128x1xf32>
    %109 = vector.extract_strided_slice %102 {offsets = [1, 0], sizes = [1, 32], strides = [1, 1]} : vector<3x32xf32> to vector<1x32xf32>
    %110 = vector.broadcast %108 : vector<128x1xf32> to vector<128x32xf32>
    %111 = vector.broadcast %109 : vector<1x32xf32> to vector<128x32xf32>
    %112 = arith.mulf %110, %111 : vector<128x32xf32>
    %113 = arith.addf %107, %112 : vector<128x32xf32>
    %114 = vector.extract_strided_slice %6 {offsets = [0, 2], sizes = [128, 1], strides = [1, 1]} : vector<128x3xf32> to vector<128x1xf32>
    %115 = vector.extract_strided_slice %102 {offsets = [2, 0], sizes = [1, 32], strides = [1, 1]} : vector<3x32xf32> to vector<1x32xf32>
    %116 = vector.broadcast %114 : vector<128x1xf32> to vector<128x32xf32>
    %117 = vector.broadcast %115 : vector<1x32xf32> to vector<128x32xf32>
    %118 = arith.mulf %116, %117 : vector<128x32xf32>
    %119 = arith.addf %113, %118 : vector<128x32xf32>
    %c0_54 = arith.constant 0 : index
    %c0_55 = arith.constant 0 : index
    %120 = vector.load %arg9[%c0_54, %c0_55] : memref<1x32xf32, #tpu.memory_space<vmem>>, vector<1x32xf32>
    %121 = vector.broadcast %120 : vector<1x32xf32> to vector<128x32xf32>
    %122 = arith.addf %119, %121 : vector<128x32xf32>
    %cst_56 = arith.constant 0.000000e+00 : f32
    %123 = vector.broadcast %cst_56 : f32 to vector<128x32xf32>
    %124 = arith.cmpf ogt, %122, %123 : vector<128x32xf32>
    %cst_57 = arith.constant 0.00999999977 : f32
    %125 = vector.broadcast %cst_57 : f32 to vector<128x32xf32>
    %126 = arith.mulf %125, %122 : vector<128x32xf32>
    %127 = arith.select %124, %122, %126 : vector<128x32xi1>, vector<128x32xf32>
    %c0_58 = arith.constant 0 : index
    %c0_59 = arith.constant 0 : index
    %128 = vector.load %arg10[%c0_58, %c0_59] : memref<3x384xf32, #tpu.memory_space<vmem>>, vector<3x384xf32>
    %129 = vector.extract_strided_slice %6 {offsets = [0, 0], sizes = [128, 1], strides = [1, 1]} : vector<128x3xf32> to vector<128x1xf32>
    %130 = vector.extract_strided_slice %128 {offsets = [0, 0], sizes = [1, 384], strides = [1, 1]} : vector<3x384xf32> to vector<1x384xf32>
    %131 = vector.broadcast %129 : vector<128x1xf32> to vector<128x384xf32>
    %132 = vector.broadcast %130 : vector<1x384xf32> to vector<128x384xf32>
    %133 = arith.mulf %131, %132 : vector<128x384xf32>
    %134 = vector.extract_strided_slice %6 {offsets = [0, 1], sizes = [128, 1], strides = [1, 1]} : vector<128x3xf32> to vector<128x1xf32>
    %135 = vector.extract_strided_slice %128 {offsets = [1, 0], sizes = [1, 384], strides = [1, 1]} : vector<3x384xf32> to vector<1x384xf32>
    %136 = vector.broadcast %134 : vector<128x1xf32> to vector<128x384xf32>
    %137 = vector.broadcast %135 : vector<1x384xf32> to vector<128x384xf32>
    %138 = arith.mulf %136, %137 : vector<128x384xf32>
    %139 = arith.addf %133, %138 : vector<128x384xf32>
    %140 = vector.extract_strided_slice %6 {offsets = [0, 2], sizes = [128, 1], strides = [1, 1]} : vector<128x3xf32> to vector<128x1xf32>
    %141 = vector.extract_strided_slice %128 {offsets = [2, 0], sizes = [1, 384], strides = [1, 1]} : vector<3x384xf32> to vector<1x384xf32>
    %142 = vector.broadcast %140 : vector<128x1xf32> to vector<128x384xf32>
    %143 = vector.broadcast %141 : vector<1x384xf32> to vector<128x384xf32>
    %144 = arith.mulf %142, %143 : vector<128x384xf32>
    %145 = arith.addf %139, %144 : vector<128x384xf32>
    %c0_60 = arith.constant 0 : index
    %c0_61 = arith.constant 0 : index
    %146 = vector.load %arg11[%c0_60, %c0_61] : memref<32x384xbf16, #tpu.memory_space<vmem>>, vector<32x384xbf16>
    %147 = arith.truncf %127 : vector<128x32xf32> to vector<128x32xbf16>
    %cst_62 = arith.constant dense<0.000000e+00> : vector<128x384xf32>
    %148 = tpu.matmul %147, %146, %cst_62 {dimension_numbers = #tpu.dot_dimension_numbers<[1], [0], [0], [1], [0, 0, 1, 1], [], []>} : vector<128x32xbf16>, vector<32x384xbf16>, vector<128x384xf32> -> vector<128x384xf32>
    %149 = arith.addf %145, %148 : vector<128x384xf32>
    %c0_63 = arith.constant 0 : index
    %c0_64 = arith.constant 0 : index
    %150 = vector.load %arg12[%c0_63, %c0_64] : memref<32x384xbf16, #tpu.memory_space<vmem>>, vector<32x384xbf16>
    %151 = arith.truncf %101 : vector<128x32xf32> to vector<128x32xbf16>
    %cst_65 = arith.constant dense<0.000000e+00> : vector<128x384xf32>
    %152 = tpu.matmul %151, %150, %cst_65 {dimension_numbers = #tpu.dot_dimension_numbers<[1], [0], [0], [1], [0, 0, 1, 1], [], []>} : vector<128x32xbf16>, vector<32x384xbf16>, vector<128x384xf32> -> vector<128x384xf32>
    %153 = arith.addf %149, %152 : vector<128x384xf32>
    %154 = vector.extract_strided_slice %153 {offsets = [0, 0], sizes = [128, 128], strides = [1, 1]} : vector<128x384xf32> to vector<128x128xf32>
    %c0_66 = arith.constant 0 : index
    %c0_67 = arith.constant 0 : index
    %155 = vector.load %arg13[%c0_66, %c0_67] : memref<1x128xf32, #tpu.memory_space<vmem>>, vector<1x128xf32>
    %156 = vector.broadcast %155 : vector<1x128xf32> to vector<128x128xf32>
    %157 = arith.addf %154, %156 : vector<128x128xf32>
    %c0_68 = arith.constant 0 : index
    %c0_69 = arith.constant 0 : index
    %c0_70 = arith.constant 0 : index
    %158 = vector.load %arg14[%c0_68, %c0_69, %c0_70] : memref<5x128x128xbf16, #tpu.memory_space<vmem>>, vector<1x128x128xbf16>
    %159 = vector.shape_cast %158 : vector<1x128x128xbf16> to vector<128x128xbf16>
    %160 = arith.truncf %157 : vector<128x128xf32> to vector<128x128xbf16>
    %cst_71 = arith.constant dense<0.000000e+00> : vector<128x128xf32>
    %161 = tpu.matmul %160, %159, %cst_71 {dimension_numbers = #tpu.dot_dimension_numbers<[1], [0], [0], [1], [0, 0, 1, 1], [], []>} : vector<128x128xbf16>, vector<128x128xbf16>, vector<128x128xf32> -> vector<128x128xf32>
    %c0_72 = arith.constant 0 : index
    %c0_73 = arith.constant 0 : index
    %c0_74 = arith.constant 0 : index
    %162 = vector.load %arg15[%c0_72, %c0_73, %c0_74] : memref<5x1x128xf32, #tpu.memory_space<vmem>>, vector<1x1x128xf32>
    %163 = vector.shape_cast %162 : vector<1x1x128xf32> to vector<1x128xf32>
    %164 = vector.broadcast %163 : vector<1x128xf32> to vector<128x128xf32>
    %165 = arith.addf %161, %164 : vector<128x128xf32>
    %166 = vector.extract_strided_slice %153 {offsets = [0, 128], sizes = [128, 128], strides = [1, 1]} : vector<128x384xf32> to vector<128x128xf32>
    %167 = arith.addf %165, %166 : vector<128x128xf32>
    %cst_75 = arith.constant 0.000000e+00 : f32
    %168 = vector.broadcast %cst_75 : f32 to vector<128x128xf32>
    %169 = arith.cmpf ogt, %167, %168 : vector<128x128xf32>
    %cst_76 = arith.constant 0.00999999977 : f32
    %170 = vector.broadcast %cst_76 : f32 to vector<128x128xf32>
    %171 = arith.mulf %170, %167 : vector<128x128xf32>
    %172 = arith.select %169, %167, %171 : vector<128x128xi1>, vector<128x128xf32>
    %c1_77 = arith.constant 1 : index
    %c0_78 = arith.constant 0 : index
    %c0_79 = arith.constant 0 : index
    %173 = vector.load %arg14[%c1_77, %c0_78, %c0_79] : memref<5x128x128xbf16, #tpu.memory_space<vmem>>, vector<1x128x128xbf16>
    %174 = vector.shape_cast %173 : vector<1x128x128xbf16> to vector<128x128xbf16>
    %175 = arith.truncf %172 : vector<128x128xf32> to vector<128x128xbf16>
    %cst_80 = arith.constant dense<0.000000e+00> : vector<128x128xf32>
    %176 = tpu.matmul %175, %174, %cst_80 {dimension_numbers = #tpu.dot_dimension_numbers<[1], [0], [0], [1], [0, 0, 1, 1], [], []>} : vector<128x128xbf16>, vector<128x128xbf16>, vector<128x128xf32> -> vector<128x128xf32>
    %c1_81 = arith.constant 1 : index
    %c0_82 = arith.constant 0 : index
    %c0_83 = arith.constant 0 : index
    %177 = vector.load %arg15[%c1_81, %c0_82, %c0_83] : memref<5x1x128xf32, #tpu.memory_space<vmem>>, vector<1x1x128xf32>
    %178 = vector.shape_cast %177 : vector<1x1x128xf32> to vector<1x128xf32>
    %179 = vector.broadcast %178 : vector<1x128xf32> to vector<128x128xf32>
    %180 = arith.addf %176, %179 : vector<128x128xf32>
    %cst_84 = arith.constant 0.000000e+00 : f32
    %181 = vector.broadcast %cst_84 : f32 to vector<128x128xf32>
    %182 = arith.cmpf ogt, %180, %181 : vector<128x128xf32>
    %cst_85 = arith.constant 0.00999999977 : f32
    %183 = vector.broadcast %cst_85 : f32 to vector<128x128xf32>
    %184 = arith.mulf %183, %180 : vector<128x128xf32>
    %185 = arith.select %182, %180, %184 : vector<128x128xi1>, vector<128x128xf32>
    %c2_86 = arith.constant 2 : index
    %c0_87 = arith.constant 0 : index
    %c0_88 = arith.constant 0 : index
    %186 = vector.load %arg14[%c2_86, %c0_87, %c0_88] : memref<5x128x128xbf16, #tpu.memory_space<vmem>>, vector<1x128x128xbf16>
    %187 = vector.shape_cast %186 : vector<1x128x128xbf16> to vector<128x128xbf16>
    %188 = arith.truncf %185 : vector<128x128xf32> to vector<128x128xbf16>
    %cst_89 = arith.constant dense<0.000000e+00> : vector<128x128xf32>
    %189 = tpu.matmul %188, %187, %cst_89 {dimension_numbers = #tpu.dot_dimension_numbers<[1], [0], [0], [1], [0, 0, 1, 1], [], []>} : vector<128x128xbf16>, vector<128x128xbf16>, vector<128x128xf32> -> vector<128x128xf32>
    %c2_90 = arith.constant 2 : index
    %c0_91 = arith.constant 0 : index
    %c0_92 = arith.constant 0 : index
    %190 = vector.load %arg15[%c2_90, %c0_91, %c0_92] : memref<5x1x128xf32, #tpu.memory_space<vmem>>, vector<1x1x128xf32>
    %191 = vector.shape_cast %190 : vector<1x1x128xf32> to vector<1x128xf32>
    %192 = vector.broadcast %191 : vector<1x128xf32> to vector<128x128xf32>
    %193 = arith.addf %189, %192 : vector<128x128xf32>
    %cst_93 = arith.constant 0.000000e+00 : f32
    %194 = vector.broadcast %cst_93 : f32 to vector<128x128xf32>
    %195 = arith.cmpf ogt, %193, %194 : vector<128x128xf32>
    %cst_94 = arith.constant 0.00999999977 : f32
    %196 = vector.broadcast %cst_94 : f32 to vector<128x128xf32>
    %197 = arith.mulf %196, %193 : vector<128x128xf32>
    %198 = arith.select %195, %193, %197 : vector<128x128xi1>, vector<128x128xf32>
    %c3_95 = arith.constant 3 : index
    %c0_96 = arith.constant 0 : index
    %c0_97 = arith.constant 0 : index
    %199 = vector.load %arg14[%c3_95, %c0_96, %c0_97] : memref<5x128x128xbf16, #tpu.memory_space<vmem>>, vector<1x128x128xbf16>
    %200 = vector.shape_cast %199 : vector<1x128x128xbf16> to vector<128x128xbf16>
    %201 = arith.truncf %198 : vector<128x128xf32> to vector<128x128xbf16>
    %cst_98 = arith.constant dense<0.000000e+00> : vector<128x128xf32>
    %202 = tpu.matmul %201, %200, %cst_98 {dimension_numbers = #tpu.dot_dimension_numbers<[1], [0], [0], [1], [0, 0, 1, 1], [], []>} : vector<128x128xbf16>, vector<128x128xbf16>, vector<128x128xf32> -> vector<128x128xf32>
    %c3_99 = arith.constant 3 : index
    %c0_100 = arith.constant 0 : index
    %c0_101 = arith.constant 0 : index
    %203 = vector.load %arg15[%c3_99, %c0_100, %c0_101] : memref<5x1x128xf32, #tpu.memory_space<vmem>>, vector<1x1x128xf32>
    %204 = vector.shape_cast %203 : vector<1x1x128xf32> to vector<1x128xf32>
    %205 = vector.broadcast %204 : vector<1x128xf32> to vector<128x128xf32>
    %206 = arith.addf %202, %205 : vector<128x128xf32>
    %207 = vector.extract_strided_slice %153 {offsets = [0, 256], sizes = [128, 128], strides = [1, 1]} : vector<128x384xf32> to vector<128x128xf32>
    %208 = arith.addf %206, %207 : vector<128x128xf32>
    %cst_102 = arith.constant 0.000000e+00 : f32
    %209 = vector.broadcast %cst_102 : f32 to vector<128x128xf32>
    %210 = arith.cmpf ogt, %208, %209 : vector<128x128xf32>
    %cst_103 = arith.constant 0.00999999977 : f32
    %211 = vector.broadcast %cst_103 : f32 to vector<128x128xf32>
    %212 = arith.mulf %211, %208 : vector<128x128xf32>
    %213 = arith.select %210, %208, %212 : vector<128x128xi1>, vector<128x128xf32>
    %c4_104 = arith.constant 4 : index
    %c0_105 = arith.constant 0 : index
    %c0_106 = arith.constant 0 : index
    %214 = vector.load %arg14[%c4_104, %c0_105, %c0_106] : memref<5x128x128xbf16, #tpu.memory_space<vmem>>, vector<1x128x128xbf16>
    %215 = vector.shape_cast %214 : vector<1x128x128xbf16> to vector<128x128xbf16>
    %216 = arith.truncf %213 : vector<128x128xf32> to vector<128x128xbf16>
    %cst_107 = arith.constant dense<0.000000e+00> : vector<128x128xf32>
    %217 = tpu.matmul %216, %215, %cst_107 {dimension_numbers = #tpu.dot_dimension_numbers<[1], [0], [0], [1], [0, 0, 1, 1], [], []>} : vector<128x128xbf16>, vector<128x128xbf16>, vector<128x128xf32> -> vector<128x128xf32>
    %c4_108 = arith.constant 4 : index
    %c0_109 = arith.constant 0 : index
    %c0_110 = arith.constant 0 : index
    %218 = vector.load %arg15[%c4_108, %c0_109, %c0_110] : memref<5x1x128xf32, #tpu.memory_space<vmem>>, vector<1x1x128xf32>
    %219 = vector.shape_cast %218 : vector<1x1x128xf32> to vector<1x128xf32>
    %220 = vector.broadcast %219 : vector<1x128xf32> to vector<128x128xf32>
    %221 = arith.addf %217, %220 : vector<128x128xf32>
    %cst_111 = arith.constant 0.000000e+00 : f32
    %222 = vector.broadcast %cst_111 : f32 to vector<128x128xf32>
    %223 = arith.cmpf ogt, %221, %222 : vector<128x128xf32>
    %cst_112 = arith.constant 0.00999999977 : f32
    %224 = vector.broadcast %cst_112 : f32 to vector<128x128xf32>
    %225 = arith.mulf %224, %221 : vector<128x128xf32>
    %226 = arith.select %223, %221, %225 : vector<128x128xi1>, vector<128x128xf32>
    %c0_113 = arith.constant 0 : index
    %c0_114 = arith.constant 0 : index
    %227 = vector.load %arg16[%c0_113, %c0_114] : memref<128x128xbf16, #tpu.memory_space<vmem>>, vector<128x128xbf16>
    %228 = arith.truncf %226 : vector<128x128xf32> to vector<128x128xbf16>
    %cst_115 = arith.constant dense<0.000000e+00> : vector<128x128xf32>
    %229 = tpu.matmul %228, %227, %cst_115 {dimension_numbers = #tpu.dot_dimension_numbers<[1], [0], [0], [1], [0, 0, 1, 1], [], []>} : vector<128x128xbf16>, vector<128x128xbf16>, vector<128x128xf32> -> vector<128x128xf32>
    %c0_116 = arith.constant 0 : index
    %c0_117 = arith.constant 0 : index
    %230 = vector.load %arg17[%c0_116, %c0_117] : memref<1x128xf32, #tpu.memory_space<vmem>>, vector<1x128xf32>
    %231 = vector.broadcast %230 : vector<1x128xf32> to vector<128x128xf32>
    %232 = arith.addf %229, %231 : vector<128x128xf32>
    %c0_118 = arith.constant 0 : index
    %c0_119 = arith.constant 0 : index
    %233 = vector.load %arg18[%c0_118, %c0_119] : memref<128x128xf32, #tpu.memory_space<vmem>>, vector<128x128xf32>
    tpu.vector_store %arg18[%c0_118, %c0_119], %232 {strides = array<i32>} : memref<128x128xf32, #tpu.memory_space<vmem>>, vector<128x128xf32>,
    return
  }
  func.func @transform_0(%arg0: i32) -> (i32, i32) {
    %c0_i32 = arith.constant 0 : i32
    %c0_i32_0 = arith.constant 0 : i32
    return %arg0, %c0_i32 : i32, i32
  }
  func.func @transform_1(%arg0: i32) -> (i32, i32) {
    %c0_i32 = arith.constant 0 : i32
    %c0_i32_0 = arith.constant 0 : i32
    %c0_i32_1 = arith.constant 0 : i32
    return %c0_i32, %c0_i32_0 : i32, i32
  }
  func.func @transform_2(%arg0: i32) -> (i32, i32) {
    %c0_i32 = arith.constant 0 : i32
    %c0_i32_0 = arith.constant 0 : i32
    %c0_i32_1 = arith.constant 0 : i32
    return %c0_i32, %c0_i32_0 : i32, i32
  }
  func.func @transform_3(%arg0: i32) -> (i32, i32, i32) {
    %c0_i32 = arith.constant 0 : i32
    %c0_i32_0 = arith.constant 0 : i32
    %c0_i32_1 = arith.constant 0 : i32
    %c0_i32_2 = arith.constant 0 : i32
    return %c0_i32, %c0_i32_0, %c0_i32_1 : i32, i32, i32
  }
  func.func @transform_4(%arg0: i32) -> (i32, i32, i32) {
    %c0_i32 = arith.constant 0 : i32
    %c0_i32_0 = arith.constant 0 : i32
    %c0_i32_1 = arith.constant 0 : i32
    %c0_i32_2 = arith.constant 0 : i32
    return %c0_i32, %c0_i32_0, %c0_i32_1 : i32, i32, i32
  }
  func.func @transform_5(%arg0: i32) -> (i32, i32) {
    %c0_i32 = arith.constant 0 : i32
    %c0_i32_0 = arith.constant 0 : i32
    %c0_i32_1 = arith.constant 0 : i32
    return %c0_i32, %c0_i32_0 : i32, i32
  }
  func.func @transform_6(%arg0: i32) -> (i32, i32) {
    %c0_i32 = arith.constant 0 : i32
    %c0_i32_0 = arith.constant 0 : i32
    %c0_i32_1 = arith.constant 0 : i32
    return %c0_i32, %c0_i32_0 : i32, i32
  }
  func.func @transform_7(%arg0: i32) -> (i32, i32) {
    %c0_i32 = arith.constant 0 : i32
    %c0_i32_0 = arith.constant 0 : i32
    %c0_i32_1 = arith.constant 0 : i32
    return %c0_i32, %c0_i32_0 : i32, i32
  }
  func.func @transform_8(%arg0: i32) -> (i32, i32) {
    %c0_i32 = arith.constant 0 : i32
    %c0_i32_0 = arith.constant 0 : i32
    %c0_i32_1 = arith.constant 0 : i32
    return %c0_i32, %c0_i32_0 : i32, i32
  }
  func.func @transform_9(%arg0: i32) -> (i32, i32) {
    %c0_i32 = arith.constant 0 : i32
    %c0_i32_0 = arith.constant 0 : i32
    %c0_i32_1 = arith.constant 0 : i32
    return %c0_i32, %c0_i32_0 : i32, i32
  }
  func.func @transform_10(%arg0: i32) -> (i32, i32) {
    %c0_i32 = arith.constant 0 : i32
    %c0_i32_0 = arith.constant 0 : i32
    %c0_i32_1 = arith.constant 0 : i32
    return %c0_i32, %c0_i32_0 : i32, i32
  }
  func.func @transform_11(%arg0: i32) -> (i32, i32) {
    %c0_i32 = arith.constant 0 : i32
    %c0_i32_0 = arith.constant 0 : i32
    %c0_i32_1 = arith.constant 0 : i32
    return %c0_i32, %c0_i32_0 : i32, i32
  }
  func.func @transform_12(%arg0: i32) -> (i32, i32) {
    %c0_i32 = arith.constant 0 : i32
    %c0_i32_0 = arith.constant 0 : i32
    %c0_i32_1 = arith.constant 0 : i32
    return %c0_i32, %c0_i32_0 : i32, i32
  }
  func.func @transform_13(%arg0: i32) -> (i32, i32, i32) {
    %c0_i32 = arith.constant 0 : i32
    %c0_i32_0 = arith.constant 0 : i32
    %c0_i32_1 = arith.constant 0 : i32
    %c0_i32_2 = arith.constant 0 : i32
    return %c0_i32, %c0_i32_0, %c0_i32_1 : i32, i32, i32
  }
  func.func @transform_14(%arg0: i32) -> (i32, i32, i32) {
    %c0_i32 = arith.constant 0 : i32
    %c0_i32_0 = arith.constant 0 : i32
    %c0_i32_1 = arith.constant 0 : i32
    %c0_i32_2 = arith.constant 0 : i32
    return %c0_i32, %c0_i32_0, %c0_i32_1 : i32, i32, i32
  }
  func.func @transform_15(%arg0: i32) -> (i32, i32) {
    %c0_i32 = arith.constant 0 : i32
    %c0_i32_0 = arith.constant 0 : i32
    %c0_i32_1 = arith.constant 0 : i32
    return %c0_i32, %c0_i32_0 : i32, i32
  }
  func.func @transform_16(%arg0: i32) -> (i32, i32) {
    %c0_i32 = arith.constant 0 : i32
    %c0_i32_0 = arith.constant 0 : i32
    %c0_i32_1 = arith.constant 0 : i32
    return %c0_i32, %c0_i32_0 : i32, i32
  }
  func.func @transform_17(%arg0: i32) -> (i32, i32) {
    %c0_i32 = arith.constant 0 : i32
    %c0_i32_0 = arith.constant 0 : i32
    return %arg0, %c0_i32 : i32, i32
  }
}

</mosaic_0001>

<llo_original>
// kernel: tpu_custom_call.1
$region0: #{tpu_custom_call.1}
  #allocation0 [shape = 'u32[]', space=smem, size = 0x4, offset = 0x4, fixed_abs, tag = 'smem constant byte address 0x4 - core index']
  #allocation1 [shape = 'u32[72,128]{1,0:T(1,128)}', space=vmem, size = 0x9000, scoped, tag = 'internal scratch']
  %s0 = inlined_call_operand.vmem [shape: f32[256,3], index: 0, kind: input, shape index: {}]
  %s1 = inlined_call_operand.hbm [shape: f32[3,256], index: 1, kind: input, shape index: {}]
  %s2 = inlined_call_operand.vmem [shape: f32[1,128], index: 2, kind: input, shape index: {}]
  %s3 = inlined_call_operand.vmem [shape: bf16[5,128,128], index: 3, kind: input, shape index: {}]
  %s4 = inlined_call_operand.vmem [shape: f32[5,1,128], index: 4, kind: input, shape index: {}]
  %s5 = inlined_call_operand.vmem [shape: bf16[128,32], index: 5, kind: input, shape index: {}]
  %s6 = inlined_call_operand.hbm [shape: f32[1,32], index: 6, kind: input, shape index: {}]
  %s7 = inlined_call_operand.hbm [shape: f32[3,32], index: 7, kind: input, shape index: {}]
  %s8 = inlined_call_operand.hbm [shape: f32[1,32], index: 8, kind: input, shape index: {}]
  %s9 = inlined_call_operand.vmem [shape: f32[3,384], index: 9, kind: input, shape index: {}]
  %s10 = inlined_call_operand.hbm [shape: bf16[32,384], index: 10, kind: input, shape index: {}]
  %s11 = inlined_call_operand.hbm [shape: bf16[32,384], index: 11, kind: input, shape index: {}]
  %s12 = inlined_call_operand.vmem [shape: f32[1,128], index: 12, kind: input, shape index: {}]
  %s13 = inlined_call_operand.hbm [shape: bf16[5,128,128], index: 13, kind: input, shape index: {}]
  %s14 = inlined_call_operand.vmem [shape: f32[5,1,128], index: 14, kind: input, shape index: {}]
  %s15 = inlined_call_operand.hbm [shape: bf16[128,128], index: 15, kind: input, shape index: {}]
  %s16 = inlined_call_operand.vmem [shape: f32[1,128], index: 16, kind: input, shape index: {}]
  %s17 = inlined_call_operand.hbm [shape: f32[256,128], index: 17, kind: output, shape index: {}]
  %s18 = sld [smem:[#allocation0]]
  $region133: #{tpu_custom_call.1} parent=0
    _
  %s20 = ssub.s32 1, %s18
  %s21 = scalar_select 0, %s20, %s18
  $region1: #{tpu_custom_call.1} parent=0
    #allocation2 [shape = 'u8[4096]{0}', space=vmem, size = 0x1000, scoped, tag = 'input window, operand 1, single buffered']
    #allocation3 [shape = 's32[2]{0}', space=sflag, size = 0x8, scoped, tag = 'scoped memory for tpu_custom_call.1']
    #allocation4 [shape = 's32[2]{0}', space=sflag, size = 0x8, scoped, tag = 'scoped memory for tpu_custom_call.1']
    #allocation5 [shape = 'u8[512]{0}', space=vmem, size = 0x400, scoped, tag = 'input window, operand 6, single buffered']
    #allocation6 [shape = 's32[1]{0}', space=sflag, size = 0x4, scoped, tag = 'scoped memory for tpu_custom_call.1']
    #allocation7 [shape = 'u8[2048]{0}', space=vmem, size = 0x800, scoped, tag = 'input window, operand 7, single buffered']
    #allocation8 [shape = 'u8[512]{0}', space=vmem, size = 0x400, scoped, tag = 'input window, operand 8, single buffered']
    #allocation9 [shape = 's32[1]{0}', space=sflag, size = 0x4, scoped, tag = 'scoped memory for tpu_custom_call.1']
    #allocation10 [shape = 'u8[24576]{0}', space=vmem, size = 0x6000, scoped, tag = 'input window, operand 10, single buffered']
    #allocation11 [shape = 'u8[24576]{0}', space=vmem, size = 0x6000, scoped, tag = 'input window, operand 11, single buffered']
    #allocation12 [shape = 's32[1]{0}', space=sflag, size = 0x4, scoped, tag = 'scoped memory for tpu_custom_call.1']
    #allocation13 [shape = 'u8[163840]{0}', space=vmem, size = 0x28000, scoped, tag = 'input window, operand 13, single buffered']
    #allocation14 [shape = 'u8[32768]{0}', space=vmem, size = 0x8000, scoped, tag = 'input window, operand 15, single buffered']
    #allocation15 [shape = 's32[1]{0}', space=sflag, size = 0x4, scoped, tag = 'scoped memory for tpu_custom_call.1']
    #allocation16 [shape = 'u8[131072]{0}', space=vmem, size = 0x20000, scoped, tag = 'output window, operand 0']
    %22 = vsyncpa [#allocation3], 0
    %23 = vsyncpa [#allocation6], 0
    %24 = vsyncpa [#allocation9], 0
    %25 = vsyncpa [#allocation12], 0
    %26 = vsyncpa [#allocation15], 0
    %27 = vsyncpa [#allocation4], 0
    %s28 = scalar_lea.sflag [#allocation4], 1
    %29 = vsyncpa %s28, 0
    loop: start=0, step=1, limit=4
    $region2: #{tpu_custom_call.1} parent=1 // loop_pre_header
      _
    $region3: #{tpu_custom_call.1} parent=1 // loop_header
      %s31 = sphi 0, %s35
      %p32 = scmp.ge.s32.totalorder %s31, 4
      %s41 = sphi 0, %s43
      %s44 = sphi 0, %s41
      %s45 = sphi 0, %s44
      %s61 = sphi 0, %s45
      %s65 = sphi 0, %s65
      %s67 = sphi 0, %s65
      %s68 = sphi 0, %s67
      %s82 = sphi 0, %s68
      %s86 = sphi 0, %s86
      %s88 = sphi 0, %s86
      %s89 = sphi 0, %s88
      %s103 = sphi 0, %s89
      %s107 = sphi 0, %s107
      %s109 = sphi 0, %s107
      %s110 = sphi 0, %s109
      %s124 = sphi 0, %s110
      %s128 = sphi 0, %s128
      %s130 = sphi 0, %s128
      %s131 = sphi 0, %s130
      %s145 = sphi 0, %s131
      %s149 = sphi 0, %s149
      %s151 = sphi 0, %s149
      %s152 = sphi 0, %s151
      %s166 = sphi 0, %s152
      %s170 = sphi 0, %s170
      %s172 = sphi 0, %s170
      %s173 = sphi 0, %s172
      %s187 = sphi 0, %s173
      %s191 = sphi 0, %s191
      %s193 = sphi 0, %s191
      %s194 = sphi 0, %s193
      %s208 = sphi 0, %s194
      %s212 = sphi 0, %s212
      %s214 = sphi 0, %s212
      %s215 = sphi 0, %s214
      %s229 = sphi 0, %s215
      %s233 = sphi 0, %s233
      %s235 = sphi 0, %s233
      %s236 = sphi 0, %s235
      %s250 = sphi 0, %s236
      %s254 = sphi 0, %s254
      %s256 = sphi 0, %s254
      %s257 = sphi 0, %s256
      %s271 = sphi 0, %s257
      %s275 = sphi 0, %s275
      %s277 = sphi 0, %s275
      %s278 = sphi 0, %s277
      %s292 = sphi 0, %s278
      %s296 = sphi 0, %s296
      %s298 = sphi 0, %s296
      %s299 = sphi 0, %s298
      %s313 = sphi 0, %s299
      %s317 = sphi 0, %s317
      %s319 = sphi 0, %s317
      %s320 = sphi 0, %s319
      %s334 = sphi 0, %s320
      %s338 = sphi 0, %s338
      %s340 = sphi 0, %s338
      %s341 = sphi 0, %s340
      %s355 = sphi 0, %s341
      %s359 = sphi 0, %s359
      %s361 = sphi 0, %s359
      %s362 = sphi 0, %s361
      %s376 = sphi 0, %s362
      %s380 = sphi 0, %s380
      %s382 = sphi 0, %s380
      %s383 = sphi 0, %s382
      %s397 = sphi 0, %s383
      %s403 = sphi 0, %s405
      %s406 = sphi 0, %s403
      %s407 = sphi 0, %s406
      %s423 = sphi 0, %s407
    $region4: #{tpu_custom_call.1} parent=1 // loop_header_branch
      %34 = sbr.rel (%p32) target = $region8
    $region5: #{tpu_custom_call.1} parent=1 // loop_body
      %s36 = ssub.s32 %s31, 1
      %s37 = ssub.s32 %s31, 2
      %s38 = sadd.s32 %s31, 1
      %s39 = ssub.s32 %s31, %s38
      %p40 = scmp.eq.s32.totalorder %s39, 0
      %s42 = sadd.s32 %s41, 1
      %s43 = scalar_select %p40, %s41, %s42
      %p46 = pneg %p40
      %p47 = scmp.eq.s32.totalorder %s31, 1
      %p48 = por %p46, %p47
      %p49 = scmp.ne.s32.totalorder %s41, %s44
      %p50 = scmp.eq.s32.totalorder %s31, 0
      %p51 = por %p49, %p50
      %p52 = scmp.ne.s32.totalorder %s41, %s44
      %p53 = scmp.eq.s32.totalorder %s36, 1
      %p54 = por %p52, %p53
      %p55 = scmp.ne.s32.totalorder %s44, %s45
      %p56 = scmp.eq.s32.totalorder %s36, 0
      %p57 = por %p55, %p56
      %p58 = scmp.ne.s32.totalorder %s44, %s45
      %p59 = scmp.eq.s32.totalorder %s37, 1
      %p60 = por %p58, %p59
      %p62 = scmp.ne.s32.totalorder %s45, %s61
      %p63 = scmp.eq.s32.totalorder %s37, 0
      %p64 = por %p62, %p63
      %s66 = sadd.s32 %s65, 1
      %p69 = scmp.eq.s32.totalorder %s31, 1
      %p70 = scmp.ne.s32.totalorder %s65, %s67
      %p71 = scmp.eq.s32.totalorder %s31, 0
      %p72 = por %p70, %p71
      %p73 = scmp.ne.s32.totalorder %s65, %s67
      %p74 = scmp.eq.s32.totalorder %s36, 1
      %p75 = por %p73, %p74
      %p76 = scmp.ne.s32.totalorder %s67, %s68
      %p77 = scmp.eq.s32.totalorder %s36, 0
      %p78 = por %p76, %p77
      %p79 = scmp.ne.s32.totalorder %s67, %s68
      %p80 = scmp.eq.s32.totalorder %s37, 1
      %p81 = por %p79, %p80
      %p83 = scmp.ne.s32.totalorder %s68, %s82
      %p84 = scmp.eq.s32.totalorder %s37, 0
      %p85 = por %p83, %p84
      %s87 = sadd.s32 %s86, 1
      %p90 = scmp.eq.s32.totalorder %s31, 1
      %p91 = scmp.ne.s32.totalorder %s86, %s88
      %p92 = scmp.eq.s32.totalorder %s31, 0
      %p93 = por %p91, %p92
      %p94 = scmp.ne.s32.totalorder %s86, %s88
      %p95 = scmp.eq.s32.totalorder %s36, 1
      %p96 = por %p94, %p95
      %p97 = scmp.ne.s32.totalorder %s88, %s89
      %p98 = scmp.eq.s32.totalorder %s36, 0
      %p99 = por %p97, %p98
      %p100 = scmp.ne.s32.totalorder %s88, %s89
      %p101 = scmp.eq.s32.totalorder %s37, 1
      %p102 = por %p100, %p101
      %p104 = scmp.ne.s32.totalorder %s89, %s103
      %p105 = scmp.eq.s32.totalorder %s37, 0
      %p106 = por %p104, %p105
      %s108 = sadd.s32 %s107, 1
      %p111 = scmp.eq.s32.totalorder %s31, 1
      %p112 = scmp.ne.s32.totalorder %s107, %s109
      %p113 = scmp.eq.s32.totalorder %s31, 0
      %p114 = por %p112, %p113
      %p115 = scmp.ne.s32.totalorder %s107, %s109
      %p116 = scmp.eq.s32.totalorder %s36, 1
      %p117 = por %p115, %p116
      %p118 = scmp.ne.s32.totalorder %s109, %s110
      %p119 = scmp.eq.s32.totalorder %s36, 0
      %p120 = por %p118, %p119
      %p121 = scmp.ne.s32.totalorder %s109, %s110
      %p122 = scmp.eq.s32.totalorder %s37, 1
      %p123 = por %p121, %p122
      %p125 = scmp.ne.s32.totalorder %s110, %s124
      %p126 = scmp.eq.s32.totalorder %s37, 0
      %p127 = por %p125, %p126
      %s129 = sadd.s32 %s128, 1
      %p132 = scmp.eq.s32.totalorder %s31, 1
      %p133 = scmp.ne.s32.totalorder %s128, %s130
      %p134 = scmp.eq.s32.totalorder %s31, 0
      %p135 = por %p133, %p134
      %p136 = scmp.ne.s32.totalorder %s128, %s130
      %p137 = scmp.eq.s32.totalorder %s36, 1
      %p138 = por %p136, %p137
      %p139 = scmp.ne.s32.totalorder %s130, %s131
      %p140 = scmp.eq.s32.totalorder %s36, 0
      %p141 = por %p139, %p140
      %p142 = scmp.ne.s32.totalorder %s130, %s131
      %p143 = scmp.eq.s32.totalorder %s37, 1
      %p144 = por %p142, %p143
      %p146 = scmp.ne.s32.totalorder %s131, %s145
      %p147 = scmp.eq.s32.totalorder %s37, 0
      %p148 = por %p146, %p147
      %s150 = sadd.s32 %s149, 1
      %p153 = scmp.eq.s32.totalorder %s31, 1
      %p154 = scmp.ne.s32.totalorder %s149, %s151
      %p155 = scmp.eq.s32.totalorder %s31, 0
      %p156 = por %p154, %p155
      %p157 = scmp.ne.s32.totalorder %s149, %s151
      %p158 = scmp.eq.s32.totalorder %s36, 1
      %p159 = por %p157, %p158
      %p160 = scmp.ne.s32.totalorder %s151, %s152
      %p161 = scmp.eq.s32.totalorder %s36, 0
      %p162 = por %p160, %p161
      %p163 = scmp.ne.s32.totalorder %s151, %s152
      %p164 = scmp.eq.s32.totalorder %s37, 1
      %p165 = por %p163, %p164
      %p167 = scmp.ne.s32.totalorder %s152, %s166
      %p168 = scmp.eq.s32.totalorder %s37, 0
      %p169 = por %p167, %p168
      %s171 = sadd.s32 %s170, 1
      %p174 = scmp.eq.s32.totalorder %s31, 1
      %p175 = scmp.ne.s32.totalorder %s170, %s172
      %p176 = scmp.eq.s32.totalorder %s31, 0
      %p177 = por %p175, %p176
      %p178 = scmp.ne.s32.totalorder %s170, %s172
      %p179 = scmp.eq.s32.totalorder %s36, 1
      %p180 = por %p178, %p179
      %p181 = scmp.ne.s32.totalorder %s172, %s173
      %p182 = scmp.eq.s32.totalorder %s36, 0
      %p183 = por %p181, %p182
      %p184 = scmp.ne.s32.totalorder %s172, %s173
      %p185 = scmp.eq.s32.totalorder %s37, 1
      %p186 = por %p184, %p185
      %p188 = scmp.ne.s32.totalorder %s173, %s187
      %p189 = scmp.eq.s32.totalorder %s37, 0
      %p190 = por %p188, %p189
      %s192 = sadd.s32 %s191, 1
      %p195 = scmp.eq.s32.totalorder %s31, 1
      %p196 = scmp.ne.s32.totalorder %s191, %s193
      %p197 = scmp.eq.s32.totalorder %s31, 0
      %p198 = por %p196, %p197
      %p199 = scmp.ne.s32.totalorder %s191, %s193
      %p200 = scmp.eq.s32.totalorder %s36, 1
      %p201 = por %p199, %p200
      %p202 = scmp.ne.s32.totalorder %s193, %s194
      %p203 = scmp.eq.s32.totalorder %s36, 0
      %p204 = por %p202, %p203
      %p205 = scmp.ne.s32.totalorder %s193, %s194
      %p206 = scmp.eq.s32.totalorder %s37, 1
      %p207 = por %p205, %p206
      %p209 = scmp.ne.s32.totalorder %s194, %s208
      %p210 = scmp.eq.s32.totalorder %s37, 0
      %p211 = por %p209, %p210
      %s213 = sadd.s32 %s212, 1
      %p216 = scmp.eq.s32.totalorder %s31, 1
      %p217 = scmp.ne.s32.totalorder %s212, %s214
      %p218 = scmp.eq.s32.totalorder %s31, 0
      %p219 = por %p217, %p218
      %p220 = scmp.ne.s32.totalorder %s212, %s214
      %p221 = scmp.eq.s32.totalorder %s36, 1
      %p222 = por %p220, %p221
      %p223 = scmp.ne.s32.totalorder %s214, %s215
      %p224 = scmp.eq.s32.totalorder %s36, 0
      %p225 = por %p223, %p224
      %p226 = scmp.ne.s32.totalorder %s214, %s215
      %p227 = scmp.eq.s32.totalorder %s37, 1
      %p228 = por %p226, %p227
      %p230 = scmp.ne.s32.totalorder %s215, %s229
      %p231 = scmp.eq.s32.totalorder %s37, 0
      %p232 = por %p230, %p231
      %s234 = sadd.s32 %s233, 1
      %p237 = scmp.eq.s32.totalorder %s31, 1
      %p238 = scmp.ne.s32.totalorder %s233, %s235
      %p239 = scmp.eq.s32.totalorder %s31, 0
      %p240 = por %p238, %p239
      %p241 = scmp.ne.s32.totalorder %s233, %s235
      %p242 = scmp.eq.s32.totalorder %s36, 1
      %p243 = por %p241, %p242
      %p244 = scmp.ne.s32.totalorder %s235, %s236
      %p245 = scmp.eq.s32.totalorder %s36, 0
      %p246 = por %p244, %p245
      %p247 = scmp.ne.s32.totalorder %s235, %s236
      %p248 = scmp.eq.s32.totalorder %s37, 1
      %p249 = por %p247, %p248
      %p251 = scmp.ne.s32.totalorder %s236, %s250
      %p252 = scmp.eq.s32.totalorder %s37, 0
      %p253 = por %p251, %p252
      %s255 = sadd.s32 %s254, 1
      %p258 = scmp.eq.s32.totalorder %s31, 1
      %p259 = scmp.ne.s32.totalorder %s254, %s256
      %p260 = scmp.eq.s32.totalorder %s31, 0
      %p261 = por %p259, %p260
      %p262 = scmp.ne.s32.totalorder %s254, %s256
      %p263 = scmp.eq.s32.totalorder %s36, 1
      %p264 = por %p262, %p263
      %p265 = scmp.ne.s32.totalorder %s256, %s257
      %p266 = scmp.eq.s32.totalorder %s36, 0
      %p267 = por %p265, %p266
      %p268 = scmp.ne.s32.totalorder %s256, %s257
      %p269 = scmp.eq.s32.totalorder %s37, 1
      %p270 = por %p268, %p269
      %p272 = scmp.ne.s32.totalorder %s257, %s271
      %p273 = scmp.eq.s32.totalorder %s37, 0
      %p274 = por %p272, %p273
      %s276 = sadd.s32 %s275, 1
      %p279 = scmp.eq.s32.totalorder %s31, 1
      %p280 = scmp.ne.s32.totalorder %s275, %s277
      %p281 = scmp.eq.s32.totalorder %s31, 0
      %p282 = por %p280, %p281
      %p283 = scmp.ne.s32.totalorder %s275, %s277
      %p284 = scmp.eq.s32.totalorder %s36, 1
      %p285 = por %p283, %p284
      %p286 = scmp.ne.s32.totalorder %s277, %s278
      %p287 = scmp.eq.s32.totalorder %s36, 0
      %p288 = por %p286, %p287
      %p289 = scmp.ne.s32.totalorder %s277, %s278
      %p290 = scmp.eq.s32.totalorder %s37, 1
      %p291 = por %p289, %p290
      %p293 = scmp.ne.s32.totalorder %s278, %s292
      %p294 = scmp.eq.s32.totalorder %s37, 0
      %p295 = por %p293, %p294
      %s297 = sadd.s32 %s296, 1
      %p300 = scmp.eq.s32.totalorder %s31, 1
      %p301 = scmp.ne.s32.totalorder %s296, %s298
      %p302 = scmp.eq.s32.totalorder %s31, 0
      %p303 = por %p301, %p302
      %p304 = scmp.ne.s32.totalorder %s296, %s298
      %p305 = scmp.eq.s32.totalorder %s36, 1
      %p306 = por %p304, %p305
      %p307 = scmp.ne.s32.totalorder %s298, %s299
      %p308 = scmp.eq.s32.totalorder %s36, 0
      %p309 = por %p307, %p308
      %p310 = scmp.ne.s32.totalorder %s298, %s299
      %p311 = scmp.eq.s32.totalorder %s37, 1
      %p312 = por %p310, %p311
      %p314 = scmp.ne.s32.totalorder %s299, %s313
      %p315 = scmp.eq.s32.totalorder %s37, 0
      %p316 = por %p314, %p315
      %s318 = sadd.s32 %s317, 1
      %p321 = scmp.eq.s32.totalorder %s31, 1
      %p322 = scmp.ne.s32.totalorder %s317, %s319
      %p323 = scmp.eq.s32.totalorder %s31, 0
      %p324 = por %p322, %p323
      %p325 = scmp.ne.s32.totalorder %s317, %s319
      %p326 = scmp.eq.s32.totalorder %s36, 1
      %p327 = por %p325, %p326
      %p328 = scmp.ne.s32.totalorder %s319, %s320
      %p329 = scmp.eq.s32.totalorder %s36, 0
      %p330 = por %p328, %p329
      %p331 = scmp.ne.s32.totalorder %s319, %s320
      %p332 = scmp.eq.s32.totalorder %s37, 1
      %p333 = por %p331, %p332
      %p335 = scmp.ne.s32.totalorder %s320, %s334
      %p336 = scmp.eq.s32.totalorder %s37, 0
      %p337 = por %p335, %p336
      %s339 = sadd.s32 %s338, 1
      %p342 = scmp.eq.s32.totalorder %s31, 1
      %p343 = scmp.ne.s32.totalorder %s338, %s340
      %p344 = scmp.eq.s32.totalorder %s31, 0
      %p345 = por %p343, %p344
      %p346 = scmp.ne.s32.totalorder %s338, %s340
      %p347 = scmp.eq.s32.totalorder %s36, 1
      %p348 = por %p346, %p347
      %p349 = scmp.ne.s32.totalorder %s340, %s341
      %p350 = scmp.eq.s32.totalorder %s36, 0
      %p351 = por %p349, %p350
      %p352 = scmp.ne.s32.totalorder %s340, %s341
      %p353 = scmp.eq.s32.totalorder %s37, 1
      %p354 = por %p352, %p353
      %p356 = scmp.ne.s32.totalorder %s341, %s355
      %p357 = scmp.eq.s32.totalorder %s37, 0
      %p358 = por %p356, %p357
      %s360 = sadd.s32 %s359, 1
      %p363 = scmp.eq.s32.totalorder %s31, 1
      %p364 = scmp.ne.s32.totalorder %s359, %s361
      %p365 = scmp.eq.s32.totalorder %s31, 0
      %p366 = por %p364, %p365
      %p367 = scmp.ne.s32.totalorder %s359, %s361
      %p368 = scmp.eq.s32.totalorder %s36, 1
      %p369 = por %p367, %p368
      %p370 = scmp.ne.s32.totalorder %s361, %s362
      %p371 = scmp.eq.s32.totalorder %s36, 0
      %p372 = por %p370, %p371
      %p373 = scmp.ne.s32.totalorder %s361, %s362
      %p374 = scmp.eq.s32.totalorder %s37, 1
      %p375 = por %p373, %p374
      %p377 = scmp.ne.s32.totalorder %s362, %s376
      %p378 = scmp.eq.s32.totalorder %s37, 0
      %p379 = por %p377, %p378
      %s381 = sadd.s32 %s380, 1
      %p384 = scmp.eq.s32.totalorder %s31, 1
      %p385 = scmp.ne.s32.totalorder %s380, %s382
      %p386 = scmp.eq.s32.totalorder %s31, 0
      %p387 = por %p385, %p386
      %p388 = scmp.ne.s32.totalorder %s380, %s382
      %p389 = scmp.eq.s32.totalorder %s36, 1
      %p390 = por %p388, %p389
      %p391 = scmp.ne.s32.totalorder %s382, %s383
      %p392 = scmp.eq.s32.totalorder %s36, 0
      %p393 = por %p391, %p392
      %p394 = scmp.ne.s32.totalorder %s382, %s383
      %p395 = scmp.eq.s32.totalorder %s37, 1
      %p396 = por %p394, %p395
      %p398 = scmp.ne.s32.totalorder %s383, %s397
      %p399 = scmp.eq.s32.totalorder %s37, 0
      %p400 = por %p398, %p399
      %s401 = ssub.s32 %s31, %s38
      %p402 = scmp.eq.s32.totalorder %s401, 0
      %s404 = sadd.s32 %s403, 1
      %s405 = scalar_select %p402, %s403, %s404
      %p408 = pneg %p402
      %p409 = scmp.eq.s32.totalorder %s31, 1
      %p410 = por %p408, %p409
      %p411 = scmp.ne.s32.totalorder %s403, %s406
      %p412 = scmp.eq.s32.totalorder %s31, 0
      %p413 = por %p411, %p412
      %p414 = scmp.ne.s32.totalorder %s403, %s406
      %p415 = scmp.eq.s32.totalorder %s36, 1
      %p416 = por %p414, %p415
      %p417 = scmp.ne.s32.totalorder %s406, %s407
      %p418 = scmp.eq.s32.totalorder %s36, 0
      %p419 = por %p417, %p418
      %p420 = scmp.ne.s32.totalorder %s406, %s407
      %p421 = scmp.eq.s32.totalorder %s37, 1
      %p422 = por %p420, %p421
      %p424 = scmp.ne.s32.totalorder %s407, %s423
      %p425 = scmp.eq.s32.totalorder %s37, 0
      %p426 = por %p424, %p425
      %p427 = scmp.le.s32.totalorder 1, %s31
      %p428 = scmp.lt.s32.totalorder %s31, 3
      %p429 = pnand %p427, %p428
      %p430 = pneg %p429
      // Predicated region
      $region9: #{tpu_custom_call.1} parent=5 // pred_check
        _
      $region10: #{tpu_custom_call.1} parent=5 // pred_check_branch
        %432 = sbr.rel (%p429) target = $region12
      $region11: #{tpu_custom_call.1} parent=5 // pred_region
        %s433 = ssub.s32 %s31, 1
        // Predicated region
        $region13: #{tpu_custom_call.1} parent=11 // pred_check
          %p434 = pneg %p78
        $region14: #{tpu_custom_call.1} parent=11 // pred_check_branch
          %436 = sbr.rel (%p434) target = $region16
        $region15: #{tpu_custom_call.1} parent=11 // pred_region
          %438 = vsyncadd [#allocation3], 0
          %s440 = sshll.u32 %s1, 4
          %s441 = int_to_ptr.hbm [resolvable:$true] %s440
          %s442 = sshll.u32 [#allocation2], 4
          %s443 = int_to_ptr.vmem [resolvable:$true] %s442
          %445 = dma.hbm_to_vmem [thread:$0]  %s441, 128, %s443, [#allocation3]
        $region16: #{tpu_custom_call.1} parent=11 // pred_fallthru
          _
        // Predicated region
        $region17: #{tpu_custom_call.1} parent=11 // pred_check
          %p446 = pneg %p99
        $region18: #{tpu_custom_call.1} parent=11 // pred_check_branch
          %448 = sbr.rel (%p446) target = $region20
        $region19: #{tpu_custom_call.1} parent=11 // pred_region
          _
        $region20: #{tpu_custom_call.1} parent=11 // pred_fallthru
          _
        // Predicated region
        $region21: #{tpu_custom_call.1} parent=11 // pred_check
          %p449 = pneg %p120
        $region22: #{tpu_custom_call.1} parent=11 // pred_check_branch
          %451 = sbr.rel (%p449) target = $region24
        $region23: #{tpu_custom_call.1} parent=11 // pred_region
          _
        $region24: #{tpu_custom_call.1} parent=11 // pred_fallthru
          _
        // Predicated region
        $region25: #{tpu_custom_call.1} parent=11 // pred_check
          %p452 = pneg %p141
        $region26: #{tpu_custom_call.1} parent=11 // pred_check_branch
          %454 = sbr.rel (%p452) target = $region28
        $region27: #{tpu_custom_call.1} parent=11 // pred_region
          _
        $region28: #{tpu_custom_call.1} parent=11 // pred_fallthru
          _
        // Predicated region
        $region29: #{tpu_custom_call.1} parent=11 // pred_check
          %p455 = pneg %p162
        $region30: #{tpu_custom_call.1} parent=11 // pred_check_branch
          %457 = sbr.rel (%p455) target = $region32
        $region31: #{tpu_custom_call.1} parent=11 // pred_region
          _
        $region32: #{tpu_custom_call.1} parent=11 // pred_fallthru
          _
        // Predicated region
        $region33: #{tpu_custom_call.1} parent=11 // pred_check
          %p458 = pneg %p183
        $region34: #{tpu_custom_call.1} parent=11 // pred_check_branch
          %460 = sbr.rel (%p458) target = $region36
        $region35: #{tpu_custom_call.1} parent=11 // pred_region
          %462 = vsyncadd [#allocation6], 0
          %s464 = sshll.u32 %s6, 4
          %s465 = int_to_ptr.hbm [resolvable:$true] %s464
          %s466 = sshll.u32 [#allocation5], 4
          %s467 = int_to_ptr.vmem [resolvable:$true] %s466
          %469 = dma.hbm_to_vmem [thread:$0]  %s465, 16, %s467, [#allocation6]
        $region36: #{tpu_custom_call.1} parent=11 // pred_fallthru
          _
        // Predicated region
        $region37: #{tpu_custom_call.1} parent=11 // pred_check
          %p470 = pneg %p204
        $region38: #{tpu_custom_call.1} parent=11 // pred_check_branch
          %472 = sbr.rel (%p470) target = $region40
        $region39: #{tpu_custom_call.1} parent=11 // pred_region
          %474 = vsyncadd [#allocation6], 0
          %s476 = sshll.u32 %s7, 4
          %s477 = int_to_ptr.hbm [resolvable:$true] %s476
          %s478 = sshll.u32 [#allocation7], 4
          %s479 = int_to_ptr.vmem [resolvable:$true] %s478
          %481 = dma.hbm_to_vmem [thread:$0]  %s477, 64, %s479, [#allocation6]
        $region40: #{tpu_custom_call.1} parent=11 // pred_fallthru
          _
        // Predicated region
        $region41: #{tpu_custom_call.1} parent=11 // pred_check
          %p482 = pneg %p225
        $region42: #{tpu_custom_call.1} parent=11 // pred_check_branch
          %484 = sbr.rel (%p482) target = $region44
        $region43: #{tpu_custom_call.1} parent=11 // pred_region
          %486 = vsyncadd [#allocation9], 0
          %s488 = sshll.u32 %s8, 4
          %s489 = int_to_ptr.hbm [resolvable:$true] %s488
          %s490 = sshll.u32 [#allocation8], 4
          %s491 = int_to_ptr.vmem [resolvable:$true] %s490
          %493 = dma.hbm_to_vmem [thread:$0]  %s489, 16, %s491, [#allocation9]
        $region44: #{tpu_custom_call.1} parent=11 // pred_fallthru
          _
        // Predicated region
        $region45: #{tpu_custom_call.1} parent=11 // pred_check
          %p494 = pneg %p246
        $region46: #{tpu_custom_call.1} parent=11 // pred_check_branch
          %496 = sbr.rel (%p494) target = $region48
        $region47: #{tpu_custom_call.1} parent=11 // pred_region
          _
        $region48: #{tpu_custom_call.1} parent=11 // pred_fallthru
          _
        // Predicated region
        $region49: #{tpu_custom_call.1} parent=11 // pred_check
          %p497 = pneg %p267
        $region50: #{tpu_custom_call.1} parent=11 // pred_check_branch
          %499 = sbr.rel (%p497) target = $region52
        $region51: #{tpu_custom_call.1} parent=11 // pred_region
          %501 = vsyncadd [#allocation9], 0
          %s502 = sshll.u32 %s10, 4
          %s503 = int_to_ptr.hbm [resolvable:$true] %s502
          %s504 = sshll.u32 [#allocation10], 4
          %s505 = int_to_ptr.vmem [resolvable:$true] %s504
          %510 = dma.hbm_to_vmem [thread:$0]  %s503, 768, %s505, [#allocation9], 192, 192, 12
        $region52: #{tpu_custom_call.1} parent=11 // pred_fallthru
          _
        // Predicated region
        $region53: #{tpu_custom_call.1} parent=11 // pred_check
          %p511 = pneg %p288
        $region54: #{tpu_custom_call.1} parent=11 // pred_check_branch
          %513 = sbr.rel (%p511) target = $region56
        $region55: #{tpu_custom_call.1} parent=11 // pred_region
          %515 = vsyncadd [#allocation12], 0
          %s516 = sshll.u32 %s11, 4
          %s517 = int_to_ptr.hbm [resolvable:$true] %s516
          %s518 = sshll.u32 [#allocation11], 4
          %s519 = int_to_ptr.vmem [resolvable:$true] %s518
          %524 = dma.hbm_to_vmem [thread:$0]  %s517, 768, %s519, [#allocation12], 192, 192, 12
        $region56: #{tpu_custom_call.1} parent=11 // pred_fallthru
          _
        // Predicated region
        $region57: #{tpu_custom_call.1} parent=11 // pred_check
          %p525 = pneg %p309
        $region58: #{tpu_custom_call.1} parent=11 // pred_check_branch
          %527 = sbr.rel (%p525) target = $region60
        $region59: #{tpu_custom_call.1} parent=11 // pred_region
          _
        $region60: #{tpu_custom_call.1} parent=11 // pred_fallthru
          _
        // Predicated region
        $region61: #{tpu_custom_call.1} parent=11 // pred_check
          %p528 = pneg %p330
        $region62: #{tpu_custom_call.1} parent=11 // pred_check_branch
          %530 = sbr.rel (%p528) target = $region64
        $region63: #{tpu_custom_call.1} parent=11 // pred_region
          %532 = vsyncadd [#allocation12], 0
          %s533 = sshll.u32 %s13, 4
          %s534 = int_to_ptr.hbm [resolvable:$true] %s533
          %s535 = sshll.u32 [#allocation13], 4
          %s536 = int_to_ptr.vmem [resolvable:$true] %s535
          %541 = dma.hbm_to_vmem [thread:$0]  %s534, 5120, %s536, [#allocation12], 64, 64, 4
        $region64: #{tpu_custom_call.1} parent=11 // pred_fallthru
          _
        // Predicated region
        $region65: #{tpu_custom_call.1} parent=11 // pred_check
          %p542 = pneg %p351
        $region66: #{tpu_custom_call.1} parent=11 // pred_check_branch
          %544 = sbr.rel (%p542) target = $region68
        $region67: #{tpu_custom_call.1} parent=11 // pred_region
          _
        $region68: #{tpu_custom_call.1} parent=11 // pred_fallthru
          _
        // Predicated region
        $region69: #{tpu_custom_call.1} parent=11 // pred_check
          %p545 = pneg %p372
        $region70: #{tpu_custom_call.1} parent=11 // pred_check_branch
          %547 = sbr.rel (%p545) target = $region72
        $region71: #{tpu_custom_call.1} parent=11 // pred_region
          %549 = vsyncadd [#allocation15], 0
          %s550 = sshll.u32 %s15, 4
          %s551 = int_to_ptr.hbm [resolvable:$true] %s550
          %s552 = sshll.u32 [#allocation14], 4
          %s553 = int_to_ptr.vmem [resolvable:$true] %s552
          %558 = dma.hbm_to_vmem [thread:$0]  %s551, 1024, %s553, [#allocation15], 64, 64, 4
        $region72: #{tpu_custom_call.1} parent=11 // pred_fallthru
          _
        // Predicated region
        $region73: #{tpu_custom_call.1} parent=11 // pred_check
          %p559 = pneg %p393
        $region74: #{tpu_custom_call.1} parent=11 // pred_check_branch
          %561 = sbr.rel (%p559) target = $region76
        $region75: #{tpu_custom_call.1} parent=11 // pred_region
          _
        $region76: #{tpu_custom_call.1} parent=11 // pred_fallthru
          _
      $region12: #{tpu_custom_call.1} parent=5 // pred_fallthru
        _
      %p562 = scmp.lt.s32.totalorder %s31, 2
      // Predicated region
      $region77: #{tpu_custom_call.1} parent=5 // pred_check
        %p563 = pneg %p562
      $region78: #{tpu_custom_call.1} parent=5 // pred_check_branch
        %565 = sbr.rel (%p563) target = $region80
      $region79: #{tpu_custom_call.1} parent=5 // pred_region
        // Predicated region
        $region81: #{tpu_custom_call.1} parent=79 // pred_check
          %p566 = pneg %p51
        $region82: #{tpu_custom_call.1} parent=79 // pred_check_branch
          %568 = sbr.rel (%p566) target = $region84
        $region83: #{tpu_custom_call.1} parent=79 // pred_region
          %s569 = smul.u32 16, %s31
          %p570 = scmp.lt.s32.totalorder %s569, 31
          %s571 = scalar_select %p570, %s569, 31
          %s572 = smul.addr %s571, 8
          %s573 = scalar_lea.vmem %s0, %s572
          %s574 = smul.u32 16, %s31
        $region84: #{tpu_custom_call.1} parent=79 // pred_fallthru
          _
      $region80: #{tpu_custom_call.1} parent=5 // pred_fallthru
        _
      %p575 = scmp.le.s32.totalorder 1, %s31
      %p576 = scmp.lt.s32.totalorder %s31, 3
      %p577 = pnand %p575, %p576
      %p578 = pneg %p577
      // Predicated region
      $region85: #{tpu_custom_call.1} parent=5 // pred_check
        _
      $region86: #{tpu_custom_call.1} parent=5 // pred_check_branch
        %580 = sbr.rel (%p577) target = $region88
      $region87: #{tpu_custom_call.1} parent=5 // pred_region
        %s581 = ssub.s32 %s31, 1
        // Predicated region
        $region89: #{tpu_custom_call.1} parent=87 // pred_check
          %p582 = pneg %p78
        $region90: #{tpu_custom_call.1} parent=87 // pred_check_branch
          %584 = sbr.rel (%p582) target = $region92
        $region91: #{tpu_custom_call.1} parent=87 // pred_region
          %586 = dma.done [#allocation3], 128
        $region92: #{tpu_custom_call.1} parent=87 // pred_fallthru
          _
        // Predicated region
        $region93: #{tpu_custom_call.1} parent=87 // pred_check
          %p587 = pneg %p183
        $region94: #{tpu_custom_call.1} parent=87 // pred_check_branch
          %589 = sbr.rel (%p587) target = $region96
        $region95: #{tpu_custom_call.1} parent=87 // pred_region
          %591 = dma.done [#allocation6], 16
        $region96: #{tpu_custom_call.1} parent=87 // pred_fallthru
          _
        // Predicated region
        $region97: #{tpu_custom_call.1} parent=87 // pred_check
          %p592 = pneg %p204
        $region98: #{tpu_custom_call.1} parent=87 // pred_check_branch
          %594 = sbr.rel (%p592) target = $region100
        $region99: #{tpu_custom_call.1} parent=87 // pred_region
          %596 = dma.done [#allocation6], 64
        $region100: #{tpu_custom_call.1} parent=87 // pred_fallthru
          _
        // Predicated region
        $region101: #{tpu_custom_call.1} parent=87 // pred_check
          %p597 = pneg %p225
        $region102: #{tpu_custom_call.1} parent=87 // pred_check_branch
          %599 = sbr.rel (%p597) target = $region104
        $region103: #{tpu_custom_call.1} parent=87 // pred_region
          %601 = dma.done [#allocation9], 16
        $region104: #{tpu_custom_call.1} parent=87 // pred_fallthru
          _
        // Predicated region
        $region105: #{tpu_custom_call.1} parent=87 // pred_check
          %p602 = pneg %p267
        $region106: #{tpu_custom_call.1} parent=87 // pred_check_branch
          %604 = sbr.rel (%p602) target = $region108
        $region107: #{tpu_custom_call.1} parent=87 // pred_region
          %606 = dma.done [#allocation9], 768
        $region108: #{tpu_custom_call.1} parent=87 // pred_fallthru
          _
        // Predicated region
        $region109: #{tpu_custom_call.1} parent=87 // pred_check
          %p607 = pneg %p288
        $region110: #{tpu_custom_call.1} parent=87 // pred_check_branch
          %609 = sbr.rel (%p607) target = $region112
        $region111: #{tpu_custom_call.1} parent=87 // pred_region
          %611 = dma.done [#allocation12], 768
        $region112: #{tpu_custom_call.1} parent=87 // pred_fallthru
          _
        // Predicated region
        $region113: #{tpu_custom_call.1} parent=87 // pred_check
          %p612 = pneg %p330
        $region114: #{tpu_custom_call.1} parent=87 // pred_check_branch
          %614 = sbr.rel (%p612) target = $region116
        $region115: #{tpu_custom_call.1} parent=87 // pred_region
          %616 = dma.done [#allocation12], 5120
        $region116: #{tpu_custom_call.1} parent=87 // pred_fallthru
          _
        // Predicated region
        $region117: #{tpu_custom_call.1} parent=87 // pred_check
          %p617 = pneg %p372
        $region118: #{tpu_custom_call.1} parent=87 // pred_check_branch
          %619 = sbr.rel (%p617) target = $region120
        $region119: #{tpu_custom_call.1} parent=87 // pred_region
          %621 = dma.done [#allocation15], 1024
        $region120: #{tpu_custom_call.1} parent=87 // pred_fallthru
          _
        %s622 = smul.u32 16, %s36
        %p623 = scmp.lt.s32.totalorder %s622, 31
        %s624 = scalar_select %p623, %s622, 31
        %s625 = smul.addr %s624, 8
        %s626 = scalar_lea.vmem %s0, %s625
        %p627 = pneg %p57
        %p628 = pneg %p54
        %p629 = pneg %p78
        %p630 = pneg %p75
        %p631 = pneg %p99
        %p632 = pneg %p96
        %p633 = pneg %p120
        %p634 = pneg %p117
        %p635 = pneg %p141
        %p636 = pneg %p138
        %p637 = pneg %p162
        %p638 = pneg %p159
        %p639 = pneg %p183
        %p640 = pneg %p180
        %p641 = pneg %p204
        %p642 = pneg %p201
        %p643 = pneg %p225
        %p644 = pneg %p222
        %p645 = pneg %p246
        %p646 = pneg %p243
        %p647 = pneg %p267
        %p648 = pneg %p264
        %p649 = pneg %p288
        %p650 = pneg %p285
        %p651 = pneg %p309
        %p652 = pneg %p306
        %p653 = pneg %p330
        %p654 = pneg %p327
        %p655 = pneg %p351
        %p656 = pneg %p348
        %p657 = pneg %p372
        %p658 = pneg %p369
        %p659 = pneg %p393
        %p660 = pneg %p390
        %p661 = pneg %p419
        %p662 = pneg %p416
        %s663 = sand.u32 %s406, 1
        %s664 = scalar_lea.sflag [#allocation4], %s663
        %s665 = sand.u32 %s406, 1
        %s666 = smul.addr %s665, 128
        %s667 = scalar_lea.vmem [#allocation16], %s666
        %s668 = smul.u32 16, %s36
        %p669 = scmp.lt.s32.totalorder %s668, 31
        %s670 = scalar_select %p669, %s668, 31
        %s671 = smul.addr %s670, 8
        %s672 = scalar_lea.vmem %s0, %s671
        %s673 = smul.u32 16, %s36
        %s674 = smul.u32 16, %s36
        %v676 = vld [vmem:[%s672] sm:$0xff]
        %v677 = vld [vmem:[%s672 + $0x8] sm:$0xff]
        %v678 = vld [vmem:[%s672 + $0x10] sm:$0xff]
        %v679 = vld [vmem:[%s672 + $0x18] sm:$0xff]
        %v680 = vld [vmem:[%s672 + $0x20] sm:$0xff]
        %v681 = vld [vmem:[%s672 + $0x28] sm:$0xff]
        %v682 = vld [vmem:[%s672 + $0x30] sm:$0xff]
        %v683 = vld [vmem:[%s672 + $0x38] sm:$0xff]
        %v684 = vld [vmem:[%s672 + $0x40] sm:$0xff]
        %v685 = vld [vmem:[%s672 + $0x48] sm:$0xff]
        %v686 = vld [vmem:[%s672 + $0x50] sm:$0xff]
        %v687 = vld [vmem:[%s672 + $0x58] sm:$0xff]
        %v688 = vld [vmem:[%s672 + $0x60] sm:$0xff]
        %v689 = vld [vmem:[%s672 + $0x68] sm:$0xff]
        %v690 = vld [vmem:[%s672 + $0x70] sm:$0xff]
        %v691 = vld [vmem:[%s672 + $0x78] sm:$0xff]
        %v692 = vmul.f32 %v676, 2.0
        %v693 = vmul.f32 %v677, 2.0
        %v694 = vmul.f32 %v678, 2.0
        %v695 = vmul.f32 %v679, 2.0
        %v696 = vmul.f32 %v680, 2.0
        %v697 = vmul.f32 %v681, 2.0
        %v698 = vmul.f32 %v682, 2.0
        %v699 = vmul.f32 %v683, 2.0
        %v700 = vmul.f32 %v684, 2.0
        %v701 = vmul.f32 %v685, 2.0
        %v702 = vmul.f32 %v686, 2.0
        %v703 = vmul.f32 %v687, 2.0
        %v704 = vmul.f32 %v688, 2.0
        %v705 = vmul.f32 %v689, 2.0
        %v706 = vmul.f32 %v690, 2.0
        %v707 = vmul.f32 %v691, 2.0
        %v708 = vfloor.f32 %v692
        %v709 = vfloor.f32 %v693
        %v710 = vfloor.f32 %v694
        %v711 = vfloor.f32 %v695
        %v712 = vfloor.f32 %v696
        %v713 = vfloor.f32 %v697
        %v714 = vfloor.f32 %v698
        %v715 = vfloor.f32 %v699
        %v716 = vfloor.f32 %v700
        %v717 = vfloor.f32 %v701
        %v718 = vfloor.f32 %v702
        %v719 = vfloor.f32 %v703
        %v720 = vfloor.f32 %v704
        %v721 = vfloor.f32 %v705
        %v722 = vfloor.f32 %v706
        %v723 = vfloor.f32 %v707
        %v724 = vmul.f32 %v708, 0.5
        %v725 = vmul.f32 %v709, 0.5
        %v726 = vmul.f32 %v710, 0.5
        %v727 = vmul.f32 %v711, 0.5
        %v728 = vmul.f32 %v712, 0.5
        %v729 = vmul.f32 %v713, 0.5
        %v730 = vmul.f32 %v714, 0.5
        %v731 = vmul.f32 %v715, 0.5
        %v732 = vmul.f32 %v716, 0.5
        %v733 = vmul.f32 %v717, 0.5
        %v734 = vmul.f32 %v718, 0.5
        %v735 = vmul.f32 %v719, 0.5
        %v736 = vmul.f32 %v720, 0.5
        %v737 = vmul.f32 %v721, 0.5
        %v738 = vmul.f32 %v722, 0.5
        %v739 = vmul.f32 %v723, 0.5
        %v740 = vsub.f32 %v676, %v724
        %v741 = vsub.f32 %v677, %v725
        %v742 = vsub.f32 %v678, %v726
        %v743 = vsub.f32 %v679, %v727
        %v744 = vsub.f32 %v680, %v728
        %v745 = vsub.f32 %v681, %v729
        %v746 = vsub.f32 %v682, %v730
        %v747 = vsub.f32 %v683, %v731
        %v748 = vsub.f32 %v684, %v732
        %v749 = vsub.f32 %v685, %v733
        %v750 = vsub.f32 %v686, %v734
        %v751 = vsub.f32 %v687, %v735
        %v752 = vsub.f32 %v688, %v736
        %v753 = vsub.f32 %v689, %v737
        %v754 = vsub.f32 %v690, %v738
        %v755 = vsub.f32 %v691, %v739
        %v756 = vld [vmem:[#allocation2] sm:$0x77]
        %758 = vset.pattern.permute.xlu0 0
        %759 = vperm.xlu0 %758, %v692
        %v760 = vpop.permute.xlu0 %759
        %763 = vset.pattern.permute.xlu0 0
        %764 = vperm.xlu0 %763, %v693
        %v765 = vpop.permute.xlu0 %764
        %768 = vset.pattern.permute.xlu0 0
        %769 = vperm.xlu0 %768, %v694
        %v770 = vpop.permute.xlu0 %769
        %773 = vset.pattern.permute.xlu0 0
        %774 = vperm.xlu0 %773, %v695
        %v775 = vpop.permute.xlu0 %774
        %778 = vset.pattern.permute.xlu0 0
        %779 = vperm.xlu0 %778, %v696
        %v780 = vpop.permute.xlu0 %779
        %783 = vset.pattern.permute.xlu0 0
        %784 = vperm.xlu0 %783, %v697
        %v785 = vpop.permute.xlu0 %784
        %788 = vset.pattern.permute.xlu0 0
        %789 = vperm.xlu0 %788, %v698
        %v790 = vpop.permute.xlu0 %789
        %793 = vset.pattern.permute.xlu0 0
        %794 = vperm.xlu0 %793, %v699
        %v795 = vpop.permute.xlu0 %794
        %798 = vset.pattern.permute.xlu0 0
        %799 = vperm.xlu0 %798, %v700
        %v800 = vpop.permute.xlu0 %799
        %803 = vset.pattern.permute.xlu0 0
        %804 = vperm.xlu0 %803, %v701
        %v805 = vpop.permute.xlu0 %804
        %808 = vset.pattern.permute.xlu0 0
        %809 = vperm.xlu0 %808, %v702
        %v810 = vpop.permute.xlu0 %809
        %813 = vset.pattern.permute.xlu0 0
        %814 = vperm.xlu0 %813, %v703
        %v815 = vpop.permute.xlu0 %814
        %818 = vset.pattern.permute.xlu0 0
        %819 = vperm.xlu0 %818, %v704
        %v820 = vpop.permute.xlu0 %819
        %823 = vset.pattern.permute.xlu0 0
        %824 = vperm.xlu0 %823, %v705
        %v825 = vpop.permute.xlu0 %824
        %828 = vset.pattern.permute.xlu0 0
        %829 = vperm.xlu0 %828, %v706
        %v830 = vpop.permute.xlu0 %829
        %833 = vset.pattern.permute.xlu0 0
        %834 = vperm.xlu0 %833, %v707
        %v835 = vpop.permute.xlu0 %834
        %v838 = vperm.slane %v756, 0
        %v839 = vperm.slane %v756, 4
        %v842 = vperm.slane %v838, 0
        %v843 = vperm.slane %v839, 0
        %v844 = vmul.f32 %v760, %v842
        %v845 = vmul.f32 %v760, %v843
        %v846 = vmul.f32 %v765, %v842
        %v847 = vmul.f32 %v765, %v843
        %v848 = vmul.f32 %v770, %v842
        %v849 = vmul.f32 %v770, %v843
        %v850 = vmul.f32 %v775, %v842
        %v851 = vmul.f32 %v775, %v843
        %v852 = vmul.f32 %v780, %v842
        %v853 = vmul.f32 %v780, %v843
        %v854 = vmul.f32 %v785, %v842
        %v855 = vmul.f32 %v785, %v843
        %v856 = vmul.f32 %v790, %v842
        %v857 = vmul.f32 %v790, %v843
        %v858 = vmul.f32 %v795, %v842
        %v859 = vmul.f32 %v795, %v843
        %v860 = vmul.f32 %v800, %v842
        %v861 = vmul.f32 %v800, %v843
        %v862 = vmul.f32 %v805, %v842
        %v863 = vmul.f32 %v805, %v843
        %v864 = vmul.f32 %v810, %v842
        %v865 = vmul.f32 %v810, %v843
        %v866 = vmul.f32 %v815, %v842
        %v867 = vmul.f32 %v815, %v843
        %v868 = vmul.f32 %v820, %v842
        %v869 = vmul.f32 %v820, %v843
        %v870 = vmul.f32 %v825, %v842
        %v871 = vmul.f32 %v825, %v843
        %v872 = vmul.f32 %v830, %v842
        %v873 = vmul.f32 %v830, %v843
        %v874 = vmul.f32 %v835, %v842
        %v875 = vmul.f32 %v835, %v843
        %876 = vset.pattern.permute.xlu0 1
        %877 = vperm.xlu0 %876, %v692
        %v878 = vpop.permute.xlu0 %877
        %880 = vset.pattern.permute.xlu0 1
        %881 = vperm.xlu0 %880, %v693
        %v882 = vpop.permute.xlu0 %881
        %884 = vset.pattern.permute.xlu0 1
        %885 = vperm.xlu0 %884, %v694
        %v886 = vpop.permute.xlu0 %885
        %888 = vset.pattern.permute.xlu0 1
        %889 = vperm.xlu0 %888, %v695
        %v890 = vpop.permute.xlu0 %889
        %892 = vset.pattern.permute.xlu0 1
        %893 = vperm.xlu0 %892, %v696
        %v894 = vpop.permute.xlu0 %893
        %896 = vset.pattern.permute.xlu0 1
        %897 = vperm.xlu0 %896, %v697
        %v898 = vpop.permute.xlu0 %897
        %900 = vset.pattern.permute.xlu0 1
        %901 = vperm.xlu0 %900, %v698
        %v902 = vpop.permute.xlu0 %901
        %904 = vset.pattern.permute.xlu0 1
        %905 = vperm.xlu0 %904, %v699
        %v906 = vpop.permute.xlu0 %905
        %908 = vset.pattern.permute.xlu0 1
        %909 = vperm.xlu0 %908, %v700
        %v910 = vpop.permute.xlu0 %909
        %912 = vset.pattern.permute.xlu0 1
        %913 = vperm.xlu0 %912, %v701
        %v914 = vpop.permute.xlu0 %913
        %916 = vset.pattern.permute.xlu0 1
        %917 = vperm.xlu0 %916, %v702
        %v918 = vpop.permute.xlu0 %917
        %920 = vset.pattern.permute.xlu0 1
        %921 = vperm.xlu0 %920, %v703
        %v922 = vpop.permute.xlu0 %921
        %924 = vset.pattern.permute.xlu0 1
        %925 = vperm.xlu0 %924, %v704
        %v926 = vpop.permute.xlu0 %925
        %928 = vset.pattern.permute.xlu0 1
        %929 = vperm.xlu0 %928, %v705
        %v930 = vpop.permute.xlu0 %929
        %932 = vset.pattern.permute.xlu0 1
        %933 = vperm.xlu0 %932, %v706
        %v934 = vpop.permute.xlu0 %933
        %936 = vset.pattern.permute.xlu0 1
        %937 = vperm.xlu0 %936, %v707
        %v938 = vpop.permute.xlu0 %937
        %v940 = vperm.slane %v756, 1
        %v941 = vperm.slane %v756, 5
        %v944 = vperm.slane %v940, 1
        %v945 = vperm.slane %v941, 1
        %v946 = vmul.f32 %v878, %v944
        %v947 = vmul.f32 %v878, %v945
        %v948 = vmul.f32 %v882, %v944
        %v949 = vmul.f32 %v882, %v945
        %v950 = vmul.f32 %v886, %v944
        %v951 = vmul.f32 %v886, %v945
        %v952 = vmul.f32 %v890, %v944
        %v953 = vmul.f32 %v890, %v945
        %v954 = vmul.f32 %v894, %v944
        %v955 = vmul.f32 %v894, %v945
        %v956 = vmul.f32 %v898, %v944
        %v957 = vmul.f32 %v898, %v945
        %v958 = vmul.f32 %v902, %v944
        %v959 = vmul.f32 %v902, %v945
        %v960 = vmul.f32 %v906, %v944
        %v961 = vmul.f32 %v906, %v945
        %v962 = vmul.f32 %v910, %v944
        %v963 = vmul.f32 %v910, %v945
        %v964 = vmul.f32 %v914, %v944
        %v965 = vmul.f32 %v914, %v945
        %v966 = vmul.f32 %v918, %v944
        %v967 = vmul.f32 %v918, %v945
        %v968 = vmul.f32 %v922, %v944
        %v969 = vmul.f32 %v922, %v945
        %v970 = vmul.f32 %v926, %v944
        %v971 = vmul.f32 %v926, %v945
        %v972 = vmul.f32 %v930, %v944
        %v973 = vmul.f32 %v930, %v945
        %v974 = vmul.f32 %v934, %v944
        %v975 = vmul.f32 %v934, %v945
        %v976 = vmul.f32 %v938, %v944
        %v977 = vmul.f32 %v938, %v945
        %v978 = vadd.f32 %v844, %v946
        %v979 = vadd.f32 %v845, %v947
        %v980 = vadd.f32 %v846, %v948
        %v981 = vadd.f32 %v847, %v949
        %v982 = vadd.f32 %v848, %v950
        %v983 = vadd.f32 %v849, %v951
        %v984 = vadd.f32 %v850, %v952
        %v985 = vadd.f32 %v851, %v953
        %v986 = vadd.f32 %v852, %v954
        %v987 = vadd.f32 %v853, %v955
        %v988 = vadd.f32 %v854, %v956
        %v989 = vadd.f32 %v855, %v957
        %v990 = vadd.f32 %v856, %v958
        %v991 = vadd.f32 %v857, %v959
        %v992 = vadd.f32 %v858, %v960
        %v993 = vadd.f32 %v859, %v961
        %v994 = vadd.f32 %v860, %v962
        %v995 = vadd.f32 %v861, %v963
        %v996 = vadd.f32 %v862, %v964
        %v997 = vadd.f32 %v863, %v965
        %v998 = vadd.f32 %v864, %v966
        %v999 = vadd.f32 %v865, %v967
        %v1000 = vadd.f32 %v866, %v968
        %v1001 = vadd.f32 %v867, %v969
        %v1002 = vadd.f32 %v868, %v970
        %v1003 = vadd.f32 %v869, %v971
        %v1004 = vadd.f32 %v870, %v972
        %v1005 = vadd.f32 %v871, %v973
        %v1006 = vadd.f32 %v872, %v974
        %v1007 = vadd.f32 %v873, %v975
        %v1008 = vadd.f32 %v874, %v976
        %v1009 = vadd.f32 %v875, %v977
        %1010 = vset.pattern.permute.xlu0 2
        %1011 = vperm.xlu0 %1010, %v692
        %v1012 = vpop.permute.xlu0 %1011
        %1014 = vset.pattern.permute.xlu0 2
        %1015 = vperm.xlu0 %1014, %v693
        %v1016 = vpop.permute.xlu0 %1015
        %1018 = vset.pattern.permute.xlu0 2
        %1019 = vperm.xlu0 %1018, %v694
        %v1020 = vpop.permute.xlu0 %1019
        %1022 = vset.pattern.permute.xlu0 2
        %1023 = vperm.xlu0 %1022, %v695
        %v1024 = vpop.permute.xlu0 %1023
        %1026 = vset.pattern.permute.xlu0 2
        %1027 = vperm.xlu0 %1026, %v696
        %v1028 = vpop.permute.xlu0 %1027
        %1030 = vset.pattern.permute.xlu0 2
        %1031 = vperm.xlu0 %1030, %v697
        %v1032 = vpop.permute.xlu0 %1031
        %1034 = vset.pattern.permute.xlu0 2
        %1035 = vperm.xlu0 %1034, %v698
        %v1036 = vpop.permute.xlu0 %1035
        %1038 = vset.pattern.permute.xlu0 2
        %1039 = vperm.xlu0 %1038, %v699
        %v1040 = vpop.permute.xlu0 %1039
        %1042 = vset.pattern.permute.xlu0 2
        %1043 = vperm.xlu0 %1042, %v700
        %v1044 = vpop.permute.xlu0 %1043
        %1046 = vset.pattern.permute.xlu0 2
        %1047 = vperm.xlu0 %1046, %v701
        %v1048 = vpop.permute.xlu0 %1047
        %1050 = vset.pattern.permute.xlu0 2
        %1051 = vperm.xlu0 %1050, %v702
        %v1052 = vpop.permute.xlu0 %1051
        %1054 = vset.pattern.permute.xlu0 2
        %1055 = vperm.xlu0 %1054, %v703
        %v1056 = vpop.permute.xlu0 %1055
        %1058 = vset.pattern.permute.xlu0 2
        %1059 = vperm.xlu0 %1058, %v704
        %v1060 = vpop.permute.xlu0 %1059
        %1062 = vset.pattern.permute.xlu0 2
        %1063 = vperm.xlu0 %1062, %v705
        %v1064 = vpop.permute.xlu0 %1063
        %1066 = vset.pattern.permute.xlu0 2
        %1067 = vperm.xlu0 %1066, %v706
        %v1068 = vpop.permute.xlu0 %1067
        %1070 = vset.pattern.permute.xlu0 2
        %1071 = vperm.xlu0 %1070, %v707
        %v1072 = vpop.permute.xlu0 %1071
        %v1074 = vperm.slane %v756, 2
        %v1075 = vperm.slane %v756, 6
        %v1078 = vperm.slane %v1074, 2
        %v1079 = vperm.slane %v1075, 2
        %v1080 = vmul.f32 %v1012, %v1078
        %v1081 = vmul.f32 %v1012, %v1079
        %v1082 = vmul.f32 %v1016, %v1078
        %v1083 = vmul.f32 %v1016, %v1079
        %v1084 = vmul.f32 %v1020, %v1078
        %v1085 = vmul.f32 %v1020, %v1079
        %v1086 = vmul.f32 %v1024, %v1078
        %v1087 = vmul.f32 %v1024, %v1079
        %v1088 = vmul.f32 %v1028, %v1078
        %v1089 = vmul.f32 %v1028, %v1079
        %v1090 = vmul.f32 %v1032, %v1078
        %v1091 = vmul.f32 %v1032, %v1079
        %v1092 = vmul.f32 %v1036, %v1078
        %v1093 = vmul.f32 %v1036, %v1079
        %v1094 = vmul.f32 %v1040, %v1078
        %v1095 = vmul.f32 %v1040, %v1079
        %v1096 = vmul.f32 %v1044, %v1078
        %v1097 = vmul.f32 %v1044, %v1079
        %v1098 = vmul.f32 %v1048, %v1078
        %v1099 = vmul.f32 %v1048, %v1079
        %v1100 = vmul.f32 %v1052, %v1078
        %v1101 = vmul.f32 %v1052, %v1079
        %v1102 = vmul.f32 %v1056, %v1078
        %v1103 = vmul.f32 %v1056, %v1079
        %v1104 = vmul.f32 %v1060, %v1078
        %v1105 = vmul.f32 %v1060, %v1079
        %v1106 = vmul.f32 %v1064, %v1078
        %v1107 = vmul.f32 %v1064, %v1079
        %v1108 = vmul.f32 %v1068, %v1078
        %v1109 = vmul.f32 %v1068, %v1079
        %v1110 = vmul.f32 %v1072, %v1078
        %v1111 = vmul.f32 %v1072, %v1079
        %v1112 = vadd.f32 %v978, %v1080
        %v1113 = vadd.f32 %v979, %v1081
        %v1114 = vadd.f32 %v980, %v1082
        %v1115 = vadd.f32 %v981, %v1083
        %v1116 = vadd.f32 %v982, %v1084
        %v1117 = vadd.f32 %v983, %v1085
        %v1118 = vadd.f32 %v984, %v1086
        %v1119 = vadd.f32 %v985, %v1087
        %v1120 = vadd.f32 %v986, %v1088
        %v1121 = vadd.f32 %v987, %v1089
        %v1122 = vadd.f32 %v988, %v1090
        %v1123 = vadd.f32 %v989, %v1091
        %v1124 = vadd.f32 %v990, %v1092
        %v1125 = vadd.f32 %v991, %v1093
        %v1126 = vadd.f32 %v992, %v1094
        %v1127 = vadd.f32 %v993, %v1095
        %v1128 = vadd.f32 %v994, %v1096
        %v1129 = vadd.f32 %v995, %v1097
        %v1130 = vadd.f32 %v996, %v1098
        %v1131 = vadd.f32 %v997, %v1099
        %v1132 = vadd.f32 %v998, %v1100
        %v1133 = vadd.f32 %v999, %v1101
        %v1134 = vadd.f32 %v1000, %v1102
        %v1135 = vadd.f32 %v1001, %v1103
        %v1136 = vadd.f32 %v1002, %v1104
        %v1137 = vadd.f32 %v1003, %v1105
        %v1138 = vadd.f32 %v1004, %v1106
        %v1139 = vadd.f32 %v1005, %v1107
        %v1140 = vadd.f32 %v1006, %v1108
        %v1141 = vadd.f32 %v1007, %v1109
        %v1142 = vadd.f32 %v1008, %v1110
        %v1143 = vadd.f32 %v1009, %v1111
        %v1144 = vld [vmem:[%s2] sm:$0x1]
        %v1146 = vperm.slane %v1144, 0
        %v1148 = vadd.f32 %v1112, %v1146
        %v1149 = vadd.f32 %v1114, %v1146
        %v1150 = vadd.f32 %v1116, %v1146
        %v1151 = vadd.f32 %v1118, %v1146
        %v1152 = vadd.f32 %v1120, %v1146
        %v1153 = vadd.f32 %v1122, %v1146
        %v1154 = vadd.f32 %v1124, %v1146
        %v1155 = vadd.f32 %v1126, %v1146
        %v1156 = vadd.f32 %v1128, %v1146
        %v1157 = vadd.f32 %v1130, %v1146
        %v1158 = vadd.f32 %v1132, %v1146
        %v1159 = vadd.f32 %v1134, %v1146
        %v1160 = vadd.f32 %v1136, %v1146
        %v1161 = vadd.f32 %v1138, %v1146
        %v1162 = vadd.f32 %v1140, %v1146
        %v1163 = vadd.f32 %v1142, %v1146
        %v1164 = vld [vmem:[%s3] sm:$0xf]
        %v1165 = vld [vmem:[%s3 + $0x4] sm:$0xf]
        %v1166 = vld [vmem:[%s3 + $0x8] sm:$0xf]
        %v1167 = vld [vmem:[%s3 + $0xc] sm:$0xf]
        %v1168 = vld [vmem:[%s3 + $0x10] sm:$0xf]
        %v1169 = vld [vmem:[%s3 + $0x14] sm:$0xf]
        %v1170 = vld [vmem:[%s3 + $0x18] sm:$0xf]
        %v1171 = vld [vmem:[%s3 + $0x1c] sm:$0xf]
        %v1172 = vld [vmem:[%s3 + $0x20] sm:$0xf]
        %v1173 = vld [vmem:[%s3 + $0x24] sm:$0xf]
        %v1174 = vld [vmem:[%s3 + $0x28] sm:$0xf]
        %v1175 = vld [vmem:[%s3 + $0x2c] sm:$0xf]
        %v1176 = vld [vmem:[%s3 + $0x30] sm:$0xf]
        %v1177 = vld [vmem:[%s3 + $0x34] sm:$0xf]
        %v1178 = vld [vmem:[%s3 + $0x38] sm:$0xf]
        %v1179 = vld [vmem:[%s3 + $0x3c] sm:$0xf]
        %v1180 = vpack.c.bf16 %v1149, %v1148
        %v1181 = vpack.c.bf16 %v1151, %v1150
        %v1182 = vpack.c.bf16 %v1153, %v1152
        %v1183 = vpack.c.bf16 %v1155, %v1154
        %v1184 = vpack.c.bf16 %v1157, %v1156
        %v1185 = vpack.c.bf16 %v1159, %v1158
        %v1186 = vpack.c.bf16 %v1161, %v1160
        %v1187 = vpack.c.bf16 %v1163, %v1162
        %v1188 = vld [vmem:[%s4] sm:$0x1]
        %v1190 = vperm.slane %v1188, 0
        %v1208 = vunpack.c.l.b16 %v1164
        %v1209 = vunpack.c.l.b16 %v1165
        %v1210 = vunpack.c.l.b16 %v1166
        %v1211 = vunpack.c.l.b16 %v1167
        %v1212 = vunpack.c.l.b16 %v1168
        %v1213 = vunpack.c.l.b16 %v1169
        %v1214 = vunpack.c.l.b16 %v1170
        %v1215 = vunpack.c.l.b16 %v1171
        %v1216 = vunpack.c.l.b16 %v1172
        %v1217 = vunpack.c.l.b16 %v1173
        %v1218 = vunpack.c.l.b16 %v1174
        %v1219 = vunpack.c.l.b16 %v1175
        %v1220 = vunpack.c.l.b16 %v1176
        %v1221 = vunpack.c.l.b16 %v1177
        %v1222 = vunpack.c.l.b16 %v1178
        %v1223 = vunpack.c.l.b16 %v1179
        %v1224 = vpack.c.b16 %v1209, %v1208
        %v1225 = vpack.c.b16 %v1211, %v1210
        %v1226 = vpack.c.b16 %v1213, %v1212
        %v1227 = vpack.c.b16 %v1215, %v1214
        %v1228 = vpack.c.b16 %v1217, %v1216
        %v1229 = vpack.c.b16 %v1219, %v1218
        %v1230 = vpack.c.b16 %v1221, %v1220
        %v1231 = vpack.c.b16 %v1223, %v1222
        %1240 = vmatpush.bf16.msra.mxu0 %v1231
        %1241 = vmatpush.bf16.msra.mxu0 %v1230
        %1242 = vmatpush.bf16.msra.mxu0 %v1229
        %1243 = vmatpush.bf16.msra.mxu0 %v1228
        %1244 = vmatpush.bf16.msra.mxu0 %v1227
        %1245 = vmatpush.bf16.msra.mxu0 %v1226
        %1246 = vmatpush.bf16.msra.mxu0 %v1225
        %1247 = vmatpush.bf16.msra.mxu0 %v1224
        %1248 = vmatmul.bf16.gmra.mxu0 %v1180
        %v1249 = vpop.f32.mrf.mxu0
        %v1250 = vadd.f32 %v1190, %v1249
        %v1251 = vpop.f32.mrf.mxu0
        %v1252 = vadd.f32 %v1190, %v1251
        %1253 = vmatmul.bf16.gmra.mxu0 %v1181
        %v1254 = vpop.f32.mrf.mxu0
        %v1255 = vadd.f32 %v1190, %v1254
        %v1256 = vpop.f32.mrf.mxu0
        %v1257 = vadd.f32 %v1190, %v1256
        %1258 = vmatmul.bf16.gmra.mxu0 %v1182
        %v1259 = vpop.f32.mrf.mxu0
        %v1260 = vadd.f32 %v1190, %v1259
        %v1261 = vpop.f32.mrf.mxu0
        %v1262 = vadd.f32 %v1190, %v1261
        %1263 = vmatmul.bf16.gmra.mxu0 %v1183
        %v1264 = vpop.f32.mrf.mxu0
        %v1265 = vadd.f32 %v1190, %v1264
        %v1266 = vpop.f32.mrf.mxu0
        %v1267 = vadd.f32 %v1190, %v1266
        %1268 = vmatmul.bf16.gmra.mxu0 %v1184
        %v1269 = vpop.f32.mrf.mxu0
        %v1270 = vadd.f32 %v1190, %v1269
        %v1271 = vpop.f32.mrf.mxu0
        %v1272 = vadd.f32 %v1190, %v1271
        %1273 = vmatmul.bf16.gmra.mxu0 %v1185
        %v1274 = vpop.f32.mrf.mxu0
        %v1275 = vadd.f32 %v1190, %v1274
        %v1276 = vpop.f32.mrf.mxu0
        %v1277 = vadd.f32 %v1190, %v1276
        %1278 = vmatmul.bf16.gmra.mxu0 %v1186
        %v1279 = vpop.f32.mrf.mxu0
        %v1280 = vadd.f32 %v1190, %v1279
        %v1281 = vpop.f32.mrf.mxu0
        %v1282 = vadd.f32 %v1190, %v1281
        %1283 = vmatmul.bf16.gmra.mxu0 %v1187
        %v1284 = vpop.f32.mrf.mxu0
        %v1285 = vadd.f32 %v1190, %v1284
        %v1286 = vpop.f32.mrf.mxu0
        %v1287 = vadd.f32 %v1190, %v1286
        %1288 = vdwg.mxu0
        %v1289 = vadd.f32 %v1250, %v1113
        %v1290 = vadd.f32 %v1252, %v1115
        %v1291 = vadd.f32 %v1255, %v1117
        %v1292 = vadd.f32 %v1257, %v1119
        %v1293 = vadd.f32 %v1260, %v1121
        %v1294 = vadd.f32 %v1262, %v1123
        %v1295 = vadd.f32 %v1265, %v1125
        %v1296 = vadd.f32 %v1267, %v1127
        %v1297 = vadd.f32 %v1270, %v1129
        %v1298 = vadd.f32 %v1272, %v1131
        %v1299 = vadd.f32 %v1275, %v1133
        %v1300 = vadd.f32 %v1277, %v1135
        %v1301 = vadd.f32 %v1280, %v1137
        %v1302 = vadd.f32 %v1282, %v1139
        %v1303 = vadd.f32 %v1285, %v1141
        %v1304 = vadd.f32 %v1287, %v1143
        %vm1305 = vcmp.gt.f32.partialorder %v1289, 0.0
        %vm1306 = vcmp.gt.f32.partialorder %v1290, 0.0
        %vm1307 = vcmp.gt.f32.partialorder %v1291, 0.0
        %vm1308 = vcmp.gt.f32.partialorder %v1292, 0.0
        %vm1309 = vcmp.gt.f32.partialorder %v1293, 0.0
        %vm1310 = vcmp.gt.f32.partialorder %v1294, 0.0
        %vm1311 = vcmp.gt.f32.partialorder %v1295, 0.0
        %vm1312 = vcmp.gt.f32.partialorder %v1296, 0.0
        %vm1313 = vcmp.gt.f32.partialorder %v1297, 0.0
        %vm1314 = vcmp.gt.f32.partialorder %v1298, 0.0
        %vm1315 = vcmp.gt.f32.partialorder %v1299, 0.0
        %vm1316 = vcmp.gt.f32.partialorder %v1300, 0.0
        %vm1317 = vcmp.gt.f32.partialorder %v1301, 0.0
        %vm1318 = vcmp.gt.f32.partialorder %v1302, 0.0
        %vm1319 = vcmp.gt.f32.partialorder %v1303, 0.0
        %vm1320 = vcmp.gt.f32.partialorder %v1304, 0.0
        %v1321 = vmul.f32 %v1289, 0.01
        %v1322 = vmul.f32 %v1290, 0.01
        %v1323 = vmul.f32 %v1291, 0.01
        %v1324 = vmul.f32 %v1292, 0.01
        %v1325 = vmul.f32 %v1293, 0.01
        %v1326 = vmul.f32 %v1294, 0.01
        %v1327 = vmul.f32 %v1295, 0.01
        %v1328 = vmul.f32 %v1296, 0.01
        %v1329 = vmul.f32 %v1297, 0.01
        %v1330 = vmul.f32 %v1298, 0.01
        %v1331 = vmul.f32 %v1299, 0.01
        %v1332 = vmul.f32 %v1300, 0.01
        %v1333 = vmul.f32 %v1301, 0.01
        %v1334 = vmul.f32 %v1302, 0.01
        %v1335 = vmul.f32 %v1303, 0.01
        %v1336 = vmul.f32 %v1304, 0.01
        %v1337 = vsel %vm1305, %v1289, %v1321
        %v1338 = vsel %vm1306, %v1290, %v1322
        %v1339 = vsel %vm1307, %v1291, %v1323
        %v1340 = vsel %vm1308, %v1292, %v1324
        %v1341 = vsel %vm1309, %v1293, %v1325
        %v1342 = vsel %vm1310, %v1294, %v1326
        %v1343 = vsel %vm1311, %v1295, %v1327
        %v1344 = vsel %vm1312, %v1296, %v1328
        %v1345 = vsel %vm1313, %v1297, %v1329
        %v1346 = vsel %vm1314, %v1298, %v1330
        %v1347 = vsel %vm1315, %v1299, %v1331
        %v1348 = vsel %vm1316, %v1300, %v1332
        %v1349 = vsel %vm1317, %v1301, %v1333
        %v1350 = vsel %vm1318, %v1302, %v1334
        %v1351 = vsel %vm1319, %v1303, %v1335
        %v1352 = vsel %vm1320, %v1304, %v1336
        %s1353 = scalar_lea.vmem %s3, 64
        %v1354 = vld [vmem:[%s1353] sm:$0xf]
        %v1355 = vld [vmem:[%s1353 + $0x4] sm:$0xf]
        %v1356 = vld [vmem:[%s1353 + $0x8] sm:$0xf]
        %v1357 = vld [vmem:[%s1353 + $0xc] sm:$0xf]
        %v1358 = vld [vmem:[%s1353 + $0x10] sm:$0xf]
        %v1359 = vld [vmem:[%s1353 + $0x14] sm:$0xf]
        %v1360 = vld [vmem:[%s1353 + $0x18] sm:$0xf]
        %v1361 = vld [vmem:[%s1353 + $0x1c] sm:$0xf]
        %v1362 = vld [vmem:[%s1353 + $0x20] sm:$0xf]
        %v1363 = vld [vmem:[%s1353 + $0x24] sm:$0xf]
        %v1364 = vld [vmem:[%s1353 + $0x28] sm:$0xf]
        %v1365 = vld [vmem:[%s1353 + $0x2c] sm:$0xf]
        %v1366 = vld [vmem:[%s1353 + $0x30] sm:$0xf]
        %v1367 = vld [vmem:[%s1353 + $0x34] sm:$0xf]
        %v1368 = vld [vmem:[%s1353 + $0x38] sm:$0xf]
        %v1369 = vld [vmem:[%s1353 + $0x3c] sm:$0xf]
        %v1370 = vpack.c.bf16 %v1338, %v1337
        %v1371 = vpack.c.bf16 %v1340, %v1339
        %v1372 = vpack.c.bf16 %v1342, %v1341
        %v1373 = vpack.c.bf16 %v1344, %v1343
        %v1374 = vpack.c.bf16 %v1346, %v1345
        %v1375 = vpack.c.bf16 %v1348, %v1347
        %v1376 = vpack.c.bf16 %v1350, %v1349
        %v1377 = vpack.c.bf16 %v1352, %v1351
        %s1378 = scalar_lea.vmem %s4, 1
        %v1379 = vld [vmem:[%s1378] sm:$0x1]
        %v1381 = vperm.slane %v1379, 0
        %v1399 = vunpack.c.l.b16 %v1354
        %v1400 = vunpack.c.l.b16 %v1355
        %v1401 = vunpack.c.l.b16 %v1356
        %v1402 = vunpack.c.l.b16 %v1357
        %v1403 = vunpack.c.l.b16 %v1358
        %v1404 = vunpack.c.l.b16 %v1359
        %v1405 = vunpack.c.l.b16 %v1360
        %v1406 = vunpack.c.l.b16 %v1361
        %v1407 = vunpack.c.l.b16 %v1362
        %v1408 = vunpack.c.l.b16 %v1363
        %v1409 = vunpack.c.l.b16 %v1364
        %v1410 = vunpack.c.l.b16 %v1365
        %v1411 = vunpack.c.l.b16 %v1366
        %v1412 = vunpack.c.l.b16 %v1367
        %v1413 = vunpack.c.l.b16 %v1368
        %v1414 = vunpack.c.l.b16 %v1369
        %v1415 = vpack.c.b16 %v1400, %v1399
        %v1416 = vpack.c.b16 %v1402, %v1401
        %v1417 = vpack.c.b16 %v1404, %v1403
        %v1418 = vpack.c.b16 %v1406, %v1405
        %v1419 = vpack.c.b16 %v1408, %v1407
        %v1420 = vpack.c.b16 %v1410, %v1409
        %v1421 = vpack.c.b16 %v1412, %v1411
        %v1422 = vpack.c.b16 %v1414, %v1413
        %1431 = vmatpush.bf16.msra.mxu0 %v1422
        %1432 = vmatpush.bf16.msra.mxu0 %v1421
        %1433 = vmatpush.bf16.msra.mxu0 %v1420
        %1434 = vmatpush.bf16.msra.mxu0 %v1419
        %1435 = vmatpush.bf16.msra.mxu0 %v1418
        %1436 = vmatpush.bf16.msra.mxu0 %v1417
        %1437 = vmatpush.bf16.msra.mxu0 %v1416
        %1438 = vmatpush.bf16.msra.mxu0 %v1415
        %1439 = vmatmul.bf16.gmra.mxu0 %v1370
        %v1440 = vpop.f32.mrf.mxu0
        %v1441 = vadd.f32 %v1381, %v1440
        %v1442 = vpop.f32.mrf.mxu0
        %v1443 = vadd.f32 %v1381, %v1442
        %1444 = vmatmul.bf16.gmra.mxu0 %v1371
        %v1445 = vpop.f32.mrf.mxu0
        %v1446 = vadd.f32 %v1381, %v1445
        %v1447 = vpop.f32.mrf.mxu0
        %v1448 = vadd.f32 %v1381, %v1447
        %1449 = vmatmul.bf16.gmra.mxu0 %v1372
        %v1450 = vpop.f32.mrf.mxu0
        %v1451 = vadd.f32 %v1381, %v1450
        %v1452 = vpop.f32.mrf.mxu0
        %v1453 = vadd.f32 %v1381, %v1452
        %1454 = vmatmul.bf16.gmra.mxu0 %v1373
        %v1455 = vpop.f32.mrf.mxu0
        %v1456 = vadd.f32 %v1381, %v1455
        %v1457 = vpop.f32.mrf.mxu0
        %v1458 = vadd.f32 %v1381, %v1457
        %1459 = vmatmul.bf16.gmra.mxu0 %v1374
        %v1460 = vpop.f32.mrf.mxu0
        %v1461 = vadd.f32 %v1381, %v1460
        %v1462 = vpop.f32.mrf.mxu0
        %v1463 = vadd.f32 %v1381, %v1462
        %1464 = vmatmul.bf16.gmra.mxu0 %v1375
        %v1465 = vpop.f32.mrf.mxu0
        %v1466 = vadd.f32 %v1381, %v1465
        %v1467 = vpop.f32.mrf.mxu0
        %v1468 = vadd.f32 %v1381, %v1467
        %1469 = vmatmul.bf16.gmra.mxu0 %v1376
        %v1470 = vpop.f32.mrf.mxu0
        %v1471 = vadd.f32 %v1381, %v1470
        %v1472 = vpop.f32.mrf.mxu0
        %v1473 = vadd.f32 %v1381, %v1472
        %1474 = vmatmul.bf16.gmra.mxu0 %v1377
        %v1475 = vpop.f32.mrf.mxu0
        %v1476 = vadd.f32 %v1381, %v1475
        %v1477 = vpop.f32.mrf.mxu0
        %v1478 = vadd.f32 %v1381, %v1477
        %1479 = vdwg.mxu0
        %vm1480 = vcmp.gt.f32.partialorder %v1441, 0.0
        %vm1481 = vcmp.gt.f32.partialorder %v1443, 0.0
        %vm1482 = vcmp.gt.f32.partialorder %v1446, 0.0
        %vm1483 = vcmp.gt.f32.partialorder %v1448, 0.0
        %vm1484 = vcmp.gt.f32.partialorder %v1451, 0.0
        %vm1485 = vcmp.gt.f32.partialorder %v1453, 0.0
        %vm1486 = vcmp.gt.f32.partialorder %v1456, 0.0
        %vm1487 = vcmp.gt.f32.partialorder %v1458, 0.0
        %vm1488 = vcmp.gt.f32.partialorder %v1461, 0.0
        %vm1489 = vcmp.gt.f32.partialorder %v1463, 0.0
        %vm1490 = vcmp.gt.f32.partialorder %v1466, 0.0
        %vm1491 = vcmp.gt.f32.partialorder %v1468, 0.0
        %vm1492 = vcmp.gt.f32.partialorder %v1471, 0.0
        %vm1493 = vcmp.gt.f32.partialorder %v1473, 0.0
        %vm1494 = vcmp.gt.f32.partialorder %v1476, 0.0
        %vm1495 = vcmp.gt.f32.partialorder %v1478, 0.0
        %v1496 = vmul.f32 %v1441, 0.01
        %v1497 = vmul.f32 %v1443, 0.01
        %v1498 = vmul.f32 %v1446, 0.01
        %v1499 = vmul.f32 %v1448, 0.01
        %v1500 = vmul.f32 %v1451, 0.01
        %v1501 = vmul.f32 %v1453, 0.01
        %v1502 = vmul.f32 %v1456, 0.01
        %v1503 = vmul.f32 %v1458, 0.01
        %v1504 = vmul.f32 %v1461, 0.01
        %v1505 = vmul.f32 %v1463, 0.01
        %v1506 = vmul.f32 %v1466, 0.01
        %v1507 = vmul.f32 %v1468, 0.01
        %v1508 = vmul.f32 %v1471, 0.01
        %v1509 = vmul.f32 %v1473, 0.01
        %v1510 = vmul.f32 %v1476, 0.01
        %v1511 = vmul.f32 %v1478, 0.01
        %v1512 = vsel %vm1480, %v1441, %v1496
        %v1513 = vsel %vm1481, %v1443, %v1497
        %v1514 = vsel %vm1482, %v1446, %v1498
        %v1515 = vsel %vm1483, %v1448, %v1499
        %v1516 = vsel %vm1484, %v1451, %v1500
        %v1517 = vsel %vm1485, %v1453, %v1501
        %v1518 = vsel %vm1486, %v1456, %v1502
        %v1519 = vsel %vm1487, %v1458, %v1503
        %v1520 = vsel %vm1488, %v1461, %v1504
        %v1521 = vsel %vm1489, %v1463, %v1505
        %v1522 = vsel %vm1490, %v1466, %v1506
        %v1523 = vsel %vm1491, %v1468, %v1507
        %v1524 = vsel %vm1492, %v1471, %v1508
        %v1525 = vsel %vm1493, %v1473, %v1509
        %v1526 = vsel %vm1494, %v1476, %v1510
        %v1527 = vsel %vm1495, %v1478, %v1511
        %s1528 = scalar_lea.vmem %s3, 128
        %v1529 = vld [vmem:[%s1528] sm:$0xf]
        %v1530 = vld [vmem:[%s1528 + $0x4] sm:$0xf]
        %v1531 = vld [vmem:[%s1528 + $0x8] sm:$0xf]
        %v1532 = vld [vmem:[%s1528 + $0xc] sm:$0xf]
        %v1533 = vld [vmem:[%s1528 + $0x10] sm:$0xf]
        %v1534 = vld [vmem:[%s1528 + $0x14] sm:$0xf]
        %v1535 = vld [vmem:[%s1528 + $0x18] sm:$0xf]
        %v1536 = vld [vmem:[%s1528 + $0x1c] sm:$0xf]
        %v1537 = vld [vmem:[%s1528 + $0x20] sm:$0xf]
        %v1538 = vld [vmem:[%s1528 + $0x24] sm:$0xf]
        %v1539 = vld [vmem:[%s1528 + $0x28] sm:$0xf]
        %v1540 = vld [vmem:[%s1528 + $0x2c] sm:$0xf]
        %v1541 = vld [vmem:[%s1528 + $0x30] sm:$0xf]
        %v1542 = vld [vmem:[%s1528 + $0x34] sm:$0xf]
        %v1543 = vld [vmem:[%s1528 + $0x38] sm:$0xf]
        %v1544 = vld [vmem:[%s1528 + $0x3c] sm:$0xf]
        %v1545 = vpack.c.bf16 %v1513, %v1512
        %v1546 = vpack.c.bf16 %v1515, %v1514
        %v1547 = vpack.c.bf16 %v1517, %v1516
        %v1548 = vpack.c.bf16 %v1519, %v1518
        %v1549 = vpack.c.bf16 %v1521, %v1520
        %v1550 = vpack.c.bf16 %v1523, %v1522
        %v1551 = vpack.c.bf16 %v1525, %v1524
        %v1552 = vpack.c.bf16 %v1527, %v1526
        %s1553 = scalar_lea.vmem %s4, 2
        %v1554 = vld [vmem:[%s1553] sm:$0x1]
        %v1556 = vperm.slane %v1554, 0
        %v1574 = vunpack.c.l.b16 %v1529
        %v1575 = vunpack.c.l.b16 %v1530
        %v1576 = vunpack.c.l.b16 %v1531
        %v1577 = vunpack.c.l.b16 %v1532
        %v1578 = vunpack.c.l.b16 %v1533
        %v1579 = vunpack.c.l.b16 %v1534
        %v1580 = vunpack.c.l.b16 %v1535
        %v1581 = vunpack.c.l.b16 %v1536
        %v1582 = vunpack.c.l.b16 %v1537
        %v1583 = vunpack.c.l.b16 %v1538
        %v1584 = vunpack.c.l.b16 %v1539
        %v1585 = vunpack.c.l.b16 %v1540
        %v1586 = vunpack.c.l.b16 %v1541
        %v1587 = vunpack.c.l.b16 %v1542
        %v1588 = vunpack.c.l.b16 %v1543
        %v1589 = vunpack.c.l.b16 %v1544
        %v1590 = vpack.c.b16 %v1575, %v1574
        %v1591 = vpack.c.b16 %v1577, %v1576
        %v1592 = vpack.c.b16 %v1579, %v1578
        %v1593 = vpack.c.b16 %v1581, %v1580
        %v1594 = vpack.c.b16 %v1583, %v1582
        %v1595 = vpack.c.b16 %v1585, %v1584
        %v1596 = vpack.c.b16 %v1587, %v1586
        %v1597 = vpack.c.b16 %v1589, %v1588
        %1606 = vmatpush.bf16.msra.mxu0 %v1597
        %1607 = vmatpush.bf16.msra.mxu0 %v1596
        %1608 = vmatpush.bf16.msra.mxu0 %v1595
        %1609 = vmatpush.bf16.msra.mxu0 %v1594
        %1610 = vmatpush.bf16.msra.mxu0 %v1593
        %1611 = vmatpush.bf16.msra.mxu0 %v1592
        %1612 = vmatpush.bf16.msra.mxu0 %v1591
        %1613 = vmatpush.bf16.msra.mxu0 %v1590
        %1614 = vmatmul.bf16.gmra.mxu0 %v1545
        %v1615 = vpop.f32.mrf.mxu0
        %v1616 = vadd.f32 %v1556, %v1615
        %v1617 = vpop.f32.mrf.mxu0
        %v1618 = vadd.f32 %v1556, %v1617
        %1619 = vmatmul.bf16.gmra.mxu0 %v1546
        %v1620 = vpop.f32.mrf.mxu0
        %v1621 = vadd.f32 %v1556, %v1620
        %v1622 = vpop.f32.mrf.mxu0
        %v1623 = vadd.f32 %v1556, %v1622
        %1624 = vmatmul.bf16.gmra.mxu0 %v1547
        %v1625 = vpop.f32.mrf.mxu0
        %v1626 = vadd.f32 %v1556, %v1625
        %v1627 = vpop.f32.mrf.mxu0
        %v1628 = vadd.f32 %v1556, %v1627
        %1629 = vmatmul.bf16.gmra.mxu0 %v1548
        %v1630 = vpop.f32.mrf.mxu0
        %v1631 = vadd.f32 %v1556, %v1630
        %v1632 = vpop.f32.mrf.mxu0
        %v1633 = vadd.f32 %v1556, %v1632
        %1634 = vmatmul.bf16.gmra.mxu0 %v1549
        %v1635 = vpop.f32.mrf.mxu0
        %v1636 = vadd.f32 %v1556, %v1635
        %v1637 = vpop.f32.mrf.mxu0
        %v1638 = vadd.f32 %v1556, %v1637
        %1639 = vmatmul.bf16.gmra.mxu0 %v1550
        %v1640 = vpop.f32.mrf.mxu0
        %v1641 = vadd.f32 %v1556, %v1640
        %v1642 = vpop.f32.mrf.mxu0
        %v1643 = vadd.f32 %v1556, %v1642
        %1644 = vmatmul.bf16.gmra.mxu0 %v1551
        %v1645 = vpop.f32.mrf.mxu0
        %v1646 = vadd.f32 %v1556, %v1645
        %v1647 = vpop.f32.mrf.mxu0
        %v1648 = vadd.f32 %v1556, %v1647
        %1649 = vmatmul.bf16.gmra.mxu0 %v1552
        %v1650 = vpop.f32.mrf.mxu0
        %v1651 = vadd.f32 %v1556, %v1650
        %v1652 = vpop.f32.mrf.mxu0
        %v1653 = vadd.f32 %v1556, %v1652
        %1654 = vdwg.mxu0
        %vm1655 = vcmp.gt.f32.partialorder %v1616, 0.0
        %vm1656 = vcmp.gt.f32.partialorder %v1618, 0.0
        %vm1657 = vcmp.gt.f32.partialorder %v1621, 0.0
        %vm1658 = vcmp.gt.f32.partialorder %v1623, 0.0
        %vm1659 = vcmp.gt.f32.partialorder %v1626, 0.0
        %vm1660 = vcmp.gt.f32.partialorder %v1628, 0.0
        %vm1661 = vcmp.gt.f32.partialorder %v1631, 0.0
        %vm1662 = vcmp.gt.f32.partialorder %v1633, 0.0
        %vm1663 = vcmp.gt.f32.partialorder %v1636, 0.0
        %vm1664 = vcmp.gt.f32.partialorder %v1638, 0.0
        %vm1665 = vcmp.gt.f32.partialorder %v1641, 0.0
        %vm1666 = vcmp.gt.f32.partialorder %v1643, 0.0
        %vm1667 = vcmp.gt.f32.partialorder %v1646, 0.0
        %vm1668 = vcmp.gt.f32.partialorder %v1648, 0.0
        %vm1669 = vcmp.gt.f32.partialorder %v1651, 0.0
        %vm1670 = vcmp.gt.f32.partialorder %v1653, 0.0
        %v1671 = vmul.f32 %v1616, 0.01
        %v1672 = vmul.f32 %v1618, 0.01
        %v1673 = vmul.f32 %v1621, 0.01
        %v1674 = vmul.f32 %v1623, 0.01
        %v1675 = vmul.f32 %v1626, 0.01
        %v1676 = vmul.f32 %v1628, 0.01
        %v1677 = vmul.f32 %v1631, 0.01
        %v1678 = vmul.f32 %v1633, 0.01
        %v1679 = vmul.f32 %v1636, 0.01
        %v1680 = vmul.f32 %v1638, 0.01
        %v1681 = vmul.f32 %v1641, 0.01
        %v1682 = vmul.f32 %v1643, 0.01
        %v1683 = vmul.f32 %v1646, 0.01
        %v1684 = vmul.f32 %v1648, 0.01
        %v1685 = vmul.f32 %v1651, 0.01
        %v1686 = vmul.f32 %v1653, 0.01
        %v1687 = vsel %vm1655, %v1616, %v1671
        %v1688 = vsel %vm1656, %v1618, %v1672
        %v1689 = vsel %vm1657, %v1621, %v1673
        %v1690 = vsel %vm1658, %v1623, %v1674
        %v1691 = vsel %vm1659, %v1626, %v1675
        %v1692 = vsel %vm1660, %v1628, %v1676
        %v1693 = vsel %vm1661, %v1631, %v1677
        %v1694 = vsel %vm1662, %v1633, %v1678
        %v1695 = vsel %vm1663, %v1636, %v1679
        %v1696 = vsel %vm1664, %v1638, %v1680
        %v1697 = vsel %vm1665, %v1641, %v1681
        %v1698 = vsel %vm1666, %v1643, %v1682
        %v1699 = vsel %vm1667, %v1646, %v1683
        %v1700 = vsel %vm1668, %v1648, %v1684
        %v1701 = vsel %vm1669, %v1651, %v1685
        %v1702 = vsel %vm1670, %v1653, %v1686
        %s1703 = scalar_lea.vmem %s3, 192
        %v1704 = vld [vmem:[%s1703] sm:$0xf]
        %v1705 = vld [vmem:[%s1703 + $0x4] sm:$0xf]
        %v1706 = vld [vmem:[%s1703 + $0x8] sm:$0xf]
        %v1707 = vld [vmem:[%s1703 + $0xc] sm:$0xf]
        %v1708 = vld [vmem:[%s1703 + $0x10] sm:$0xf]
        %v1709 = vld [vmem:[%s1703 + $0x14] sm:$0xf]
        %v1710 = vld [vmem:[%s1703 + $0x18] sm:$0xf]
        %v1711 = vld [vmem:[%s1703 + $0x1c] sm:$0xf]
        %v1712 = vld [vmem:[%s1703 + $0x20] sm:$0xf]
        %v1713 = vld [vmem:[%s1703 + $0x24] sm:$0xf]
        %v1714 = vld [vmem:[%s1703 + $0x28] sm:$0xf]
        %v1715 = vld [vmem:[%s1703 + $0x2c] sm:$0xf]
        %v1716 = vld [vmem:[%s1703 + $0x30] sm:$0xf]
        %v1717 = vld [vmem:[%s1703 + $0x34] sm:$0xf]
        %v1718 = vld [vmem:[%s1703 + $0x38] sm:$0xf]
        %v1719 = vld [vmem:[%s1703 + $0x3c] sm:$0xf]
        %v1720 = vpack.c.bf16 %v1688, %v1687
        %v1721 = vpack.c.bf16 %v1690, %v1689
        %v1722 = vpack.c.bf16 %v1692, %v1691
        %v1723 = vpack.c.bf16 %v1694, %v1693
        %v1724 = vpack.c.bf16 %v1696, %v1695
        %v1725 = vpack.c.bf16 %v1698, %v1697
        %v1726 = vpack.c.bf16 %v1700, %v1699
        %v1727 = vpack.c.bf16 %v1702, %v1701
        %s1728 = scalar_lea.vmem %s4, 3
        %v1729 = vld [vmem:[%s1728] sm:$0x1]
        %v1731 = vperm.slane %v1729, 0
        %v1749 = vunpack.c.l.b16 %v1704
        %v1750 = vunpack.c.l.b16 %v1705
        %v1751 = vunpack.c.l.b16 %v1706
        %v1752 = vunpack.c.l.b16 %v1707
        %v1753 = vunpack.c.l.b16 %v1708
        %v1754 = vunpack.c.l.b16 %v1709
        %v1755 = vunpack.c.l.b16 %v1710
        %v1756 = vunpack.c.l.b16 %v1711
        %v1757 = vunpack.c.l.b16 %v1712
        %v1758 = vunpack.c.l.b16 %v1713
        %v1759 = vunpack.c.l.b16 %v1714
        %v1760 = vunpack.c.l.b16 %v1715
        %v1761 = vunpack.c.l.b16 %v1716
        %v1762 = vunpack.c.l.b16 %v1717
        %v1763 = vunpack.c.l.b16 %v1718
        %v1764 = vunpack.c.l.b16 %v1719
        %v1765 = vpack.c.b16 %v1750, %v1749
        %v1766 = vpack.c.b16 %v1752, %v1751
        %v1767 = vpack.c.b16 %v1754, %v1753
        %v1768 = vpack.c.b16 %v1756, %v1755
        %v1769 = vpack.c.b16 %v1758, %v1757
        %v1770 = vpack.c.b16 %v1760, %v1759
        %v1771 = vpack.c.b16 %v1762, %v1761
        %v1772 = vpack.c.b16 %v1764, %v1763
        %1781 = vmatpush.bf16.msra.mxu0 %v1772
        %1782 = vmatpush.bf16.msra.mxu0 %v1771
        %1783 = vmatpush.bf16.msra.mxu0 %v1770
        %1784 = vmatpush.bf16.msra.mxu0 %v1769
        %1785 = vmatpush.bf16.msra.mxu0 %v1768
        %1786 = vmatpush.bf16.msra.mxu0 %v1767
        %1787 = vmatpush.bf16.msra.mxu0 %v1766
        %1788 = vmatpush.bf16.msra.mxu0 %v1765
        %1789 = vmatmul.bf16.gmra.mxu0 %v1720
        %v1790 = vpop.f32.mrf.mxu0
        %v1791 = vadd.f32 %v1731, %v1790
        %v1792 = vpop.f32.mrf.mxu0
        %v1793 = vadd.f32 %v1731, %v1792
        %1794 = vmatmul.bf16.gmra.mxu0 %v1721
        %v1795 = vpop.f32.mrf.mxu0
        %v1796 = vadd.f32 %v1731, %v1795
        %v1797 = vpop.f32.mrf.mxu0
        %v1798 = vadd.f32 %v1731, %v1797
        %1799 = vmatmul.bf16.gmra.mxu0 %v1722
        %v1800 = vpop.f32.mrf.mxu0
        %v1801 = vadd.f32 %v1731, %v1800
        %v1802 = vpop.f32.mrf.mxu0
        %v1803 = vadd.f32 %v1731, %v1802
        %1804 = vmatmul.bf16.gmra.mxu0 %v1723
        %v1805 = vpop.f32.mrf.mxu0
        %v1806 = vadd.f32 %v1731, %v1805
        %v1807 = vpop.f32.mrf.mxu0
        %v1808 = vadd.f32 %v1731, %v1807
        %1809 = vmatmul.bf16.gmra.mxu0 %v1724
        %v1810 = vpop.f32.mrf.mxu0
        %v1811 = vadd.f32 %v1731, %v1810
        %v1812 = vpop.f32.mrf.mxu0
        %v1813 = vadd.f32 %v1731, %v1812
        %1814 = vmatmul.bf16.gmra.mxu0 %v1725
        %v1815 = vpop.f32.mrf.mxu0
        %v1816 = vadd.f32 %v1731, %v1815
        %v1817 = vpop.f32.mrf.mxu0
        %v1818 = vadd.f32 %v1731, %v1817
        %1819 = vmatmul.bf16.gmra.mxu0 %v1726
        %v1820 = vpop.f32.mrf.mxu0
        %v1821 = vadd.f32 %v1731, %v1820
        %v1822 = vpop.f32.mrf.mxu0
        %v1823 = vadd.f32 %v1731, %v1822
        %1824 = vmatmul.bf16.gmra.mxu0 %v1727
        %v1825 = vpop.f32.mrf.mxu0
        %v1826 = vadd.f32 %v1731, %v1825
        %v1827 = vpop.f32.mrf.mxu0
        %v1828 = vadd.f32 %v1731, %v1827
        %1829 = vdwg.mxu0
        %vm1830 = vcmp.gt.f32.partialorder %v1791, 0.0
        %vm1831 = vcmp.gt.f32.partialorder %v1793, 0.0
        %vm1832 = vcmp.gt.f32.partialorder %v1796, 0.0
        %vm1833 = vcmp.gt.f32.partialorder %v1798, 0.0
        %vm1834 = vcmp.gt.f32.partialorder %v1801, 0.0
        %vm1835 = vcmp.gt.f32.partialorder %v1803, 0.0
        %vm1836 = vcmp.gt.f32.partialorder %v1806, 0.0
        %vm1837 = vcmp.gt.f32.partialorder %v1808, 0.0
        %vm1838 = vcmp.gt.f32.partialorder %v1811, 0.0
        %vm1839 = vcmp.gt.f32.partialorder %v1813, 0.0
        %vm1840 = vcmp.gt.f32.partialorder %v1816, 0.0
        %vm1841 = vcmp.gt.f32.partialorder %v1818, 0.0
        %vm1842 = vcmp.gt.f32.partialorder %v1821, 0.0
        %vm1843 = vcmp.gt.f32.partialorder %v1823, 0.0
        %vm1844 = vcmp.gt.f32.partialorder %v1826, 0.0
        %vm1845 = vcmp.gt.f32.partialorder %v1828, 0.0
        %v1846 = vmul.f32 %v1791, 0.01
        %v1847 = vmul.f32 %v1793, 0.01
        %v1848 = vmul.f32 %v1796, 0.01
        %v1849 = vmul.f32 %v1798, 0.01
        %v1850 = vmul.f32 %v1801, 0.01
        %v1851 = vmul.f32 %v1803, 0.01
        %v1852 = vmul.f32 %v1806, 0.01
        %v1853 = vmul.f32 %v1808, 0.01
        %v1854 = vmul.f32 %v1811, 0.01
        %v1855 = vmul.f32 %v1813, 0.01
        %v1856 = vmul.f32 %v1816, 0.01
        %v1857 = vmul.f32 %v1818, 0.01
        %v1858 = vmul.f32 %v1821, 0.01
        %v1859 = vmul.f32 %v1823, 0.01
        %v1860 = vmul.f32 %v1826, 0.01
        %v1861 = vmul.f32 %v1828, 0.01
        %v1862 = vsel %vm1830, %v1791, %v1846
        %v1863 = vsel %vm1831, %v1793, %v1847
        %v1864 = vsel %vm1832, %v1796, %v1848
        %v1865 = vsel %vm1833, %v1798, %v1849
        %v1866 = vsel %vm1834, %v1801, %v1850
        %v1867 = vsel %vm1835, %v1803, %v1851
        %v1868 = vsel %vm1836, %v1806, %v1852
        %v1869 = vsel %vm1837, %v1808, %v1853
        %v1870 = vsel %vm1838, %v1811, %v1854
        %v1871 = vsel %vm1839, %v1813, %v1855
        %v1872 = vsel %vm1840, %v1816, %v1856
        %v1873 = vsel %vm1841, %v1818, %v1857
        %v1874 = vsel %vm1842, %v1821, %v1858
        %v1875 = vsel %vm1843, %v1823, %v1859
        %v1876 = vsel %vm1844, %v1826, %v1860
        %v1877 = vsel %vm1845, %v1828, %v1861
        %s1878 = scalar_lea.vmem %s3, 256
        %v1879 = vld [vmem:[%s1878] sm:$0xf]
        %v1880 = vld [vmem:[%s1878 + $0x4] sm:$0xf]
        %v1881 = vld [vmem:[%s1878 + $0x8] sm:$0xf]
        %v1882 = vld [vmem:[%s1878 + $0xc] sm:$0xf]
        %v1883 = vld [vmem:[%s1878 + $0x10] sm:$0xf]
        %v1884 = vld [vmem:[%s1878 + $0x14] sm:$0xf]
        %v1885 = vld [vmem:[%s1878 + $0x18] sm:$0xf]
        %v1886 = vld [vmem:[%s1878 + $0x1c] sm:$0xf]
        %v1887 = vld [vmem:[%s1878 + $0x20] sm:$0xf]
        %v1888 = vld [vmem:[%s1878 + $0x24] sm:$0xf]
        %v1889 = vld [vmem:[%s1878 + $0x28] sm:$0xf]
        %v1890 = vld [vmem:[%s1878 + $0x2c] sm:$0xf]
        %v1891 = vld [vmem:[%s1878 + $0x30] sm:$0xf]
        %v1892 = vld [vmem:[%s1878 + $0x34] sm:$0xf]
        %v1893 = vld [vmem:[%s1878 + $0x38] sm:$0xf]
        %v1894 = vld [vmem:[%s1878 + $0x3c] sm:$0xf]
        %v1895 = vpack.c.bf16 %v1863, %v1862
        %v1896 = vpack.c.bf16 %v1865, %v1864
        %v1897 = vpack.c.bf16 %v1867, %v1866
        %v1898 = vpack.c.bf16 %v1869, %v1868
        %v1899 = vpack.c.bf16 %v1871, %v1870
        %v1900 = vpack.c.bf16 %v1873, %v1872
        %v1901 = vpack.c.bf16 %v1875, %v1874
        %v1902 = vpack.c.bf16 %v1877, %v1876
        %s1903 = scalar_lea.vmem %s4, 4
        %v1904 = vld [vmem:[%s1903] sm:$0x1]
        %v1906 = vperm.slane %v1904, 0
        %v1924 = vunpack.c.l.b16 %v1879
        %v1925 = vunpack.c.l.b16 %v1880
        %v1926 = vunpack.c.l.b16 %v1881
        %v1927 = vunpack.c.l.b16 %v1882
        %v1928 = vunpack.c.l.b16 %v1883
        %v1929 = vunpack.c.l.b16 %v1884
        %v1930 = vunpack.c.l.b16 %v1885
        %v1931 = vunpack.c.l.b16 %v1886
        %v1932 = vunpack.c.l.b16 %v1887
        %v1933 = vunpack.c.l.b16 %v1888
        %v1934 = vunpack.c.l.b16 %v1889
        %v1935 = vunpack.c.l.b16 %v1890
        %v1936 = vunpack.c.l.b16 %v1891
        %v1937 = vunpack.c.l.b16 %v1892
        %v1938 = vunpack.c.l.b16 %v1893
        %v1939 = vunpack.c.l.b16 %v1894
        %v1940 = vpack.c.b16 %v1925, %v1924
        %v1941 = vpack.c.b16 %v1927, %v1926
        %v1942 = vpack.c.b16 %v1929, %v1928
        %v1943 = vpack.c.b16 %v1931, %v1930
        %v1944 = vpack.c.b16 %v1933, %v1932
        %v1945 = vpack.c.b16 %v1935, %v1934
        %v1946 = vpack.c.b16 %v1937, %v1936
        %v1947 = vpack.c.b16 %v1939, %v1938
        %1956 = vmatpush.bf16.msra.mxu0 %v1947
        %1957 = vmatpush.bf16.msra.mxu0 %v1946
        %1958 = vmatpush.bf16.msra.mxu0 %v1945
        %1959 = vmatpush.bf16.msra.mxu0 %v1944
        %1960 = vmatpush.bf16.msra.mxu0 %v1943
        %1961 = vmatpush.bf16.msra.mxu0 %v1942
        %1962 = vmatpush.bf16.msra.mxu0 %v1941
        %1963 = vmatpush.bf16.msra.mxu0 %v1940
        %1964 = vmatmul.bf16.gmra.mxu0 %v1895
        %v1965 = vpop.f32.mrf.mxu0
        %v1966 = vadd.f32 %v1906, %v1965
        %v1967 = vpop.f32.mrf.mxu0
        %v1968 = vadd.f32 %v1906, %v1967
        %1969 = vmatmul.bf16.gmra.mxu0 %v1896
        %v1970 = vpop.f32.mrf.mxu0
        %v1971 = vadd.f32 %v1906, %v1970
        %v1972 = vpop.f32.mrf.mxu0
        %v1973 = vadd.f32 %v1906, %v1972
        %1974 = vmatmul.bf16.gmra.mxu0 %v1897
        %v1975 = vpop.f32.mrf.mxu0
        %v1976 = vadd.f32 %v1906, %v1975
        %v1977 = vpop.f32.mrf.mxu0
        %v1978 = vadd.f32 %v1906, %v1977
        %1979 = vmatmul.bf16.gmra.mxu0 %v1898
        %v1980 = vpop.f32.mrf.mxu0
        %v1981 = vadd.f32 %v1906, %v1980
        %v1982 = vpop.f32.mrf.mxu0
        %v1983 = vadd.f32 %v1906, %v1982
        %1984 = vmatmul.bf16.gmra.mxu0 %v1899
        %v1985 = vpop.f32.mrf.mxu0
        %v1986 = vadd.f32 %v1906, %v1985
        %v1987 = vpop.f32.mrf.mxu0
        %v1988 = vadd.f32 %v1906, %v1987
        %1989 = vmatmul.bf16.gmra.mxu0 %v1900
        %v1990 = vpop.f32.mrf.mxu0
        %v1991 = vadd.f32 %v1906, %v1990
        %v1992 = vpop.f32.mrf.mxu0
        %v1993 = vadd.f32 %v1906, %v1992
        %1994 = vmatmul.bf16.gmra.mxu0 %v1901
        %v1995 = vpop.f32.mrf.mxu0
        %v1996 = vadd.f32 %v1906, %v1995
        %v1997 = vpop.f32.mrf.mxu0
        %v1998 = vadd.f32 %v1906, %v1997
        %1999 = vmatmul.bf16.gmra.mxu0 %v1902
        %v2000 = vpop.f32.mrf.mxu0
        %v2001 = vadd.f32 %v1906, %v2000
        %v2002 = vpop.f32.mrf.mxu0
        %v2003 = vadd.f32 %v1906, %v2002
        %2004 = vdwg.mxu0
        %vm2005 = vcmp.gt.f32.partialorder %v1966, 0.0
        %vm2006 = vcmp.gt.f32.partialorder %v1968, 0.0
        %vm2007 = vcmp.gt.f32.partialorder %v1971, 0.0
        %vm2008 = vcmp.gt.f32.partialorder %v1973, 0.0
        %vm2009 = vcmp.gt.f32.partialorder %v1976, 0.0
        %vm2010 = vcmp.gt.f32.partialorder %v1978, 0.0
        %vm2011 = vcmp.gt.f32.partialorder %v1981, 0.0
        %vm2012 = vcmp.gt.f32.partialorder %v1983, 0.0
        %vm2013 = vcmp.gt.f32.partialorder %v1986, 0.0
        %vm2014 = vcmp.gt.f32.partialorder %v1988, 0.0
        %vm2015 = vcmp.gt.f32.partialorder %v1991, 0.0
        %vm2016 = vcmp.gt.f32.partialorder %v1993, 0.0
        %vm2017 = vcmp.gt.f32.partialorder %v1996, 0.0
        %vm2018 = vcmp.gt.f32.partialorder %v1998, 0.0
        %vm2019 = vcmp.gt.f32.partialorder %v2001, 0.0
        %vm2020 = vcmp.gt.f32.partialorder %v2003, 0.0
        %v2021 = vmul.f32 %v1966, 0.01
        %v2022 = vmul.f32 %v1968, 0.01
        %v2023 = vmul.f32 %v1971, 0.01
        %v2024 = vmul.f32 %v1973, 0.01
        %v2025 = vmul.f32 %v1976, 0.01
        %v2026 = vmul.f32 %v1978, 0.01
        %v2027 = vmul.f32 %v1981, 0.01
        %v2028 = vmul.f32 %v1983, 0.01
        %v2029 = vmul.f32 %v1986, 0.01
        %v2030 = vmul.f32 %v1988, 0.01
        %v2031 = vmul.f32 %v1991, 0.01
        %v2032 = vmul.f32 %v1993, 0.01
        %v2033 = vmul.f32 %v1996, 0.01
        %v2034 = vmul.f32 %v1998, 0.01
        %v2035 = vmul.f32 %v2001, 0.01
        %v2036 = vmul.f32 %v2003, 0.01
        %v2037 = vsel %vm2005, %v1966, %v2021
        %v2038 = vsel %vm2006, %v1968, %v2022
        %v2039 = vsel %vm2007, %v1971, %v2023
        %v2040 = vsel %vm2008, %v1973, %v2024
        %v2041 = vsel %vm2009, %v1976, %v2025
        %v2042 = vsel %vm2010, %v1978, %v2026
        %v2043 = vsel %vm2011, %v1981, %v2027
        %v2044 = vsel %vm2012, %v1983, %v2028
        %v2045 = vsel %vm2013, %v1986, %v2029
        %v2046 = vsel %vm2014, %v1988, %v2030
        %v2047 = vsel %vm2015, %v1991, %v2031
        %v2048 = vsel %vm2016, %v1993, %v2032
        %v2049 = vsel %vm2017, %v1996, %v2033
        %v2050 = vsel %vm2018, %v1998, %v2034
        %v2051 = vsel %vm2019, %v2001, %v2035
        %v2052 = vsel %vm2020, %v2003, %v2036
        %v2053 = vld [vmem:[%s5] sm:$0xf]
        %v2054 = vld [vmem:[%s5 + $0x4] sm:$0xf]
        %v2055 = vld [vmem:[%s5 + $0x8] sm:$0xf]
        %v2056 = vld [vmem:[%s5 + $0xc] sm:$0xf]
        %v2057 = vld [vmem:[%s5 + $0x10] sm:$0xf]
        %v2058 = vld [vmem:[%s5 + $0x14] sm:$0xf]
        %v2059 = vld [vmem:[%s5 + $0x18] sm:$0xf]
        %v2060 = vld [vmem:[%s5 + $0x1c] sm:$0xf]
        %v2061 = vld [vmem:[%s5 + $0x20] sm:$0xf]
        %v2062 = vld [vmem:[%s5 + $0x24] sm:$0xf]
        %v2063 = vld [vmem:[%s5 + $0x28] sm:$0xf]
        %v2064 = vld [vmem:[%s5 + $0x2c] sm:$0xf]
        %v2065 = vld [vmem:[%s5 + $0x30] sm:$0xf]
        %v2066 = vld [vmem:[%s5 + $0x34] sm:$0xf]
        %v2067 = vld [vmem:[%s5 + $0x38] sm:$0xf]
        %v2068 = vld [vmem:[%s5 + $0x3c] sm:$0xf]
        %v2069 = vpack.c.bf16 %v2038, %v2037
        %v2070 = vpack.c.bf16 %v2040, %v2039
        %v2071 = vpack.c.bf16 %v2042, %v2041
        %v2072 = vpack.c.bf16 %v2044, %v2043
        %v2073 = vpack.c.bf16 %v2046, %v2045
        %v2074 = vpack.c.bf16 %v2048, %v2047
        %v2075 = vpack.c.bf16 %v2050, %v2049
        %v2076 = vpack.c.bf16 %v2052, %v2051
        %v2077 = vld [vmem:[#allocation5] sm:$0x1]
        %v2079 = vperm.slane %v2077, 0
        %v2097 = vunpack.c.l.b16 %v2053
        %v2098 = vunpack.c.l.b16 %v2054
        %v2099 = vunpack.c.l.b16 %v2055
        %v2100 = vunpack.c.l.b16 %v2056
        %v2101 = vunpack.c.l.b16 %v2057
        %v2102 = vunpack.c.l.b16 %v2058
        %v2103 = vunpack.c.l.b16 %v2059
        %v2104 = vunpack.c.l.b16 %v2060
        %v2105 = vunpack.c.l.b16 %v2061
        %v2106 = vunpack.c.l.b16 %v2062
        %v2107 = vunpack.c.l.b16 %v2063
        %v2108 = vunpack.c.l.b16 %v2064
        %v2109 = vunpack.c.l.b16 %v2065
        %v2110 = vunpack.c.l.b16 %v2066
        %v2111 = vunpack.c.l.b16 %v2067
        %v2112 = vunpack.c.l.b16 %v2068
        %v2113 = vpack.c.b16 %v2098, %v2097
        %v2114 = vpack.c.b16 %v2100, %v2099
        %v2115 = vpack.c.b16 %v2102, %v2101
        %v2116 = vpack.c.b16 %v2104, %v2103
        %v2117 = vpack.c.b16 %v2106, %v2105
        %v2118 = vpack.c.b16 %v2108, %v2107
        %v2119 = vpack.c.b16 %v2110, %v2109
        %v2120 = vpack.c.b16 %v2112, %v2111
        %2129 = vmatpush.bf16.msra.mxu0 %v2120
        %2130 = vmatpush.bf16.msra.mxu0 %v2119
        %2131 = vmatpush.bf16.msra.mxu0 %v2118
        %2132 = vmatpush.bf16.msra.mxu0 %v2117
        %2133 = vmatpush.bf16.msra.mxu0 %v2116
        %2134 = vmatpush.bf16.msra.mxu0 %v2115
        %2135 = vmatpush.bf16.msra.mxu0 %v2114
        %2136 = vmatpush.bf16.msra.mxu0 %v2113
        %2137 = vmatmul.bf16.gmra.mxu0 %v2069
        %v2138 = vpop.f32.mrf.mxu0
        %v2139 = vadd.f32 %v2079, %v2138
        %v2140 = vpop.f32.mrf.mxu0
        %v2141 = vadd.f32 %v2079, %v2140
        %2142 = vmatmul.bf16.gmra.mxu0 %v2070
        %v2143 = vpop.f32.mrf.mxu0
        %v2144 = vadd.f32 %v2079, %v2143
        %v2145 = vpop.f32.mrf.mxu0
        %v2146 = vadd.f32 %v2079, %v2145
        %2147 = vmatmul.bf16.gmra.mxu0 %v2071
        %v2148 = vpop.f32.mrf.mxu0
        %v2149 = vadd.f32 %v2079, %v2148
        %v2150 = vpop.f32.mrf.mxu0
        %v2151 = vadd.f32 %v2079, %v2150
        %2152 = vmatmul.bf16.gmra.mxu0 %v2072
        %v2153 = vpop.f32.mrf.mxu0
        %v2154 = vadd.f32 %v2079, %v2153
        %v2155 = vpop.f32.mrf.mxu0
        %v2156 = vadd.f32 %v2079, %v2155
        %2157 = vmatmul.bf16.gmra.mxu0 %v2073
        %v2158 = vpop.f32.mrf.mxu0
        %v2159 = vadd.f32 %v2079, %v2158
        %v2160 = vpop.f32.mrf.mxu0
        %v2161 = vadd.f32 %v2079, %v2160
        %2162 = vmatmul.bf16.gmra.mxu0 %v2074
        %v2163 = vpop.f32.mrf.mxu0
        %v2164 = vadd.f32 %v2079, %v2163
        %v2165 = vpop.f32.mrf.mxu0
        %v2166 = vadd.f32 %v2079, %v2165
        %2167 = vmatmul.bf16.gmra.mxu0 %v2075
        %v2168 = vpop.f32.mrf.mxu0
        %v2169 = vadd.f32 %v2079, %v2168
        %v2170 = vpop.f32.mrf.mxu0
        %v2171 = vadd.f32 %v2079, %v2170
        %2172 = vmatmul.bf16.gmra.mxu0 %v2076
        %v2173 = vpop.f32.mrf.mxu0
        %v2174 = vadd.f32 %v2079, %v2173
        %v2175 = vpop.f32.mrf.mxu0
        %v2176 = vadd.f32 %v2079, %v2175
        %2177 = vdwg.mxu0
        %v2178 = vld [vmem:[#allocation7] sm:$0x7]
        %2180 = vset.pattern.permute.xlu0 0
        %2181 = vperm.xlu0 %2180, %v740
        %v2182 = vpop.permute.xlu0 %2181
        %2185 = vset.pattern.permute.xlu0 0
        %2186 = vperm.xlu0 %2185, %v741
        %v2187 = vpop.permute.xlu0 %2186
        %2190 = vset.pattern.permute.xlu0 0
        %2191 = vperm.xlu0 %2190, %v742
        %v2192 = vpop.permute.xlu0 %2191
        %2195 = vset.pattern.permute.xlu0 0
        %2196 = vperm.xlu0 %2195, %v743
        %v2197 = vpop.permute.xlu0 %2196
        %2200 = vset.pattern.permute.xlu0 0
        %2201 = vperm.xlu0 %2200, %v744
        %v2202 = vpop.permute.xlu0 %2201
        %2205 = vset.pattern.permute.xlu0 0
        %2206 = vperm.xlu0 %2205, %v745
        %v2207 = vpop.permute.xlu0 %2206
        %2210 = vset.pattern.permute.xlu0 0
        %2211 = vperm.xlu0 %2210, %v746
        %v2212 = vpop.permute.xlu0 %2211
        %2215 = vset.pattern.permute.xlu0 0
        %2216 = vperm.xlu0 %2215, %v747
        %v2217 = vpop.permute.xlu0 %2216
        %2220 = vset.pattern.permute.xlu0 0
        %2221 = vperm.xlu0 %2220, %v748
        %v2222 = vpop.permute.xlu0 %2221
        %2225 = vset.pattern.permute.xlu0 0
        %2226 = vperm.xlu0 %2225, %v749
        %v2227 = vpop.permute.xlu0 %2226
        %2230 = vset.pattern.permute.xlu0 0
        %2231 = vperm.xlu0 %2230, %v750
        %v2232 = vpop.permute.xlu0 %2231
        %2235 = vset.pattern.permute.xlu0 0
        %2236 = vperm.xlu0 %2235, %v751
        %v2237 = vpop.permute.xlu0 %2236
        %2240 = vset.pattern.permute.xlu0 0
        %2241 = vperm.xlu0 %2240, %v752
        %v2242 = vpop.permute.xlu0 %2241
        %2245 = vset.pattern.permute.xlu0 0
        %2246 = vperm.xlu0 %2245, %v753
        %v2247 = vpop.permute.xlu0 %2246
        %2250 = vset.pattern.permute.xlu0 0
        %2251 = vperm.xlu0 %2250, %v754
        %v2252 = vpop.permute.xlu0 %2251
        %2255 = vset.pattern.permute.xlu0 0
        %2256 = vperm.xlu0 %2255, %v755
        %v2257 = vpop.permute.xlu0 %2256
        %v2259 = vperm.slane %v2178, 0
        %v2260 = vmul.f32 %v2182, %v2259
        %v2261 = vmul.f32 %v2187, %v2259
        %v2262 = vmul.f32 %v2192, %v2259
        %v2263 = vmul.f32 %v2197, %v2259
        %v2264 = vmul.f32 %v2202, %v2259
        %v2265 = vmul.f32 %v2207, %v2259
        %v2266 = vmul.f32 %v2212, %v2259
        %v2267 = vmul.f32 %v2217, %v2259
        %v2268 = vmul.f32 %v2222, %v2259
        %v2269 = vmul.f32 %v2227, %v2259
        %v2270 = vmul.f32 %v2232, %v2259
        %v2271 = vmul.f32 %v2237, %v2259
        %v2272 = vmul.f32 %v2242, %v2259
        %v2273 = vmul.f32 %v2247, %v2259
        %v2274 = vmul.f32 %v2252, %v2259
        %v2275 = vmul.f32 %v2257, %v2259
        %2276 = vset.pattern.permute.xlu0 1
        %2277 = vperm.xlu0 %2276, %v740
        %v2278 = vpop.permute.xlu0 %2277
        %2280 = vset.pattern.permute.xlu0 1
        %2281 = vperm.xlu0 %2280, %v741
        %v2282 = vpop.permute.xlu0 %2281
        %2284 = vset.pattern.permute.xlu0 1
        %2285 = vperm.xlu0 %2284, %v742
        %v2286 = vpop.permute.xlu0 %2285
        %2288 = vset.pattern.permute.xlu0 1
        %2289 = vperm.xlu0 %2288, %v743
        %v2290 = vpop.permute.xlu0 %2289
        %2292 = vset.pattern.permute.xlu0 1
        %2293 = vperm.xlu0 %2292, %v744
        %v2294 = vpop.permute.xlu0 %2293
        %2296 = vset.pattern.permute.xlu0 1
        %2297 = vperm.xlu0 %2296, %v745
        %v2298 = vpop.permute.xlu0 %2297
        %2300 = vset.pattern.permute.xlu0 1
        %2301 = vperm.xlu0 %2300, %v746
        %v2302 = vpop.permute.xlu0 %2301
        %2304 = vset.pattern.permute.xlu0 1
        %2305 = vperm.xlu0 %2304, %v747
        %v2306 = vpop.permute.xlu0 %2305
        %2308 = vset.pattern.permute.xlu0 1
        %2309 = vperm.xlu0 %2308, %v748
        %v2310 = vpop.permute.xlu0 %2309
        %2312 = vset.pattern.permute.xlu0 1
        %2313 = vperm.xlu0 %2312, %v749
        %v2314 = vpop.permute.xlu0 %2313
        %2316 = vset.pattern.permute.xlu0 1
        %2317 = vperm.xlu0 %2316, %v750
        %v2318 = vpop.permute.xlu0 %2317
        %2320 = vset.pattern.permute.xlu0 1
        %2321 = vperm.xlu0 %2320, %v751
        %v2322 = vpop.permute.xlu0 %2321
        %2324 = vset.pattern.permute.xlu0 1
        %2325 = vperm.xlu0 %2324, %v752
        %v2326 = vpop.permute.xlu0 %2325
        %2328 = vset.pattern.permute.xlu0 1
        %2329 = vperm.xlu0 %2328, %v753
        %v2330 = vpop.permute.xlu0 %2329
        %2332 = vset.pattern.permute.xlu0 1
        %2333 = vperm.xlu0 %2332, %v754
        %v2334 = vpop.permute.xlu0 %2333
        %2336 = vset.pattern.permute.xlu0 1
        %2337 = vperm.xlu0 %2336, %v755
        %v2338 = vpop.permute.xlu0 %2337
        %v2340 = vperm.slane %v2178, 1
        %v2341 = vmul.f32 %v2278, %v2340
        %v2342 = vmul.f32 %v2282, %v2340
        %v2343 = vmul.f32 %v2286, %v2340
        %v2344 = vmul.f32 %v2290, %v2340
        %v2345 = vmul.f32 %v2294, %v2340
        %v2346 = vmul.f32 %v2298, %v2340
        %v2347 = vmul.f32 %v2302, %v2340
        %v2348 = vmul.f32 %v2306, %v2340
        %v2349 = vmul.f32 %v2310, %v2340
        %v2350 = vmul.f32 %v2314, %v2340
        %v2351 = vmul.f32 %v2318, %v2340
        %v2352 = vmul.f32 %v2322, %v2340
        %v2353 = vmul.f32 %v2326, %v2340
        %v2354 = vmul.f32 %v2330, %v2340
        %v2355 = vmul.f32 %v2334, %v2340
        %v2356 = vmul.f32 %v2338, %v2340
        %v2357 = vadd.f32 %v2260, %v2341
        %v2358 = vadd.f32 %v2261, %v2342
        %v2359 = vadd.f32 %v2262, %v2343
        %v2360 = vadd.f32 %v2263, %v2344
        %v2361 = vadd.f32 %v2264, %v2345
        %v2362 = vadd.f32 %v2265, %v2346
        %v2363 = vadd.f32 %v2266, %v2347
        %v2364 = vadd.f32 %v2267, %v2348
        %v2365 = vadd.f32 %v2268, %v2349
        %v2366 = vadd.f32 %v2269, %v2350
        %v2367 = vadd.f32 %v2270, %v2351
        %v2368 = vadd.f32 %v2271, %v2352
        %v2369 = vadd.f32 %v2272, %v2353
        %v2370 = vadd.f32 %v2273, %v2354
        %v2371 = vadd.f32 %v2274, %v2355
        %v2372 = vadd.f32 %v2275, %v2356
        %2373 = vset.pattern.permute.xlu0 2
        %2374 = vperm.xlu0 %2373, %v740
        %v2375 = vpop.permute.xlu0 %2374
        %2377 = vset.pattern.permute.xlu0 2
        %2378 = vperm.xlu0 %2377, %v741
        %v2379 = vpop.permute.xlu0 %2378
        %2381 = vset.pattern.permute.xlu0 2
        %2382 = vperm.xlu0 %2381, %v742
        %v2383 = vpop.permute.xlu0 %2382
        %2385 = vset.pattern.permute.xlu0 2
        %2386 = vperm.xlu0 %2385, %v743
        %v2387 = vpop.permute.xlu0 %2386
        %2389 = vset.pattern.permute.xlu0 2
        %2390 = vperm.xlu0 %2389, %v744
        %v2391 = vpop.permute.xlu0 %2390
        %2393 = vset.pattern.permute.xlu0 2
        %2394 = vperm.xlu0 %2393, %v745
        %v2395 = vpop.permute.xlu0 %2394
        %2397 = vset.pattern.permute.xlu0 2
        %2398 = vperm.xlu0 %2397, %v746
        %v2399 = vpop.permute.xlu0 %2398
        %2401 = vset.pattern.permute.xlu0 2
        %2402 = vperm.xlu0 %2401, %v747
        %v2403 = vpop.permute.xlu0 %2402
        %2405 = vset.pattern.permute.xlu0 2
        %2406 = vperm.xlu0 %2405, %v748
        %v2407 = vpop.permute.xlu0 %2406
        %2409 = vset.pattern.permute.xlu0 2
        %2410 = vperm.xlu0 %2409, %v749
        %v2411 = vpop.permute.xlu0 %2410
        %2413 = vset.pattern.permute.xlu0 2
        %2414 = vperm.xlu0 %2413, %v750
        %v2415 = vpop.permute.xlu0 %2414
        %2417 = vset.pattern.permute.xlu0 2
        %2418 = vperm.xlu0 %2417, %v751
        %v2419 = vpop.permute.xlu0 %2418
        %2421 = vset.pattern.permute.xlu0 2
        %2422 = vperm.xlu0 %2421, %v752
        %v2423 = vpop.permute.xlu0 %2422
        %2425 = vset.pattern.permute.xlu0 2
        %2426 = vperm.xlu0 %2425, %v753
        %v2427 = vpop.permute.xlu0 %2426
        %2429 = vset.pattern.permute.xlu0 2
        %2430 = vperm.xlu0 %2429, %v754
        %v2431 = vpop.permute.xlu0 %2430
        %2433 = vset.pattern.permute.xlu0 2
        %2434 = vperm.xlu0 %2433, %v755
        %v2435 = vpop.permute.xlu0 %2434
        %v2437 = vperm.slane %v2178, 2
        %v2438 = vmul.f32 %v2375, %v2437
        %v2439 = vmul.f32 %v2379, %v2437
        %v2440 = vmul.f32 %v2383, %v2437
        %v2441 = vmul.f32 %v2387, %v2437
        %v2442 = vmul.f32 %v2391, %v2437
        %v2443 = vmul.f32 %v2395, %v2437
        %v2444 = vmul.f32 %v2399, %v2437
        %v2445 = vmul.f32 %v2403, %v2437
        %v2446 = vmul.f32 %v2407, %v2437
        %v2447 = vmul.f32 %v2411, %v2437
        %v2448 = vmul.f32 %v2415, %v2437
        %v2449 = vmul.f32 %v2419, %v2437
        %v2450 = vmul.f32 %v2423, %v2437
        %v2451 = vmul.f32 %v2427, %v2437
        %v2452 = vmul.f32 %v2431, %v2437
        %v2453 = vmul.f32 %v2435, %v2437
        %v2454 = vadd.f32 %v2357, %v2438
        %v2455 = vadd.f32 %v2358, %v2439
        %v2456 = vadd.f32 %v2359, %v2440
        %v2457 = vadd.f32 %v2360, %v2441
        %v2458 = vadd.f32 %v2361, %v2442
        %v2459 = vadd.f32 %v2362, %v2443
        %v2460 = vadd.f32 %v2363, %v2444
        %v2461 = vadd.f32 %v2364, %v2445
        %v2462 = vadd.f32 %v2365, %v2446
        %v2463 = vadd.f32 %v2366, %v2447
        %v2464 = vadd.f32 %v2367, %v2448
        %v2465 = vadd.f32 %v2368, %v2449
        %v2466 = vadd.f32 %v2369, %v2450
        %v2467 = vadd.f32 %v2370, %v2451
        %v2468 = vadd.f32 %v2371, %v2452
        %v2469 = vadd.f32 %v2372, %v2453
        %v2470 = vld [vmem:[#allocation8] sm:$0x1]
        %v2472 = vperm.slane %v2470, 0
        %v2474 = vadd.f32 %v2454, %v2472
        %v2475 = vadd.f32 %v2455, %v2472
        %v2476 = vadd.f32 %v2456, %v2472
        %v2477 = vadd.f32 %v2457, %v2472
        %v2478 = vadd.f32 %v2458, %v2472
        %v2479 = vadd.f32 %v2459, %v2472
        %v2480 = vadd.f32 %v2460, %v2472
        %v2481 = vadd.f32 %v2461, %v2472
        %v2482 = vadd.f32 %v2462, %v2472
        %v2483 = vadd.f32 %v2463, %v2472
        %v2484 = vadd.f32 %v2464, %v2472
        %v2485 = vadd.f32 %v2465, %v2472
        %v2486 = vadd.f32 %v2466, %v2472
        %v2487 = vadd.f32 %v2467, %v2472
        %v2488 = vadd.f32 %v2468, %v2472
        %v2489 = vadd.f32 %v2469, %v2472
        %vm2490 = vcmp.gt.f32.partialorder %v2474, 0.0
        %vm2491 = vcmp.gt.f32.partialorder %v2475, 0.0
        %vm2492 = vcmp.gt.f32.partialorder %v2476, 0.0
        %vm2493 = vcmp.gt.f32.partialorder %v2477, 0.0
        %vm2494 = vcmp.gt.f32.partialorder %v2478, 0.0
        %vm2495 = vcmp.gt.f32.partialorder %v2479, 0.0
        %vm2496 = vcmp.gt.f32.partialorder %v2480, 0.0
        %vm2497 = vcmp.gt.f32.partialorder %v2481, 0.0
        %vm2498 = vcmp.gt.f32.partialorder %v2482, 0.0
        %vm2499 = vcmp.gt.f32.partialorder %v2483, 0.0
        %vm2500 = vcmp.gt.f32.partialorder %v2484, 0.0
        %vm2501 = vcmp.gt.f32.partialorder %v2485, 0.0
        %vm2502 = vcmp.gt.f32.partialorder %v2486, 0.0
        %vm2503 = vcmp.gt.f32.partialorder %v2487, 0.0
        %vm2504 = vcmp.gt.f32.partialorder %v2488, 0.0
        %vm2505 = vcmp.gt.f32.partialorder %v2489, 0.0
        %v2506 = vmul.f32 %v2474, 0.01
        %v2507 = vmul.f32 %v2475, 0.01
        %v2508 = vmul.f32 %v2476, 0.01
        %v2509 = vmul.f32 %v2477, 0.01
        %v2510 = vmul.f32 %v2478, 0.01
        %v2511 = vmul.f32 %v2479, 0.01
        %v2512 = vmul.f32 %v2480, 0.01
        %v2513 = vmul.f32 %v2481, 0.01
        %v2514 = vmul.f32 %v2482, 0.01
        %v2515 = vmul.f32 %v2483, 0.01
        %v2516 = vmul.f32 %v2484, 0.01
        %v2517 = vmul.f32 %v2485, 0.01
        %v2518 = vmul.f32 %v2486, 0.01
        %v2519 = vmul.f32 %v2487, 0.01
        %v2520 = vmul.f32 %v2488, 0.01
        %v2521 = vmul.f32 %v2489, 0.01
        %v2522 = vsel %vm2490, %v2474, %v2506
        %v2523 = vsel %vm2491, %v2475, %v2507
        %v2524 = vsel %vm2492, %v2476, %v2508
        %v2525 = vsel %vm2493, %v2477, %v2509
        %v2526 = vsel %vm2494, %v2478, %v2510
        %v2527 = vsel %vm2495, %v2479, %v2511
        %v2528 = vsel %vm2496, %v2480, %v2512
        %v2529 = vsel %vm2497, %v2481, %v2513
        %v2530 = vsel %vm2498, %v2482, %v2514
        %v2531 = vsel %vm2499, %v2483, %v2515
        %v2532 = vsel %vm2500, %v2484, %v2516
        %v2533 = vsel %vm2501, %v2485, %v2517
        %v2534 = vsel %vm2502, %v2486, %v2518
        %v2535 = vsel %vm2503, %v2487, %v2519
        %v2536 = vsel %vm2504, %v2488, %v2520
        %v2537 = vsel %vm2505, %v2489, %v2521
        %v2538 = vld [vmem:[%s9] sm:$0x77]
        %v2539 = vld [vmem:[%s9 + $0x8] sm:$0x7]
        %v2542 = vperm.slane %v2538, 0
        %v2543 = vperm.slane %v2538, 4
        %v2544 = vperm.slane %v2539, 0
        %v2548 = vperm.slane %v2542, 0
        %v2549 = vperm.slane %v2543, 0
        %v2550 = vperm.slane %v2544, 0
        %v2551 = vmul.f32 %v2182, %v2548
        %v2552 = vmul.f32 %v2182, %v2549
        %v2553 = vmul.f32 %v2182, %v2550
        %v2554 = vmul.f32 %v2187, %v2548
        %v2555 = vmul.f32 %v2187, %v2549
        %v2556 = vmul.f32 %v2187, %v2550
        %v2557 = vmul.f32 %v2192, %v2548
        %v2558 = vmul.f32 %v2192, %v2549
        %v2559 = vmul.f32 %v2192, %v2550
        %v2560 = vmul.f32 %v2197, %v2548
        %v2561 = vmul.f32 %v2197, %v2549
        %v2562 = vmul.f32 %v2197, %v2550
        %v2563 = vmul.f32 %v2202, %v2548
        %v2564 = vmul.f32 %v2202, %v2549
        %v2565 = vmul.f32 %v2202, %v2550
        %v2566 = vmul.f32 %v2207, %v2548
        %v2567 = vmul.f32 %v2207, %v2549
        %v2568 = vmul.f32 %v2207, %v2550
        %v2569 = vmul.f32 %v2212, %v2548
        %v2570 = vmul.f32 %v2212, %v2549
        %v2571 = vmul.f32 %v2212, %v2550
        %v2572 = vmul.f32 %v2217, %v2548
        %v2573 = vmul.f32 %v2217, %v2549
        %v2574 = vmul.f32 %v2217, %v2550
        %v2575 = vmul.f32 %v2222, %v2548
        %v2576 = vmul.f32 %v2222, %v2549
        %v2577 = vmul.f32 %v2222, %v2550
        %v2578 = vmul.f32 %v2227, %v2548
        %v2579 = vmul.f32 %v2227, %v2549
        %v2580 = vmul.f32 %v2227, %v2550
        %v2581 = vmul.f32 %v2232, %v2548
        %v2582 = vmul.f32 %v2232, %v2549
        %v2583 = vmul.f32 %v2232, %v2550
        %v2584 = vmul.f32 %v2237, %v2548
        %v2585 = vmul.f32 %v2237, %v2549
        %v2586 = vmul.f32 %v2237, %v2550
        %v2587 = vmul.f32 %v2242, %v2548
        %v2588 = vmul.f32 %v2242, %v2549
        %v2589 = vmul.f32 %v2242, %v2550
        %v2590 = vmul.f32 %v2247, %v2548
        %v2591 = vmul.f32 %v2247, %v2549
        %v2592 = vmul.f32 %v2247, %v2550
        %v2593 = vmul.f32 %v2252, %v2548
        %v2594 = vmul.f32 %v2252, %v2549
        %v2595 = vmul.f32 %v2252, %v2550
        %v2596 = vmul.f32 %v2257, %v2548
        %v2597 = vmul.f32 %v2257, %v2549
        %v2598 = vmul.f32 %v2257, %v2550
        %v2599 = vperm.slane %v2538, 1
        %v2600 = vperm.slane %v2538, 5
        %v2601 = vperm.slane %v2539, 1
        %v2605 = vperm.slane %v2599, 1
        %v2606 = vperm.slane %v2600, 1
        %v2607 = vperm.slane %v2601, 1
        %v2608 = vmul.f32 %v2278, %v2605
        %v2609 = vmul.f32 %v2278, %v2606
        %v2610 = vmul.f32 %v2278, %v2607
        %v2611 = vmul.f32 %v2282, %v2605
        %v2612 = vmul.f32 %v2282, %v2606
        %v2613 = vmul.f32 %v2282, %v2607
        %v2614 = vmul.f32 %v2286, %v2605
        %v2615 = vmul.f32 %v2286, %v2606
        %v2616 = vmul.f32 %v2286, %v2607
        %v2617 = vmul.f32 %v2290, %v2605
        %v2618 = vmul.f32 %v2290, %v2606
        %v2619 = vmul.f32 %v2290, %v2607
        %v2620 = vmul.f32 %v2294, %v2605
        %v2621 = vmul.f32 %v2294, %v2606
        %v2622 = vmul.f32 %v2294, %v2607
        %v2623 = vmul.f32 %v2298, %v2605
        %v2624 = vmul.f32 %v2298, %v2606
        %v2625 = vmul.f32 %v2298, %v2607
        %v2626 = vmul.f32 %v2302, %v2605
        %v2627 = vmul.f32 %v2302, %v2606
        %v2628 = vmul.f32 %v2302, %v2607
        %v2629 = vmul.f32 %v2306, %v2605
        %v2630 = vmul.f32 %v2306, %v2606
        %v2631 = vmul.f32 %v2306, %v2607
        %v2632 = vmul.f32 %v2310, %v2605
        %v2633 = vmul.f32 %v2310, %v2606
        %v2634 = vmul.f32 %v2310, %v2607
        %v2635 = vmul.f32 %v2314, %v2605
        %v2636 = vmul.f32 %v2314, %v2606
        %v2637 = vmul.f32 %v2314, %v2607
        %v2638 = vmul.f32 %v2318, %v2605
        %v2639 = vmul.f32 %v2318, %v2606
        %v2640 = vmul.f32 %v2318, %v2607
        %v2641 = vmul.f32 %v2322, %v2605
        %v2642 = vmul.f32 %v2322, %v2606
        %v2643 = vmul.f32 %v2322, %v2607
        %v2644 = vmul.f32 %v2326, %v2605
        %v2645 = vmul.f32 %v2326, %v2606
        %v2646 = vmul.f32 %v2326, %v2607
        %v2647 = vmul.f32 %v2330, %v2605
        %v2648 = vmul.f32 %v2330, %v2606
        %v2649 = vmul.f32 %v2330, %v2607
        %v2650 = vmul.f32 %v2334, %v2605
        %v2651 = vmul.f32 %v2334, %v2606
        %v2652 = vmul.f32 %v2334, %v2607
        %v2653 = vmul.f32 %v2338, %v2605
        %v2654 = vmul.f32 %v2338, %v2606
        %v2655 = vmul.f32 %v2338, %v2607
        %v2656 = vadd.f32 %v2551, %v2608
        %v2657 = vadd.f32 %v2552, %v2609
        %v2658 = vadd.f32 %v2553, %v2610
        %v2659 = vadd.f32 %v2554, %v2611
        %v2660 = vadd.f32 %v2555, %v2612
        %v2661 = vadd.f32 %v2556, %v2613
        %v2662 = vadd.f32 %v2557, %v2614
        %v2663 = vadd.f32 %v2558, %v2615
        %v2664 = vadd.f32 %v2559, %v2616
        %v2665 = vadd.f32 %v2560, %v2617
        %v2666 = vadd.f32 %v2561, %v2618
        %v2667 = vadd.f32 %v2562, %v2619
        %v2668 = vadd.f32 %v2563, %v2620
        %v2669 = vadd.f32 %v2564, %v2621
        %v2670 = vadd.f32 %v2565, %v2622
        %v2671 = vadd.f32 %v2566, %v2623
        %v2672 = vadd.f32 %v2567, %v2624
        %v2673 = vadd.f32 %v2568, %v2625
        %v2674 = vadd.f32 %v2569, %v2626
        %v2675 = vadd.f32 %v2570, %v2627
        %v2676 = vadd.f32 %v2571, %v2628
        %v2677 = vadd.f32 %v2572, %v2629
        %v2678 = vadd.f32 %v2573, %v2630
        %v2679 = vadd.f32 %v2574, %v2631
        %v2680 = vadd.f32 %v2575, %v2632
        %v2681 = vadd.f32 %v2576, %v2633
        %v2682 = vadd.f32 %v2577, %v2634
        %v2683 = vadd.f32 %v2578, %v2635
        %v2684 = vadd.f32 %v2579, %v2636
        %v2685 = vadd.f32 %v2580, %v2637
        %v2686 = vadd.f32 %v2581, %v2638
        %v2687 = vadd.f32 %v2582, %v2639
        %v2688 = vadd.f32 %v2583, %v2640
        %v2689 = vadd.f32 %v2584, %v2641
        %v2690 = vadd.f32 %v2585, %v2642
        %v2691 = vadd.f32 %v2586, %v2643
        %v2692 = vadd.f32 %v2587, %v2644
        %v2693 = vadd.f32 %v2588, %v2645
        %v2694 = vadd.f32 %v2589, %v2646
        %v2695 = vadd.f32 %v2590, %v2647
        %v2696 = vadd.f32 %v2591, %v2648
        %v2697 = vadd.f32 %v2592, %v2649
        %v2698 = vadd.f32 %v2593, %v2650
        %v2699 = vadd.f32 %v2594, %v2651
        %v2700 = vadd.f32 %v2595, %v2652
        %v2701 = vadd.f32 %v2596, %v2653
        %v2702 = vadd.f32 %v2597, %v2654
        %v2703 = vadd.f32 %v2598, %v2655
        %v2704 = vperm.slane %v2538, 2
        %v2705 = vperm.slane %v2538, 6
        %v2706 = vperm.slane %v2539, 2
        %v2710 = vperm.slane %v2704, 2
        %v2711 = vperm.slane %v2705, 2
        %v2712 = vperm.slane %v2706, 2
        %v2713 = vmul.f32 %v2375, %v2710
        %v2714 = vmul.f32 %v2375, %v2711
        %v2715 = vmul.f32 %v2375, %v2712
        %v2716 = vmul.f32 %v2379, %v2710
        %v2717 = vmul.f32 %v2379, %v2711
        %v2718 = vmul.f32 %v2379, %v2712
        %v2719 = vmul.f32 %v2383, %v2710
        %v2720 = vmul.f32 %v2383, %v2711
        %v2721 = vmul.f32 %v2383, %v2712
        %v2722 = vmul.f32 %v2387, %v2710
        %v2723 = vmul.f32 %v2387, %v2711
        %v2724 = vmul.f32 %v2387, %v2712
        %v2725 = vmul.f32 %v2391, %v2710
        %v2726 = vmul.f32 %v2391, %v2711
        %v2727 = vmul.f32 %v2391, %v2712
        %v2728 = vmul.f32 %v2395, %v2710
        %v2729 = vmul.f32 %v2395, %v2711
        %v2730 = vmul.f32 %v2395, %v2712
        %v2731 = vmul.f32 %v2399, %v2710
        %v2732 = vmul.f32 %v2399, %v2711
        %v2733 = vmul.f32 %v2399, %v2712
        %v2734 = vmul.f32 %v2403, %v2710
        %v2735 = vmul.f32 %v2403, %v2711
        %v2736 = vmul.f32 %v2403, %v2712
        %v2737 = vmul.f32 %v2407, %v2710
        %v2738 = vmul.f32 %v2407, %v2711
        %v2739 = vmul.f32 %v2407, %v2712
        %v2740 = vmul.f32 %v2411, %v2710
        %v2741 = vmul.f32 %v2411, %v2711
        %v2742 = vmul.f32 %v2411, %v2712
        %v2743 = vmul.f32 %v2415, %v2710
        %v2744 = vmul.f32 %v2415, %v2711
        %v2745 = vmul.f32 %v2415, %v2712
        %v2746 = vmul.f32 %v2419, %v2710
        %v2747 = vmul.f32 %v2419, %v2711
        %v2748 = vmul.f32 %v2419, %v2712
        %v2749 = vmul.f32 %v2423, %v2710
        %v2750 = vmul.f32 %v2423, %v2711
        %v2751 = vmul.f32 %v2423, %v2712
        %v2752 = vmul.f32 %v2427, %v2710
        %v2753 = vmul.f32 %v2427, %v2711
        %v2754 = vmul.f32 %v2427, %v2712
        %v2755 = vmul.f32 %v2431, %v2710
        %v2756 = vmul.f32 %v2431, %v2711
        %v2757 = vmul.f32 %v2431, %v2712
        %v2758 = vmul.f32 %v2435, %v2710
        %v2759 = vmul.f32 %v2435, %v2711
        %v2760 = vmul.f32 %v2435, %v2712
        %v2761 = vadd.f32 %v2656, %v2713
        %v2762 = vadd.f32 %v2657, %v2714
        %v2763 = vadd.f32 %v2658, %v2715
        %v2764 = vadd.f32 %v2659, %v2716
        %v2765 = vadd.f32 %v2660, %v2717
        %v2766 = vadd.f32 %v2661, %v2718
        %v2767 = vadd.f32 %v2662, %v2719
        %v2768 = vadd.f32 %v2663, %v2720
        %v2769 = vadd.f32 %v2664, %v2721
        %v2770 = vadd.f32 %v2665, %v2722
        %v2771 = vadd.f32 %v2666, %v2723
        %v2772 = vadd.f32 %v2667, %v2724
        %v2773 = vadd.f32 %v2668, %v2725
        %v2774 = vadd.f32 %v2669, %v2726
        %v2775 = vadd.f32 %v2670, %v2727
        %v2776 = vadd.f32 %v2671, %v2728
        %v2777 = vadd.f32 %v2672, %v2729
        %v2778 = vadd.f32 %v2673, %v2730
        %v2779 = vadd.f32 %v2674, %v2731
        %v2780 = vadd.f32 %v2675, %v2732
        %v2781 = vadd.f32 %v2676, %v2733
        %v2782 = vadd.f32 %v2677, %v2734
        %v2783 = vadd.f32 %v2678, %v2735
        %v2784 = vadd.f32 %v2679, %v2736
        %v2785 = vadd.f32 %v2680, %v2737
        %v2786 = vadd.f32 %v2681, %v2738
        %v2787 = vadd.f32 %v2682, %v2739
        %v2788 = vadd.f32 %v2683, %v2740
        %v2789 = vadd.f32 %v2684, %v2741
        %v2790 = vadd.f32 %v2685, %v2742
        %v2791 = vadd.f32 %v2686, %v2743
        %v2792 = vadd.f32 %v2687, %v2744
        %v2793 = vadd.f32 %v2688, %v2745
        %v2794 = vadd.f32 %v2689, %v2746
        %v2795 = vadd.f32 %v2690, %v2747
        %v2796 = vadd.f32 %v2691, %v2748
        %v2797 = vadd.f32 %v2692, %v2749
        %v2798 = vadd.f32 %v2693, %v2750
        %v2799 = vadd.f32 %v2694, %v2751
        %v2800 = vadd.f32 %v2695, %v2752
        %v2801 = vadd.f32 %v2696, %v2753
        %v2802 = vadd.f32 %v2697, %v2754
        %v2803 = vadd.f32 %v2698, %v2755
        %v2804 = vadd.f32 %v2699, %v2756
        %v2805 = vadd.f32 %v2700, %v2757
        %v2806 = vadd.f32 %v2701, %v2758
        %v2807 = vadd.f32 %v2702, %v2759
        %v2808 = vadd.f32 %v2703, %v2760
        %v2809 = vld [vmem:[#allocation10] sm:$0xff]
        %v2810 = vld [vmem:[#allocation10 + $0x8] sm:$0xf]
        %v2811 = vld [vmem:[#allocation10 + $0xc] sm:$0xff]
        %v2812 = vld [vmem:[#allocation10 + $0x14] sm:$0xf]
        %v2813 = vld [vmem:[#allocation10 + $0x18] sm:$0xff]
        %v2814 = vld [vmem:[#allocation10 + $0x20] sm:$0xf]
        %v2815 = vld [vmem:[#allocation10 + $0x24] sm:$0xff]
        %v2816 = vld [vmem:[#allocation10 + $0x2c] sm:$0xf]
        %v2817 = vpack.c.bf16 %v2523, %v2522
        %v2818 = vpack.c.bf16 %v2525, %v2524
        %v2819 = vpack.c.bf16 %v2527, %v2526
        %v2820 = vpack.c.bf16 %v2529, %v2528
        %v2821 = vpack.c.bf16 %v2531, %v2530
        %v2822 = vpack.c.bf16 %v2533, %v2532
        %v2823 = vpack.c.bf16 %v2535, %v2534
        %v2824 = vpack.c.bf16 %v2537, %v2536
        %v2833 = vunpack.c.l.b16 %v2809
        %v2834 = vunpack.c.h.b16 %v2809
        %v2835 = vunpack.c.l.b16 %v2810
        %v2836 = vunpack.c.l.b16 %v2811
        %v2837 = vunpack.c.h.b16 %v2811
        %v2838 = vunpack.c.l.b16 %v2812
        %v2839 = vunpack.c.l.b16 %v2813
        %v2840 = vunpack.c.h.b16 %v2813
        %v2841 = vunpack.c.l.b16 %v2814
        %v2842 = vunpack.c.l.b16 %v2815
        %v2843 = vunpack.c.h.b16 %v2815
        %v2844 = vunpack.c.l.b16 %v2816
        %v2845 = vpack.c.b16 %v2836, %v2833
        %v2846 = vpack.c.b16 %v2837, %v2834
        %v2847 = vpack.c.b16 %v2838, %v2835
        %v2848 = vpack.c.b16 %v2842, %v2839
        %v2849 = vpack.c.b16 %v2843, %v2840
        %v2850 = vpack.c.b16 %v2844, %v2841
        %vm2857 = vcmask 261120
        %v2859 = vsel %vm2857, %v2817, 0
        %v2862 = vsel %vm2857, %v2818, 0
        %v2865 = vsel %vm2857, %v2819, 0
        %v2868 = vsel %vm2857, %v2820, 0
        %v2871 = vsel %vm2857, %v2821, 0
        %v2874 = vsel %vm2857, %v2822, 0
        %v2877 = vsel %vm2857, %v2823, 0
        %v2880 = vsel %vm2857, %v2824, 0
        %2882 = vmatpush.bf16.msra.mxu0 0
        %2883 = vmatpush.bf16.msra.mxu0 0
        %2884 = vmatpush.bf16.msra.mxu0 0
        %2885 = vmatpush.bf16.msra.mxu0 0
        %2886 = vmatpush.bf16.msra.mxu0 0
        %2887 = vmatpush.bf16.msra.mxu0 0
        %2888 = vmatpush.bf16.msra.mxu0 %v2848
        %2889 = vmatpush.bf16.msra.mxu0 %v2845
        %2890 = vmatmul.bf16.gmra.mxu0 %v2859
        %v2891 = vpop.f32.mrf.mxu0
        %v2892 = vadd.f32 0.0, %v2891
        %v2893 = vpop.f32.mrf.mxu0
        %v2894 = vadd.f32 0.0, %v2893
        %2895 = vmatmul.bf16.gmra.mxu0 %v2862
        %v2896 = vpop.f32.mrf.mxu0
        %v2897 = vadd.f32 0.0, %v2896
        %v2898 = vpop.f32.mrf.mxu0
        %v2899 = vadd.f32 0.0, %v2898
        %2900 = vmatmul.bf16.gmra.mxu0 %v2865
        %v2901 = vpop.f32.mrf.mxu0
        %v2902 = vadd.f32 0.0, %v2901
        %v2903 = vpop.f32.mrf.mxu0
        %v2904 = vadd.f32 0.0, %v2903
        %2905 = vmatmul.bf16.gmra.mxu0 %v2868
        %v2906 = vpop.f32.mrf.mxu0
        %v2907 = vadd.f32 0.0, %v2906
        %v2908 = vpop.f32.mrf.mxu0
        %v2909 = vadd.f32 0.0, %v2908
        %2910 = vmatmul.bf16.gmra.mxu0 %v2871
        %v2911 = vpop.f32.mrf.mxu0
        %v2912 = vadd.f32 0.0, %v2911
        %v2913 = vpop.f32.mrf.mxu0
        %v2914 = vadd.f32 0.0, %v2913
        %2915 = vmatmul.bf16.gmra.mxu0 %v2874
        %v2916 = vpop.f32.mrf.mxu0
        %v2917 = vadd.f32 0.0, %v2916
        %v2918 = vpop.f32.mrf.mxu0
        %v2919 = vadd.f32 0.0, %v2918
        %2920 = vmatmul.bf16.gmra.mxu0 %v2877
        %v2921 = vpop.f32.mrf.mxu0
        %v2922 = vadd.f32 0.0, %v2921
        %v2923 = vpop.f32.mrf.mxu0
        %v2924 = vadd.f32 0.0, %v2923
        %2925 = vmatmul.bf16.gmra.mxu0 %v2880
        %v2926 = vpop.f32.mrf.mxu0
        %v2927 = vadd.f32 0.0, %v2926
        %v2928 = vpop.f32.mrf.mxu0
        %v2929 = vadd.f32 0.0, %v2928
        %2930 = vdwg.mxu0
        %2931 = vmatpush.bf16.msra.mxu0 0
        %2932 = vmatpush.bf16.msra.mxu0 0
        %2933 = vmatpush.bf16.msra.mxu0 0
        %2934 = vmatpush.bf16.msra.mxu0 0
        %2935 = vmatpush.bf16.msra.mxu0 0
        %2936 = vmatpush.bf16.msra.mxu0 0
        %2937 = vmatpush.bf16.msra.mxu0 %v2849
        %2938 = vmatpush.bf16.msra.mxu0 %v2846
        %2939 = vmatmul.bf16.gmra.mxu0 %v2859
        %v2940 = vpop.f32.mrf.mxu0
        %v2941 = vadd.f32 0.0, %v2940
        %v2942 = vpop.f32.mrf.mxu0
        %v2943 = vadd.f32 0.0, %v2942
        %2944 = vmatmul.bf16.gmra.mxu0 %v2862
        %v2945 = vpop.f32.mrf.mxu0
        %v2946 = vadd.f32 0.0, %v2945
        %v2947 = vpop.f32.mrf.mxu0
        %v2948 = vadd.f32 0.0, %v2947
        %2949 = vmatmul.bf16.gmra.mxu0 %v2865
        %v2950 = vpop.f32.mrf.mxu0
        %v2951 = vadd.f32 0.0, %v2950
        %v2952 = vpop.f32.mrf.mxu0
        %v2953 = vadd.f32 0.0, %v2952
        %2954 = vmatmul.bf16.gmra.mxu0 %v2868
        %v2955 = vpop.f32.mrf.mxu0
        %v2956 = vadd.f32 0.0, %v2955
        %v2957 = vpop.f32.mrf.mxu0
        %v2958 = vadd.f32 0.0, %v2957
        %2959 = vmatmul.bf16.gmra.mxu0 %v2871
        %v2960 = vpop.f32.mrf.mxu0
        %v2961 = vadd.f32 0.0, %v2960
        %v2962 = vpop.f32.mrf.mxu0
        %v2963 = vadd.f32 0.0, %v2962
        %2964 = vmatmul.bf16.gmra.mxu0 %v2874
        %v2965 = vpop.f32.mrf.mxu0
        %v2966 = vadd.f32 0.0, %v2965
        %v2967 = vpop.f32.mrf.mxu0
        %v2968 = vadd.f32 0.0, %v2967
        %2969 = vmatmul.bf16.gmra.mxu0 %v2877
        %v2970 = vpop.f32.mrf.mxu0
        %v2971 = vadd.f32 0.0, %v2970
        %v2972 = vpop.f32.mrf.mxu0
        %v2973 = vadd.f32 0.0, %v2972
        %2974 = vmatmul.bf16.gmra.mxu0 %v2880
        %v2975 = vpop.f32.mrf.mxu0
        %v2976 = vadd.f32 0.0, %v2975
        %v2977 = vpop.f32.mrf.mxu0
        %v2978 = vadd.f32 0.0, %v2977
        %2979 = vdwg.mxu0
        %2980 = vmatpush.bf16.msra.mxu0 0
        %2981 = vmatpush.bf16.msra.mxu0 0
        %2982 = vmatpush.bf16.msra.mxu0 0
        %2983 = vmatpush.bf16.msra.mxu0 0
        %2984 = vmatpush.bf16.msra.mxu0 0
        %2985 = vmatpush.bf16.msra.mxu0 0
        %2986 = vmatpush.bf16.msra.mxu0 %v2850
        %2987 = vmatpush.bf16.msra.mxu0 %v2847
        %2988 = vmatmul.bf16.gmra.mxu0 %v2859
        %v2989 = vpop.f32.mrf.mxu0
        %v2990 = vadd.f32 0.0, %v2989
        %v2991 = vpop.f32.mrf.mxu0
        %v2992 = vadd.f32 0.0, %v2991
        %2993 = vmatmul.bf16.gmra.mxu0 %v2862
        %v2994 = vpop.f32.mrf.mxu0
        %v2995 = vadd.f32 0.0, %v2994
        %v2996 = vpop.f32.mrf.mxu0
        %v2997 = vadd.f32 0.0, %v2996
        %2998 = vmatmul.bf16.gmra.mxu0 %v2865
        %v2999 = vpop.f32.mrf.mxu0
        %v3000 = vadd.f32 0.0, %v2999
        %v3001 = vpop.f32.mrf.mxu0
        %v3002 = vadd.f32 0.0, %v3001
        %3003 = vmatmul.bf16.gmra.mxu0 %v2868
        %v3004 = vpop.f32.mrf.mxu0
        %v3005 = vadd.f32 0.0, %v3004
        %v3006 = vpop.f32.mrf.mxu0
        %v3007 = vadd.f32 0.0, %v3006
        %3008 = vmatmul.bf16.gmra.mxu0 %v2871
        %v3009 = vpop.f32.mrf.mxu0
        %v3010 = vadd.f32 0.0, %v3009
        %v3011 = vpop.f32.mrf.mxu0
        %v3012 = vadd.f32 0.0, %v3011
        %3013 = vmatmul.bf16.gmra.mxu0 %v2874
        %v3014 = vpop.f32.mrf.mxu0
        %v3015 = vadd.f32 0.0, %v3014
        %v3016 = vpop.f32.mrf.mxu0
        %v3017 = vadd.f32 0.0, %v3016
        %3018 = vmatmul.bf16.gmra.mxu0 %v2877
        %v3019 = vpop.f32.mrf.mxu0
        %v3020 = vadd.f32 0.0, %v3019
        %v3021 = vpop.f32.mrf.mxu0
        %v3022 = vadd.f32 0.0, %v3021
        %3023 = vmatmul.bf16.gmra.mxu0 %v2880
        %v3024 = vpop.f32.mrf.mxu0
        %v3025 = vadd.f32 0.0, %v3024
        %v3026 = vpop.f32.mrf.mxu0
        %v3027 = vadd.f32 0.0, %v3026
        %3028 = vdwg.mxu0
        %v3029 = vadd.f32 %v2761, %v2892
        %v3030 = vadd.f32 %v2762, %v2941
        %v3031 = vadd.f32 %v2763, %v2990
        %v3032 = vadd.f32 %v2764, %v2894
        %v3033 = vadd.f32 %v2765, %v2943
        %v3034 = vadd.f32 %v2766, %v2992
        %v3035 = vadd.f32 %v2767, %v2897
        %v3036 = vadd.f32 %v2768, %v2946
        %v3037 = vadd.f32 %v2769, %v2995
        %v3038 = vadd.f32 %v2770, %v2899
        %v3039 = vadd.f32 %v2771, %v2948
        %v3040 = vadd.f32 %v2772, %v2997
        %v3041 = vadd.f32 %v2773, %v2902
        %v3042 = vadd.f32 %v2774, %v2951
        %v3043 = vadd.f32 %v2775, %v3000
        %v3044 = vadd.f32 %v2776, %v2904
        %v3045 = vadd.f32 %v2777, %v2953
        %v3046 = vadd.f32 %v2778, %v3002
        %v3047 = vadd.f32 %v2779, %v2907
        %v3048 = vadd.f32 %v2780, %v2956
        %v3049 = vadd.f32 %v2781, %v3005
        %v3050 = vadd.f32 %v2782, %v2909
        %v3051 = vadd.f32 %v2783, %v2958
        %v3052 = vadd.f32 %v2784, %v3007
        %v3053 = vadd.f32 %v2785, %v2912
        %v3054 = vadd.f32 %v2786, %v2961
        %v3055 = vadd.f32 %v2787, %v3010
        %v3056 = vadd.f32 %v2788, %v2914
        %v3057 = vadd.f32 %v2789, %v2963
        %v3058 = vadd.f32 %v2790, %v3012
        %v3059 = vadd.f32 %v2791, %v2917
        %v3060 = vadd.f32 %v2792, %v2966
        %v3061 = vadd.f32 %v2793, %v3015
        %v3062 = vadd.f32 %v2794, %v2919
        %v3063 = vadd.f32 %v2795, %v2968
        %v3064 = vadd.f32 %v2796, %v3017
        %v3065 = vadd.f32 %v2797, %v2922
        %v3066 = vadd.f32 %v2798, %v2971
        %v3067 = vadd.f32 %v2799, %v3020
        %v3068 = vadd.f32 %v2800, %v2924
        %v3069 = vadd.f32 %v2801, %v2973
        %v3070 = vadd.f32 %v2802, %v3022
        %v3071 = vadd.f32 %v2803, %v2927
        %v3072 = vadd.f32 %v2804, %v2976
        %v3073 = vadd.f32 %v2805, %v3025
        %v3074 = vadd.f32 %v2806, %v2929
        %v3075 = vadd.f32 %v2807, %v2978
        %v3076 = vadd.f32 %v2808, %v3027
        %v3077 = vld [vmem:[#allocation11] sm:$0xff]
        %v3078 = vld [vmem:[#allocation11 + $0x8] sm:$0xf]
        %v3079 = vld [vmem:[#allocation11 + $0xc] sm:$0xff]
        %v3080 = vld [vmem:[#allocation11 + $0x14] sm:$0xf]
        %v3081 = vld [vmem:[#allocation11 + $0x18] sm:$0xff]
        %v3082 = vld [vmem:[#allocation11 + $0x20] sm:$0xf]
        %v3083 = vld [vmem:[#allocation11 + $0x24] sm:$0xff]
        %v3084 = vld [vmem:[#allocation11 + $0x2c] sm:$0xf]
        %v3085 = vpack.c.bf16 %v2141, %v2139
        %v3086 = vpack.c.bf16 %v2146, %v2144
        %v3087 = vpack.c.bf16 %v2151, %v2149
        %v3088 = vpack.c.bf16 %v2156, %v2154
        %v3089 = vpack.c.bf16 %v2161, %v2159
        %v3090 = vpack.c.bf16 %v2166, %v2164
        %v3091 = vpack.c.bf16 %v2171, %v2169
        %v3092 = vpack.c.bf16 %v2176, %v2174
        %v3101 = vunpack.c.l.b16 %v3077
        %v3102 = vunpack.c.h.b16 %v3077
        %v3103 = vunpack.c.l.b16 %v3078
        %v3104 = vunpack.c.l.b16 %v3079
        %v3105 = vunpack.c.h.b16 %v3079
        %v3106 = vunpack.c.l.b16 %v3080
        %v3107 = vunpack.c.l.b16 %v3081
        %v3108 = vunpack.c.h.b16 %v3081
        %v3109 = vunpack.c.l.b16 %v3082
        %v3110 = vunpack.c.l.b16 %v3083
        %v3111 = vunpack.c.h.b16 %v3083
        %v3112 = vunpack.c.l.b16 %v3084
        %v3113 = vpack.c.b16 %v3104, %v3101
        %v3114 = vpack.c.b16 %v3105, %v3102
        %v3115 = vpack.c.b16 %v3106, %v3103
        %v3116 = vpack.c.b16 %v3110, %v3107
        %v3117 = vpack.c.b16 %v3111, %v3108
        %v3118 = vpack.c.b16 %v3112, %v3109
        %v3126 = vsel %vm2857, %v3085, 0
        %v3129 = vsel %vm2857, %v3086, 0
        %v3132 = vsel %vm2857, %v3087, 0
        %v3135 = vsel %vm2857, %v3088, 0
        %v3138 = vsel %vm2857, %v3089, 0
        %v3141 = vsel %vm2857, %v3090, 0
        %v3144 = vsel %vm2857, %v3091, 0
        %v3147 = vsel %vm2857, %v3092, 0
        %3149 = vmatpush.bf16.msra.mxu0 0
        %3150 = vmatpush.bf16.msra.mxu0 0
        %3151 = vmatpush.bf16.msra.mxu0 0
        %3152 = vmatpush.bf16.msra.mxu0 0
        %3153 = vmatpush.bf16.msra.mxu0 0
        %3154 = vmatpush.bf16.msra.mxu0 0
        %3155 = vmatpush.bf16.msra.mxu0 %v3116
        %3156 = vmatpush.bf16.msra.mxu0 %v3113
        %3157 = vmatmul.bf16.gmra.mxu0 %v3126
        %v3158 = vpop.f32.mrf.mxu0
        %v3159 = vadd.f32 0.0, %v3158
        %v3160 = vpop.f32.mrf.mxu0
        %v3161 = vadd.f32 0.0, %v3160
        %3162 = vmatmul.bf16.gmra.mxu0 %v3129
        %v3163 = vpop.f32.mrf.mxu0
        %v3164 = vadd.f32 0.0, %v3163
        %v3165 = vpop.f32.mrf.mxu0
        %v3166 = vadd.f32 0.0, %v3165
        %3167 = vmatmul.bf16.gmra.mxu0 %v3132
        %v3168 = vpop.f32.mrf.mxu0
        %v3169 = vadd.f32 0.0, %v3168
        %v3170 = vpop.f32.mrf.mxu0
        %v3171 = vadd.f32 0.0, %v3170
        %3172 = vmatmul.bf16.gmra.mxu0 %v3135
        %v3173 = vpop.f32.mrf.mxu0
        %v3174 = vadd.f32 0.0, %v3173
        %v3175 = vpop.f32.mrf.mxu0
        %v3176 = vadd.f32 0.0, %v3175
        %3177 = vmatmul.bf16.gmra.mxu0 %v3138
        %v3178 = vpop.f32.mrf.mxu0
        %v3179 = vadd.f32 0.0, %v3178
        %v3180 = vpop.f32.mrf.mxu0
        %v3181 = vadd.f32 0.0, %v3180
        %3182 = vmatmul.bf16.gmra.mxu0 %v3141
        %v3183 = vpop.f32.mrf.mxu0
        %v3184 = vadd.f32 0.0, %v3183
        %v3185 = vpop.f32.mrf.mxu0
        %v3186 = vadd.f32 0.0, %v3185
        %3187 = vmatmul.bf16.gmra.mxu0 %v3144
        %v3188 = vpop.f32.mrf.mxu0
        %v3189 = vadd.f32 0.0, %v3188
        %v3190 = vpop.f32.mrf.mxu0
        %v3191 = vadd.f32 0.0, %v3190
        %3192 = vmatmul.bf16.gmra.mxu0 %v3147
        %v3193 = vpop.f32.mrf.mxu0
        %v3194 = vadd.f32 0.0, %v3193
        %v3195 = vpop.f32.mrf.mxu0
        %v3196 = vadd.f32 0.0, %v3195
        %3197 = vdwg.mxu0
        %3198 = vmatpush.bf16.msra.mxu0 0
        %3199 = vmatpush.bf16.msra.mxu0 0
        %3200 = vmatpush.bf16.msra.mxu0 0
        %3201 = vmatpush.bf16.msra.mxu0 0
        %3202 = vmatpush.bf16.msra.mxu0 0
        %3203 = vmatpush.bf16.msra.mxu0 0
        %3204 = vmatpush.bf16.msra.mxu0 %v3117
        %3205 = vmatpush.bf16.msra.mxu0 %v3114
        %3206 = vmatmul.bf16.gmra.mxu0 %v3126
        %v3207 = vpop.f32.mrf.mxu0
        %v3208 = vadd.f32 0.0, %v3207
        %v3209 = vpop.f32.mrf.mxu0
        %v3210 = vadd.f32 0.0, %v3209
        %3211 = vmatmul.bf16.gmra.mxu0 %v3129
        %v3212 = vpop.f32.mrf.mxu0
        %v3213 = vadd.f32 0.0, %v3212
        %v3214 = vpop.f32.mrf.mxu0
        %v3215 = vadd.f32 0.0, %v3214
        %3216 = vmatmul.bf16.gmra.mxu0 %v3132
        %v3217 = vpop.f32.mrf.mxu0
        %v3218 = vadd.f32 0.0, %v3217
        %v3219 = vpop.f32.mrf.mxu0
        %v3220 = vadd.f32 0.0, %v3219
        %3221 = vmatmul.bf16.gmra.mxu0 %v3135
        %v3222 = vpop.f32.mrf.mxu0
        %v3223 = vadd.f32 0.0, %v3222
        %v3224 = vpop.f32.mrf.mxu0
        %v3225 = vadd.f32 0.0, %v3224
        %3226 = vmatmul.bf16.gmra.mxu0 %v3138
        %v3227 = vpop.f32.mrf.mxu0
        %v3228 = vadd.f32 0.0, %v3227
        %v3229 = vpop.f32.mrf.mxu0
        %v3230 = vadd.f32 0.0, %v3229
        %3231 = vmatmul.bf16.gmra.mxu0 %v3141
        %v3232 = vpop.f32.mrf.mxu0
        %v3233 = vadd.f32 0.0, %v3232
        %v3234 = vpop.f32.mrf.mxu0
        %v3235 = vadd.f32 0.0, %v3234
        %3236 = vmatmul.bf16.gmra.mxu0 %v3144
        %v3237 = vpop.f32.mrf.mxu0
        %v3238 = vadd.f32 0.0, %v3237
        %v3239 = vpop.f32.mrf.mxu0
        %v3240 = vadd.f32 0.0, %v3239
        %3241 = vmatmul.bf16.gmra.mxu0 %v3147
        %v3242 = vpop.f32.mrf.mxu0
        %v3243 = vadd.f32 0.0, %v3242
        %v3244 = vpop.f32.mrf.mxu0
        %v3245 = vadd.f32 0.0, %v3244
        %3246 = vdwg.mxu0
        %3247 = vmatpush.bf16.msra.mxu0 0
        %3248 = vmatpush.bf16.msra.mxu0 0
        %3249 = vmatpush.bf16.msra.mxu0 0
        %3250 = vmatpush.bf16.msra.mxu0 0
        %3251 = vmatpush.bf16.msra.mxu0 0
        %3252 = vmatpush.bf16.msra.mxu0 0
        %3253 = vmatpush.bf16.msra.mxu0 %v3118
        %3254 = vmatpush.bf16.msra.mxu0 %v3115
        %3255 = vmatmul.bf16.gmra.mxu0 %v3126
        %v3256 = vpop.f32.mrf.mxu0
        %v3257 = vadd.f32 0.0, %v3256
        %v3258 = vpop.f32.mrf.mxu0
        %v3259 = vadd.f32 0.0, %v3258
        %3260 = vmatmul.bf16.gmra.mxu0 %v3129
        %v3261 = vpop.f32.mrf.mxu0
        %v3262 = vadd.f32 0.0, %v3261
        %v3263 = vpop.f32.mrf.mxu0
        %v3264 = vadd.f32 0.0, %v3263
        %3265 = vmatmul.bf16.gmra.mxu0 %v3132
        %v3266 = vpop.f32.mrf.mxu0
        %v3267 = vadd.f32 0.0, %v3266
        %v3268 = vpop.f32.mrf.mxu0
        %v3269 = vadd.f32 0.0, %v3268
        %3270 = vmatmul.bf16.gmra.mxu0 %v3135
        %v3271 = vpop.f32.mrf.mxu0
        %v3272 = vadd.f32 0.0, %v3271
        %v3273 = vpop.f32.mrf.mxu0
        %v3274 = vadd.f32 0.0, %v3273
        %3275 = vmatmul.bf16.gmra.mxu0 %v3138
        %v3276 = vpop.f32.mrf.mxu0
        %v3277 = vadd.f32 0.0, %v3276
        %v3278 = vpop.f32.mrf.mxu0
        %v3279 = vadd.f32 0.0, %v3278
        %3280 = vmatmul.bf16.gmra.mxu0 %v3141
        %v3281 = vpop.f32.mrf.mxu0
        %v3282 = vadd.f32 0.0, %v3281
        %v3283 = vpop.f32.mrf.mxu0
        %v3284 = vadd.f32 0.0, %v3283
        %3285 = vmatmul.bf16.gmra.mxu0 %v3144
        %v3286 = vpop.f32.mrf.mxu0
        %v3287 = vadd.f32 0.0, %v3286
        %v3288 = vpop.f32.mrf.mxu0
        %v3289 = vadd.f32 0.0, %v3288
        %3290 = vmatmul.bf16.gmra.mxu0 %v3147
        %v3291 = vpop.f32.mrf.mxu0
        %v3292 = vadd.f32 0.0, %v3291
        %v3293 = vpop.f32.mrf.mxu0
        %v3294 = vadd.f32 0.0, %v3293
        %3295 = vdwg.mxu0
        %v3296 = vadd.f32 %v3029, %v3159
        %v3297 = vadd.f32 %v3030, %v3208
        %v3298 = vadd.f32 %v3031, %v3257
        %v3299 = vadd.f32 %v3032, %v3161
        %v3300 = vadd.f32 %v3033, %v3210
        %v3301 = vadd.f32 %v3034, %v3259
        %v3302 = vadd.f32 %v3035, %v3164
        %v3303 = vadd.f32 %v3036, %v3213
        %v3304 = vadd.f32 %v3037, %v3262
        %v3305 = vadd.f32 %v3038, %v3166
        %v3306 = vadd.f32 %v3039, %v3215
        %v3307 = vadd.f32 %v3040, %v3264
        %v3308 = vadd.f32 %v3041, %v3169
        %v3309 = vadd.f32 %v3042, %v3218
        %v3310 = vadd.f32 %v3043, %v3267
        %v3311 = vadd.f32 %v3044, %v3171
        %v3312 = vadd.f32 %v3045, %v3220
        %v3313 = vadd.f32 %v3046, %v3269
        %v3314 = vadd.f32 %v3047, %v3174
        %v3315 = vadd.f32 %v3048, %v3223
        %v3316 = vadd.f32 %v3049, %v3272
        %v3317 = vadd.f32 %v3050, %v3176
        %v3318 = vadd.f32 %v3051, %v3225
        %v3319 = vadd.f32 %v3052, %v3274
        %v3320 = vadd.f32 %v3053, %v3179
        %v3321 = vadd.f32 %v3054, %v3228
        %v3322 = vadd.f32 %v3055, %v3277
        %v3323 = vadd.f32 %v3056, %v3181
        %v3324 = vadd.f32 %v3057, %v3230
        %v3325 = vadd.f32 %v3058, %v3279
        %v3326 = vadd.f32 %v3059, %v3184
        %v3327 = vadd.f32 %v3060, %v3233
        %v3328 = vadd.f32 %v3061, %v3282
        %v3329 = vadd.f32 %v3062, %v3186
        %v3330 = vadd.f32 %v3063, %v3235
        %v3331 = vadd.f32 %v3064, %v3284
        %v3332 = vadd.f32 %v3065, %v3189
        %v3333 = vadd.f32 %v3066, %v3238
        %v3334 = vadd.f32 %v3067, %v3287
        %v3335 = vadd.f32 %v3068, %v3191
        %v3336 = vadd.f32 %v3069, %v3240
        %v3337 = vadd.f32 %v3070, %v3289
        %v3338 = vadd.f32 %v3071, %v3194
        %v3339 = vadd.f32 %v3072, %v3243
        %v3340 = vadd.f32 %v3073, %v3292
        %v3341 = vadd.f32 %v3074, %v3196
        %v3342 = vadd.f32 %v3075, %v3245
        %v3343 = vadd.f32 %v3076, %v3294
        %v3344 = vld [vmem:[%s12] sm:$0x1]
        %v3346 = vperm.slane %v3344, 0
        %v3348 = vadd.f32 %v3296, %v3346
        %v3349 = vadd.f32 %v3299, %v3346
        %v3350 = vadd.f32 %v3302, %v3346
        %v3351 = vadd.f32 %v3305, %v3346
        %v3352 = vadd.f32 %v3308, %v3346
        %v3353 = vadd.f32 %v3311, %v3346
        %v3354 = vadd.f32 %v3314, %v3346
        %v3355 = vadd.f32 %v3317, %v3346
        %v3356 = vadd.f32 %v3320, %v3346
        %v3357 = vadd.f32 %v3323, %v3346
        %v3358 = vadd.f32 %v3326, %v3346
        %v3359 = vadd.f32 %v3329, %v3346
        %v3360 = vadd.f32 %v3332, %v3346
        %v3361 = vadd.f32 %v3335, %v3346
        %v3362 = vadd.f32 %v3338, %v3346
        %v3363 = vadd.f32 %v3341, %v3346
        %v3364 = vld [vmem:[#allocation13] sm:$0xf]
        %v3365 = vld [vmem:[#allocation13 + $0x4] sm:$0xf]
        %v3366 = vld [vmem:[#allocation13 + $0x8] sm:$0xf]
        %v3367 = vld [vmem:[#allocation13 + $0xc] sm:$0xf]
        %v3368 = vld [vmem:[#allocation13 + $0x10] sm:$0xf]
        %v3369 = vld [vmem:[#allocation13 + $0x14] sm:$0xf]
        %v3370 = vld [vmem:[#allocation13 + $0x18] sm:$0xf]
        %v3371 = vld [vmem:[#allocation13 + $0x1c] sm:$0xf]
        %v3372 = vld [vmem:[#allocation13 + $0x20] sm:$0xf]
        %v3373 = vld [vmem:[#allocation13 + $0x24] sm:$0xf]
        %v3374 = vld [vmem:[#allocation13 + $0x28] sm:$0xf]
        %v3375 = vld [vmem:[#allocation13 + $0x2c] sm:$0xf]
        %v3376 = vld [vmem:[#allocation13 + $0x30] sm:$0xf]
        %v3377 = vld [vmem:[#allocation13 + $0x34] sm:$0xf]
        %v3378 = vld [vmem:[#allocation13 + $0x38] sm:$0xf]
        %v3379 = vld [vmem:[#allocation13 + $0x3c] sm:$0xf]
        %v3380 = vpack.c.bf16 %v3349, %v3348
        %v3381 = vpack.c.bf16 %v3351, %v3350
        %v3382 = vpack.c.bf16 %v3353, %v3352
        %v3383 = vpack.c.bf16 %v3355, %v3354
        %v3384 = vpack.c.bf16 %v3357, %v3356
        %v3385 = vpack.c.bf16 %v3359, %v3358
        %v3386 = vpack.c.bf16 %v3361, %v3360
        %v3387 = vpack.c.bf16 %v3363, %v3362
        %v3388 = vld [vmem:[%s14] sm:$0x1]
        %v3390 = vperm.slane %v3388, 0
        %v3408 = vunpack.c.l.b16 %v3364
        %v3409 = vunpack.c.l.b16 %v3365
        %v3410 = vunpack.c.l.b16 %v3366
        %v3411 = vunpack.c.l.b16 %v3367
        %v3412 = vunpack.c.l.b16 %v3368
        %v3413 = vunpack.c.l.b16 %v3369
        %v3414 = vunpack.c.l.b16 %v3370
        %v3415 = vunpack.c.l.b16 %v3371
        %v3416 = vunpack.c.l.b16 %v3372
        %v3417 = vunpack.c.l.b16 %v3373
        %v3418 = vunpack.c.l.b16 %v3374
        %v3419 = vunpack.c.l.b16 %v3375
        %v3420 = vunpack.c.l.b16 %v3376
        %v3421 = vunpack.c.l.b16 %v3377
        %v3422 = vunpack.c.l.b16 %v3378
        %v3423 = vunpack.c.l.b16 %v3379
        %v3424 = vpack.c.b16 %v3409, %v3408
        %v3425 = vpack.c.b16 %v3411, %v3410
        %v3426 = vpack.c.b16 %v3413, %v3412
        %v3427 = vpack.c.b16 %v3415, %v3414
        %v3428 = vpack.c.b16 %v3417, %v3416
        %v3429 = vpack.c.b16 %v3419, %v3418
        %v3430 = vpack.c.b16 %v3421, %v3420
        %v3431 = vpack.c.b16 %v3423, %v3422
        %3440 = vmatpush.bf16.msra.mxu0 %v3431
        %3441 = vmatpush.bf16.msra.mxu0 %v3430
        %3442 = vmatpush.bf16.msra.mxu0 %v3429
        %3443 = vmatpush.bf16.msra.mxu0 %v3428
        %3444 = vmatpush.bf16.msra.mxu0 %v3427
        %3445 = vmatpush.bf16.msra.mxu0 %v3426
        %3446 = vmatpush.bf16.msra.mxu0 %v3425
        %3447 = vmatpush.bf16.msra.mxu0 %v3424
        %3448 = vmatmul.bf16.gmra.mxu0 %v3380
        %v3449 = vpop.f32.mrf.mxu0
        %v3450 = vadd.f32 %v3390, %v3449
        %v3451 = vpop.f32.mrf.mxu0
        %v3452 = vadd.f32 %v3390, %v3451
        %3453 = vmatmul.bf16.gmra.mxu0 %v3381
        %v3454 = vpop.f32.mrf.mxu0
        %v3455 = vadd.f32 %v3390, %v3454
        %v3456 = vpop.f32.mrf.mxu0
        %v3457 = vadd.f32 %v3390, %v3456
        %3458 = vmatmul.bf16.gmra.mxu0 %v3382
        %v3459 = vpop.f32.mrf.mxu0
        %v3460 = vadd.f32 %v3390, %v3459
        %v3461 = vpop.f32.mrf.mxu0
        %v3462 = vadd.f32 %v3390, %v3461
        %3463 = vmatmul.bf16.gmra.mxu0 %v3383
        %v3464 = vpop.f32.mrf.mxu0
        %v3465 = vadd.f32 %v3390, %v3464
        %v3466 = vpop.f32.mrf.mxu0
        %v3467 = vadd.f32 %v3390, %v3466
        %3468 = vmatmul.bf16.gmra.mxu0 %v3384
        %v3469 = vpop.f32.mrf.mxu0
        %v3470 = vadd.f32 %v3390, %v3469
        %v3471 = vpop.f32.mrf.mxu0
        %v3472 = vadd.f32 %v3390, %v3471
        %3473 = vmatmul.bf16.gmra.mxu0 %v3385
        %v3474 = vpop.f32.mrf.mxu0
        %v3475 = vadd.f32 %v3390, %v3474
        %v3476 = vpop.f32.mrf.mxu0
        %v3477 = vadd.f32 %v3390, %v3476
        %3478 = vmatmul.bf16.gmra.mxu0 %v3386
        %v3479 = vpop.f32.mrf.mxu0
        %v3480 = vadd.f32 %v3390, %v3479
        %v3481 = vpop.f32.mrf.mxu0
        %v3482 = vadd.f32 %v3390, %v3481
        %3483 = vmatmul.bf16.gmra.mxu0 %v3387
        %v3484 = vpop.f32.mrf.mxu0
        %v3485 = vadd.f32 %v3390, %v3484
        %v3486 = vpop.f32.mrf.mxu0
        %v3487 = vadd.f32 %v3390, %v3486
        %3488 = vdwg.mxu0
        %v3489 = vadd.f32 %v3450, %v3297
        %v3490 = vadd.f32 %v3452, %v3300
        %v3491 = vadd.f32 %v3455, %v3303
        %v3492 = vadd.f32 %v3457, %v3306
        %v3493 = vadd.f32 %v3460, %v3309
        %v3494 = vadd.f32 %v3462, %v3312
        %v3495 = vadd.f32 %v3465, %v3315
        %v3496 = vadd.f32 %v3467, %v3318
        %v3497 = vadd.f32 %v3470, %v3321
        %v3498 = vadd.f32 %v3472, %v3324
        %v3499 = vadd.f32 %v3475, %v3327
        %v3500 = vadd.f32 %v3477, %v3330
        %v3501 = vadd.f32 %v3480, %v3333
        %v3502 = vadd.f32 %v3482, %v3336
        %v3503 = vadd.f32 %v3485, %v3339
        %v3504 = vadd.f32 %v3487, %v3342
        %vm3505 = vcmp.gt.f32.partialorder %v3489, 0.0
        %vm3506 = vcmp.gt.f32.partialorder %v3490, 0.0
        %vm3507 = vcmp.gt.f32.partialorder %v3491, 0.0
        %vm3508 = vcmp.gt.f32.partialorder %v3492, 0.0
        %vm3509 = vcmp.gt.f32.partialorder %v3493, 0.0
        %vm3510 = vcmp.gt.f32.partialorder %v3494, 0.0
        %vm3511 = vcmp.gt.f32.partialorder %v3495, 0.0
        %vm3512 = vcmp.gt.f32.partialorder %v3496, 0.0
        %vm3513 = vcmp.gt.f32.partialorder %v3497, 0.0
        %vm3514 = vcmp.gt.f32.partialorder %v3498, 0.0
        %vm3515 = vcmp.gt.f32.partialorder %v3499, 0.0
        %vm3516 = vcmp.gt.f32.partialorder %v3500, 0.0
        %vm3517 = vcmp.gt.f32.partialorder %v3501, 0.0
        %vm3518 = vcmp.gt.f32.partialorder %v3502, 0.0
        %vm3519 = vcmp.gt.f32.partialorder %v3503, 0.0
        %vm3520 = vcmp.gt.f32.partialorder %v3504, 0.0
        %v3521 = vmul.f32 %v3489, 0.01
        %v3522 = vmul.f32 %v3490, 0.01
        %v3523 = vmul.f32 %v3491, 0.01
        %v3524 = vmul.f32 %v3492, 0.01
        %v3525 = vmul.f32 %v3493, 0.01
        %v3526 = vmul.f32 %v3494, 0.01
        %v3527 = vmul.f32 %v3495, 0.01
        %v3528 = vmul.f32 %v3496, 0.01
        %v3529 = vmul.f32 %v3497, 0.01
        %v3530 = vmul.f32 %v3498, 0.01
        %v3531 = vmul.f32 %v3499, 0.01
        %v3532 = vmul.f32 %v3500, 0.01
        %v3533 = vmul.f32 %v3501, 0.01
        %v3534 = vmul.f32 %v3502, 0.01
        %v3535 = vmul.f32 %v3503, 0.01
        %v3536 = vmul.f32 %v3504, 0.01
        %v3537 = vsel %vm3505, %v3489, %v3521
        %v3538 = vsel %vm3506, %v3490, %v3522
        %v3539 = vsel %vm3507, %v3491, %v3523
        %v3540 = vsel %vm3508, %v3492, %v3524
        %v3541 = vsel %vm3509, %v3493, %v3525
        %v3542 = vsel %vm3510, %v3494, %v3526
        %v3543 = vsel %vm3511, %v3495, %v3527
        %v3544 = vsel %vm3512, %v3496, %v3528
        %v3545 = vsel %vm3513, %v3497, %v3529
        %v3546 = vsel %vm3514, %v3498, %v3530
        %v3547 = vsel %vm3515, %v3499, %v3531
        %v3548 = vsel %vm3516, %v3500, %v3532
        %v3549 = vsel %vm3517, %v3501, %v3533
        %v3550 = vsel %vm3518, %v3502, %v3534
        %v3551 = vsel %vm3519, %v3503, %v3535
        %v3552 = vsel %vm3520, %v3504, %v3536
        %s3553 = scalar_lea.vmem [#allocation13], 64
        %v3554 = vld [vmem:[%s3553] sm:$0xf]
        %v3555 = vld [vmem:[%s3553 + $0x4] sm:$0xf]
        %v3556 = vld [vmem:[%s3553 + $0x8] sm:$0xf]
        %v3557 = vld [vmem:[%s3553 + $0xc] sm:$0xf]
        %v3558 = vld [vmem:[%s3553 + $0x10] sm:$0xf]
        %v3559 = vld [vmem:[%s3553 + $0x14] sm:$0xf]
        %v3560 = vld [vmem:[%s3553 + $0x18] sm:$0xf]
        %v3561 = vld [vmem:[%s3553 + $0x1c] sm:$0xf]
        %v3562 = vld [vmem:[%s3553 + $0x20] sm:$0xf]
        %v3563 = vld [vmem:[%s3553 + $0x24] sm:$0xf]
        %v3564 = vld [vmem:[%s3553 + $0x28] sm:$0xf]
        %v3565 = vld [vmem:[%s3553 + $0x2c] sm:$0xf]
        %v3566 = vld [vmem:[%s3553 + $0x30] sm:$0xf]
        %v3567 = vld [vmem:[%s3553 + $0x34] sm:$0xf]
        %v3568 = vld [vmem:[%s3553 + $0x38] sm:$0xf]
        %v3569 = vld [vmem:[%s3553 + $0x3c] sm:$0xf]
        %v3570 = vpack.c.bf16 %v3538, %v3537
        %v3571 = vpack.c.bf16 %v3540, %v3539
        %v3572 = vpack.c.bf16 %v3542, %v3541
        %v3573 = vpack.c.bf16 %v3544, %v3543
        %v3574 = vpack.c.bf16 %v3546, %v3545
        %v3575 = vpack.c.bf16 %v3548, %v3547
        %v3576 = vpack.c.bf16 %v3550, %v3549
        %v3577 = vpack.c.bf16 %v3552, %v3551
        %s3578 = scalar_lea.vmem %s14, 1
        %v3579 = vld [vmem:[%s3578] sm:$0x1]
        %v3581 = vperm.slane %v3579, 0
        %v3599 = vunpack.c.l.b16 %v3554
        %v3600 = vunpack.c.l.b16 %v3555
        %v3601 = vunpack.c.l.b16 %v3556
        %v3602 = vunpack.c.l.b16 %v3557
        %v3603 = vunpack.c.l.b16 %v3558
        %v3604 = vunpack.c.l.b16 %v3559
        %v3605 = vunpack.c.l.b16 %v3560
        %v3606 = vunpack.c.l.b16 %v3561
        %v3607 = vunpack.c.l.b16 %v3562
        %v3608 = vunpack.c.l.b16 %v3563
        %v3609 = vunpack.c.l.b16 %v3564
        %v3610 = vunpack.c.l.b16 %v3565
        %v3611 = vunpack.c.l.b16 %v3566
        %v3612 = vunpack.c.l.b16 %v3567
        %v3613 = vunpack.c.l.b16 %v3568
        %v3614 = vunpack.c.l.b16 %v3569
        %v3615 = vpack.c.b16 %v3600, %v3599
        %v3616 = vpack.c.b16 %v3602, %v3601
        %v3617 = vpack.c.b16 %v3604, %v3603
        %v3618 = vpack.c.b16 %v3606, %v3605
        %v3619 = vpack.c.b16 %v3608, %v3607
        %v3620 = vpack.c.b16 %v3610, %v3609
        %v3621 = vpack.c.b16 %v3612, %v3611
        %v3622 = vpack.c.b16 %v3614, %v3613
        %3631 = vmatpush.bf16.msra.mxu0 %v3622
        %3632 = vmatpush.bf16.msra.mxu0 %v3621
        %3633 = vmatpush.bf16.msra.mxu0 %v3620
        %3634 = vmatpush.bf16.msra.mxu0 %v3619
        %3635 = vmatpush.bf16.msra.mxu0 %v3618
        %3636 = vmatpush.bf16.msra.mxu0 %v3617
        %3637 = vmatpush.bf16.msra.mxu0 %v3616
        %3638 = vmatpush.bf16.msra.mxu0 %v3615
        %3639 = vmatmul.bf16.gmra.mxu0 %v3570
        %v3640 = vpop.f32.mrf.mxu0
        %v3641 = vadd.f32 %v3581, %v3640
        %v3642 = vpop.f32.mrf.mxu0
        %v3643 = vadd.f32 %v3581, %v3642
        %3644 = vmatmul.bf16.gmra.mxu0 %v3571
        %v3645 = vpop.f32.mrf.mxu0
        %v3646 = vadd.f32 %v3581, %v3645
        %v3647 = vpop.f32.mrf.mxu0
        %v3648 = vadd.f32 %v3581, %v3647
        %3649 = vmatmul.bf16.gmra.mxu0 %v3572
        %v3650 = vpop.f32.mrf.mxu0
        %v3651 = vadd.f32 %v3581, %v3650
        %v3652 = vpop.f32.mrf.mxu0
        %v3653 = vadd.f32 %v3581, %v3652
        %3654 = vmatmul.bf16.gmra.mxu0 %v3573
        %v3655 = vpop.f32.mrf.mxu0
        %v3656 = vadd.f32 %v3581, %v3655
        %v3657 = vpop.f32.mrf.mxu0
        %v3658 = vadd.f32 %v3581, %v3657
        %3659 = vmatmul.bf16.gmra.mxu0 %v3574
        %v3660 = vpop.f32.mrf.mxu0
        %v3661 = vadd.f32 %v3581, %v3660
        %v3662 = vpop.f32.mrf.mxu0
        %v3663 = vadd.f32 %v3581, %v3662
        %3664 = vmatmul.bf16.gmra.mxu0 %v3575
        %v3665 = vpop.f32.mrf.mxu0
        %v3666 = vadd.f32 %v3581, %v3665
        %v3667 = vpop.f32.mrf.mxu0
        %v3668 = vadd.f32 %v3581, %v3667
        %3669 = vmatmul.bf16.gmra.mxu0 %v3576
        %v3670 = vpop.f32.mrf.mxu0
        %v3671 = vadd.f32 %v3581, %v3670
        %v3672 = vpop.f32.mrf.mxu0
        %v3673 = vadd.f32 %v3581, %v3672
        %3674 = vmatmul.bf16.gmra.mxu0 %v3577
        %v3675 = vpop.f32.mrf.mxu0
        %v3676 = vadd.f32 %v3581, %v3675
        %v3677 = vpop.f32.mrf.mxu0
        %v3678 = vadd.f32 %v3581, %v3677
        %3679 = vdwg.mxu0
        %vm3680 = vcmp.gt.f32.partialorder %v3641, 0.0
        %vm3681 = vcmp.gt.f32.partialorder %v3643, 0.0
        %vm3682 = vcmp.gt.f32.partialorder %v3646, 0.0
        %vm3683 = vcmp.gt.f32.partialorder %v3648, 0.0
        %vm3684 = vcmp.gt.f32.partialorder %v3651, 0.0
        %vm3685 = vcmp.gt.f32.partialorder %v3653, 0.0
        %vm3686 = vcmp.gt.f32.partialorder %v3656, 0.0
        %vm3687 = vcmp.gt.f32.partialorder %v3658, 0.0
        %vm3688 = vcmp.gt.f32.partialorder %v3661, 0.0
        %vm3689 = vcmp.gt.f32.partialorder %v3663, 0.0
        %vm3690 = vcmp.gt.f32.partialorder %v3666, 0.0
        %vm3691 = vcmp.gt.f32.partialorder %v3668, 0.0
        %vm3692 = vcmp.gt.f32.partialorder %v3671, 0.0
        %vm3693 = vcmp.gt.f32.partialorder %v3673, 0.0
        %vm3694 = vcmp.gt.f32.partialorder %v3676, 0.0
        %vm3695 = vcmp.gt.f32.partialorder %v3678, 0.0
        %v3696 = vmul.f32 %v3641, 0.01
        %v3697 = vmul.f32 %v3643, 0.01
        %v3698 = vmul.f32 %v3646, 0.01
        %v3699 = vmul.f32 %v3648, 0.01
        %v3700 = vmul.f32 %v3651, 0.01
        %v3701 = vmul.f32 %v3653, 0.01
        %v3702 = vmul.f32 %v3656, 0.01
        %v3703 = vmul.f32 %v3658, 0.01
        %v3704 = vmul.f32 %v3661, 0.01
        %v3705 = vmul.f32 %v3663, 0.01
        %v3706 = vmul.f32 %v3666, 0.01
        %v3707 = vmul.f32 %v3668, 0.01
        %v3708 = vmul.f32 %v3671, 0.01
        %v3709 = vmul.f32 %v3673, 0.01
        %v3710 = vmul.f32 %v3676, 0.01
        %v3711 = vmul.f32 %v3678, 0.01
        %v3712 = vsel %vm3680, %v3641, %v3696
        %v3713 = vsel %vm3681, %v3643, %v3697
        %v3714 = vsel %vm3682, %v3646, %v3698
        %v3715 = vsel %vm3683, %v3648, %v3699
        %v3716 = vsel %vm3684, %v3651, %v3700
        %v3717 = vsel %vm3685, %v3653, %v3701
        %v3718 = vsel %vm3686, %v3656, %v3702
        %v3719 = vsel %vm3687, %v3658, %v3703
        %v3720 = vsel %vm3688, %v3661, %v3704
        %v3721 = vsel %vm3689, %v3663, %v3705
        %v3722 = vsel %vm3690, %v3666, %v3706
        %v3723 = vsel %vm3691, %v3668, %v3707
        %v3724 = vsel %vm3692, %v3671, %v3708
        %v3725 = vsel %vm3693, %v3673, %v3709
        %v3726 = vsel %vm3694, %v3676, %v3710
        %v3727 = vsel %vm3695, %v3678, %v3711
        %s3728 = scalar_lea.vmem [#allocation13], 128
        %v3729 = vld [vmem:[%s3728] sm:$0xf]
        %v3730 = vld [vmem:[%s3728 + $0x4] sm:$0xf]
        %v3731 = vld [vmem:[%s3728 + $0x8] sm:$0xf]
        %v3732 = vld [vmem:[%s3728 + $0xc] sm:$0xf]
        %v3733 = vld [vmem:[%s3728 + $0x10] sm:$0xf]
        %v3734 = vld [vmem:[%s3728 + $0x14] sm:$0xf]
        %v3735 = vld [vmem:[%s3728 + $0x18] sm:$0xf]
        %v3736 = vld [vmem:[%s3728 + $0x1c] sm:$0xf]
        %v3737 = vld [vmem:[%s3728 + $0x20] sm:$0xf]
        %v3738 = vld [vmem:[%s3728 + $0x24] sm:$0xf]
        %v3739 = vld [vmem:[%s3728 + $0x28] sm:$0xf]
        %v3740 = vld [vmem:[%s3728 + $0x2c] sm:$0xf]
        %v3741 = vld [vmem:[%s3728 + $0x30] sm:$0xf]
        %v3742 = vld [vmem:[%s3728 + $0x34] sm:$0xf]
        %v3743 = vld [vmem:[%s3728 + $0x38] sm:$0xf]
        %v3744 = vld [vmem:[%s3728 + $0x3c] sm:$0xf]
        %v3745 = vpack.c.bf16 %v3713, %v3712
        %v3746 = vpack.c.bf16 %v3715, %v3714
        %v3747 = vpack.c.bf16 %v3717, %v3716
        %v3748 = vpack.c.bf16 %v3719, %v3718
        %v3749 = vpack.c.bf16 %v3721, %v3720
        %v3750 = vpack.c.bf16 %v3723, %v3722
        %v3751 = vpack.c.bf16 %v3725, %v3724
        %v3752 = vpack.c.bf16 %v3727, %v3726
        %s3753 = scalar_lea.vmem %s14, 2
        %v3754 = vld [vmem:[%s3753] sm:$0x1]
        %v3756 = vperm.slane %v3754, 0
        %v3774 = vunpack.c.l.b16 %v3729
        %v3775 = vunpack.c.l.b16 %v3730
        %v3776 = vunpack.c.l.b16 %v3731
        %v3777 = vunpack.c.l.b16 %v3732
        %v3778 = vunpack.c.l.b16 %v3733
        %v3779 = vunpack.c.l.b16 %v3734
        %v3780 = vunpack.c.l.b16 %v3735
        %v3781 = vunpack.c.l.b16 %v3736
        %v3782 = vunpack.c.l.b16 %v3737
        %v3783 = vunpack.c.l.b16 %v3738
        %v3784 = vunpack.c.l.b16 %v3739
        %v3785 = vunpack.c.l.b16 %v3740
        %v3786 = vunpack.c.l.b16 %v3741
        %v3787 = vunpack.c.l.b16 %v3742
        %v3788 = vunpack.c.l.b16 %v3743
        %v3789 = vunpack.c.l.b16 %v3744
        %v3790 = vpack.c.b16 %v3775, %v3774
        %v3791 = vpack.c.b16 %v3777, %v3776
        %v3792 = vpack.c.b16 %v3779, %v3778
        %v3793 = vpack.c.b16 %v3781, %v3780
        %v3794 = vpack.c.b16 %v3783, %v3782
        %v3795 = vpack.c.b16 %v3785, %v3784
        %v3796 = vpack.c.b16 %v3787, %v3786
        %v3797 = vpack.c.b16 %v3789, %v3788
        %3806 = vmatpush.bf16.msra.mxu0 %v3797
        %3807 = vmatpush.bf16.msra.mxu0 %v3796
        %3808 = vmatpush.bf16.msra.mxu0 %v3795
        %3809 = vmatpush.bf16.msra.mxu0 %v3794
        %3810 = vmatpush.bf16.msra.mxu0 %v3793
        %3811 = vmatpush.bf16.msra.mxu0 %v3792
        %3812 = vmatpush.bf16.msra.mxu0 %v3791
        %3813 = vmatpush.bf16.msra.mxu0 %v3790
        %3814 = vmatmul.bf16.gmra.mxu0 %v3745
        %v3815 = vpop.f32.mrf.mxu0
        %v3816 = vadd.f32 %v3756, %v3815
        %v3817 = vpop.f32.mrf.mxu0
        %v3818 = vadd.f32 %v3756, %v3817
        %3819 = vmatmul.bf16.gmra.mxu0 %v3746
        %v3820 = vpop.f32.mrf.mxu0
        %v3821 = vadd.f32 %v3756, %v3820
        %v3822 = vpop.f32.mrf.mxu0
        %v3823 = vadd.f32 %v3756, %v3822
        %3824 = vmatmul.bf16.gmra.mxu0 %v3747
        %v3825 = vpop.f32.mrf.mxu0
        %v3826 = vadd.f32 %v3756, %v3825
        %v3827 = vpop.f32.mrf.mxu0
        %v3828 = vadd.f32 %v3756, %v3827
        %3829 = vmatmul.bf16.gmra.mxu0 %v3748
        %v3830 = vpop.f32.mrf.mxu0
        %v3831 = vadd.f32 %v3756, %v3830
        %v3832 = vpop.f32.mrf.mxu0
        %v3833 = vadd.f32 %v3756, %v3832
        %3834 = vmatmul.bf16.gmra.mxu0 %v3749
        %v3835 = vpop.f32.mrf.mxu0
        %v3836 = vadd.f32 %v3756, %v3835
        %v3837 = vpop.f32.mrf.mxu0
        %v3838 = vadd.f32 %v3756, %v3837
        %3839 = vmatmul.bf16.gmra.mxu0 %v3750
        %v3840 = vpop.f32.mrf.mxu0
        %v3841 = vadd.f32 %v3756, %v3840
        %v3842 = vpop.f32.mrf.mxu0
        %v3843 = vadd.f32 %v3756, %v3842
        %3844 = vmatmul.bf16.gmra.mxu0 %v3751
        %v3845 = vpop.f32.mrf.mxu0
        %v3846 = vadd.f32 %v3756, %v3845
        %v3847 = vpop.f32.mrf.mxu0
        %v3848 = vadd.f32 %v3756, %v3847
        %3849 = vmatmul.bf16.gmra.mxu0 %v3752
        %v3850 = vpop.f32.mrf.mxu0
        %v3851 = vadd.f32 %v3756, %v3850
        %v3852 = vpop.f32.mrf.mxu0
        %v3853 = vadd.f32 %v3756, %v3852
        %3854 = vdwg.mxu0
        %vm3855 = vcmp.gt.f32.partialorder %v3816, 0.0
        %vm3856 = vcmp.gt.f32.partialorder %v3818, 0.0
        %vm3857 = vcmp.gt.f32.partialorder %v3821, 0.0
        %vm3858 = vcmp.gt.f32.partialorder %v3823, 0.0
        %vm3859 = vcmp.gt.f32.partialorder %v3826, 0.0
        %vm3860 = vcmp.gt.f32.partialorder %v3828, 0.0
        %vm3861 = vcmp.gt.f32.partialorder %v3831, 0.0
        %vm3862 = vcmp.gt.f32.partialorder %v3833, 0.0
        %vm3863 = vcmp.gt.f32.partialorder %v3836, 0.0
        %vm3864 = vcmp.gt.f32.partialorder %v3838, 0.0
        %vm3865 = vcmp.gt.f32.partialorder %v3841, 0.0
        %vm3866 = vcmp.gt.f32.partialorder %v3843, 0.0
        %vm3867 = vcmp.gt.f32.partialorder %v3846, 0.0
        %vm3868 = vcmp.gt.f32.partialorder %v3848, 0.0
        %vm3869 = vcmp.gt.f32.partialorder %v3851, 0.0
        %vm3870 = vcmp.gt.f32.partialorder %v3853, 0.0
        %v3871 = vmul.f32 %v3816, 0.01
        %v3872 = vmul.f32 %v3818, 0.01
        %v3873 = vmul.f32 %v3821, 0.01
        %v3874 = vmul.f32 %v3823, 0.01
        %v3875 = vmul.f32 %v3826, 0.01
        %v3876 = vmul.f32 %v3828, 0.01
        %v3877 = vmul.f32 %v3831, 0.01
        %v3878 = vmul.f32 %v3833, 0.01
        %v3879 = vmul.f32 %v3836, 0.01
        %v3880 = vmul.f32 %v3838, 0.01
        %v3881 = vmul.f32 %v3841, 0.01
        %v3882 = vmul.f32 %v3843, 0.01
        %v3883 = vmul.f32 %v3846, 0.01
        %v3884 = vmul.f32 %v3848, 0.01
        %v3885 = vmul.f32 %v3851, 0.01
        %v3886 = vmul.f32 %v3853, 0.01
        %v3887 = vsel %vm3855, %v3816, %v3871
        %v3888 = vsel %vm3856, %v3818, %v3872
        %v3889 = vsel %vm3857, %v3821, %v3873
        %v3890 = vsel %vm3858, %v3823, %v3874
        %v3891 = vsel %vm3859, %v3826, %v3875
        %v3892 = vsel %vm3860, %v3828, %v3876
        %v3893 = vsel %vm3861, %v3831, %v3877
        %v3894 = vsel %vm3862, %v3833, %v3878
        %v3895 = vsel %vm3863, %v3836, %v3879
        %v3896 = vsel %vm3864, %v3838, %v3880
        %v3897 = vsel %vm3865, %v3841, %v3881
        %v3898 = vsel %vm3866, %v3843, %v3882
        %v3899 = vsel %vm3867, %v3846, %v3883
        %v3900 = vsel %vm3868, %v3848, %v3884
        %v3901 = vsel %vm3869, %v3851, %v3885
        %v3902 = vsel %vm3870, %v3853, %v3886
        %s3903 = scalar_lea.vmem [#allocation13], 192
        %v3904 = vld [vmem:[%s3903] sm:$0xf]
        %v3905 = vld [vmem:[%s3903 + $0x4] sm:$0xf]
        %v3906 = vld [vmem:[%s3903 + $0x8] sm:$0xf]
        %v3907 = vld [vmem:[%s3903 + $0xc] sm:$0xf]
        %v3908 = vld [vmem:[%s3903 + $0x10] sm:$0xf]
        %v3909 = vld [vmem:[%s3903 + $0x14] sm:$0xf]
        %v3910 = vld [vmem:[%s3903 + $0x18] sm:$0xf]
        %v3911 = vld [vmem:[%s3903 + $0x1c] sm:$0xf]
        %v3912 = vld [vmem:[%s3903 + $0x20] sm:$0xf]
        %v3913 = vld [vmem:[%s3903 + $0x24] sm:$0xf]
        %v3914 = vld [vmem:[%s3903 + $0x28] sm:$0xf]
        %v3915 = vld [vmem:[%s3903 + $0x2c] sm:$0xf]
        %v3916 = vld [vmem:[%s3903 + $0x30] sm:$0xf]
        %v3917 = vld [vmem:[%s3903 + $0x34] sm:$0xf]
        %v3918 = vld [vmem:[%s3903 + $0x38] sm:$0xf]
        %v3919 = vld [vmem:[%s3903 + $0x3c] sm:$0xf]
        %v3920 = vpack.c.bf16 %v3888, %v3887
        %v3921 = vpack.c.bf16 %v3890, %v3889
        %v3922 = vpack.c.bf16 %v3892, %v3891
        %v3923 = vpack.c.bf16 %v3894, %v3893
        %v3924 = vpack.c.bf16 %v3896, %v3895
        %v3925 = vpack.c.bf16 %v3898, %v3897
        %v3926 = vpack.c.bf16 %v3900, %v3899
        %v3927 = vpack.c.bf16 %v3902, %v3901
        %s3928 = scalar_lea.vmem %s14, 3
        %v3929 = vld [vmem:[%s3928] sm:$0x1]
        %v3931 = vperm.slane %v3929, 0
        %v3949 = vunpack.c.l.b16 %v3904
        %v3950 = vunpack.c.l.b16 %v3905
        %v3951 = vunpack.c.l.b16 %v3906
        %v3952 = vunpack.c.l.b16 %v3907
        %v3953 = vunpack.c.l.b16 %v3908
        %v3954 = vunpack.c.l.b16 %v3909
        %v3955 = vunpack.c.l.b16 %v3910
        %v3956 = vunpack.c.l.b16 %v3911
        %v3957 = vunpack.c.l.b16 %v3912
        %v3958 = vunpack.c.l.b16 %v3913
        %v3959 = vunpack.c.l.b16 %v3914
        %v3960 = vunpack.c.l.b16 %v3915
        %v3961 = vunpack.c.l.b16 %v3916
        %v3962 = vunpack.c.l.b16 %v3917
        %v3963 = vunpack.c.l.b16 %v3918
        %v3964 = vunpack.c.l.b16 %v3919
        %v3965 = vpack.c.b16 %v3950, %v3949
        %v3966 = vpack.c.b16 %v3952, %v3951
        %v3967 = vpack.c.b16 %v3954, %v3953
        %v3968 = vpack.c.b16 %v3956, %v3955
        %v3969 = vpack.c.b16 %v3958, %v3957
        %v3970 = vpack.c.b16 %v3960, %v3959
        %v3971 = vpack.c.b16 %v3962, %v3961
        %v3972 = vpack.c.b16 %v3964, %v3963
        %3981 = vmatpush.bf16.msra.mxu0 %v3972
        %3982 = vmatpush.bf16.msra.mxu0 %v3971
        %3983 = vmatpush.bf16.msra.mxu0 %v3970
        %3984 = vmatpush.bf16.msra.mxu0 %v3969
        %3985 = vmatpush.bf16.msra.mxu0 %v3968
        %3986 = vmatpush.bf16.msra.mxu0 %v3967
        %3987 = vmatpush.bf16.msra.mxu0 %v3966
        %3988 = vmatpush.bf16.msra.mxu0 %v3965
        %3989 = vmatmul.bf16.gmra.mxu0 %v3920
        %v3990 = vpop.f32.mrf.mxu0
        %v3991 = vadd.f32 %v3931, %v3990
        %v3992 = vpop.f32.mrf.mxu0
        %v3993 = vadd.f32 %v3931, %v3992
        %3994 = vmatmul.bf16.gmra.mxu0 %v3921
        %v3995 = vpop.f32.mrf.mxu0
        %v3996 = vadd.f32 %v3931, %v3995
        %v3997 = vpop.f32.mrf.mxu0
        %v3998 = vadd.f32 %v3931, %v3997
        %3999 = vmatmul.bf16.gmra.mxu0 %v3922
        %v4000 = vpop.f32.mrf.mxu0
        %v4001 = vadd.f32 %v3931, %v4000
        %v4002 = vpop.f32.mrf.mxu0
        %v4003 = vadd.f32 %v3931, %v4002
        %4004 = vmatmul.bf16.gmra.mxu0 %v3923
        %v4005 = vpop.f32.mrf.mxu0
        %v4006 = vadd.f32 %v3931, %v4005
        %v4007 = vpop.f32.mrf.mxu0
        %v4008 = vadd.f32 %v3931, %v4007
        %4009 = vmatmul.bf16.gmra.mxu0 %v3924
        %v4010 = vpop.f32.mrf.mxu0
        %v4011 = vadd.f32 %v3931, %v4010
        %v4012 = vpop.f32.mrf.mxu0
        %v4013 = vadd.f32 %v3931, %v4012
        %4014 = vmatmul.bf16.gmra.mxu0 %v3925
        %v4015 = vpop.f32.mrf.mxu0
        %v4016 = vadd.f32 %v3931, %v4015
        %v4017 = vpop.f32.mrf.mxu0
        %v4018 = vadd.f32 %v3931, %v4017
        %4019 = vmatmul.bf16.gmra.mxu0 %v3926
        %v4020 = vpop.f32.mrf.mxu0
        %v4021 = vadd.f32 %v3931, %v4020
        %v4022 = vpop.f32.mrf.mxu0
        %v4023 = vadd.f32 %v3931, %v4022
        %4024 = vmatmul.bf16.gmra.mxu0 %v3927
        %v4025 = vpop.f32.mrf.mxu0
        %v4026 = vadd.f32 %v3931, %v4025
        %v4027 = vpop.f32.mrf.mxu0
        %v4028 = vadd.f32 %v3931, %v4027
        %4029 = vdwg.mxu0
        %v4030 = vadd.f32 %v3991, %v3298
        %v4031 = vadd.f32 %v3993, %v3301
        %v4032 = vadd.f32 %v3996, %v3304
        %v4033 = vadd.f32 %v3998, %v3307
        %v4034 = vadd.f32 %v4001, %v3310
        %v4035 = vadd.f32 %v4003, %v3313
        %v4036 = vadd.f32 %v4006, %v3316
        %v4037 = vadd.f32 %v4008, %v3319
        %v4038 = vadd.f32 %v4011, %v3322
        %v4039 = vadd.f32 %v4013, %v3325
        %v4040 = vadd.f32 %v4016, %v3328
        %v4041 = vadd.f32 %v4018, %v3331
        %v4042 = vadd.f32 %v4021, %v3334
        %v4043 = vadd.f32 %v4023, %v3337
        %v4044 = vadd.f32 %v4026, %v3340
        %v4045 = vadd.f32 %v4028, %v3343
        %vm4046 = vcmp.gt.f32.partialorder %v4030, 0.0
        %vm4047 = vcmp.gt.f32.partialorder %v4031, 0.0
        %vm4048 = vcmp.gt.f32.partialorder %v4032, 0.0
        %vm4049 = vcmp.gt.f32.partialorder %v4033, 0.0
        %vm4050 = vcmp.gt.f32.partialorder %v4034, 0.0
        %vm4051 = vcmp.gt.f32.partialorder %v4035, 0.0
        %vm4052 = vcmp.gt.f32.partialorder %v4036, 0.0
        %vm4053 = vcmp.gt.f32.partialorder %v4037, 0.0
        %vm4054 = vcmp.gt.f32.partialorder %v4038, 0.0
        %vm4055 = vcmp.gt.f32.partialorder %v4039, 0.0
        %vm4056 = vcmp.gt.f32.partialorder %v4040, 0.0
        %vm4057 = vcmp.gt.f32.partialorder %v4041, 0.0
        %vm4058 = vcmp.gt.f32.partialorder %v4042, 0.0
        %vm4059 = vcmp.gt.f32.partialorder %v4043, 0.0
        %vm4060 = vcmp.gt.f32.partialorder %v4044, 0.0
        %vm4061 = vcmp.gt.f32.partialorder %v4045, 0.0
        %v4062 = vmul.f32 %v4030, 0.01
        %v4063 = vmul.f32 %v4031, 0.01
        %v4064 = vmul.f32 %v4032, 0.01
        %v4065 = vmul.f32 %v4033, 0.01
        %v4066 = vmul.f32 %v4034, 0.01
        %v4067 = vmul.f32 %v4035, 0.01
        %v4068 = vmul.f32 %v4036, 0.01
        %v4069 = vmul.f32 %v4037, 0.01
        %v4070 = vmul.f32 %v4038, 0.01
        %v4071 = vmul.f32 %v4039, 0.01
        %v4072 = vmul.f32 %v4040, 0.01
        %v4073 = vmul.f32 %v4041, 0.01
        %v4074 = vmul.f32 %v4042, 0.01
        %v4075 = vmul.f32 %v4043, 0.01
        %v4076 = vmul.f32 %v4044, 0.01
        %v4077 = vmul.f32 %v4045, 0.01
        %v4078 = vsel %vm4046, %v4030, %v4062
        %v4079 = vsel %vm4047, %v4031, %v4063
        %v4080 = vsel %vm4048, %v4032, %v4064
        %v4081 = vsel %vm4049, %v4033, %v4065
        %v4082 = vsel %vm4050, %v4034, %v4066
        %v4083 = vsel %vm4051, %v4035, %v4067
        %v4084 = vsel %vm4052, %v4036, %v4068
        %v4085 = vsel %vm4053, %v4037, %v4069
        %v4086 = vsel %vm4054, %v4038, %v4070
        %v4087 = vsel %vm4055, %v4039, %v4071
        %v4088 = vsel %vm4056, %v4040, %v4072
        %v4089 = vsel %vm4057, %v4041, %v4073
        %v4090 = vsel %vm4058, %v4042, %v4074
        %v4091 = vsel %vm4059, %v4043, %v4075
        %v4092 = vsel %vm4060, %v4044, %v4076
        %v4093 = vsel %vm4061, %v4045, %v4077
        %s4094 = scalar_lea.vmem [#allocation13], 256
        %v4095 = vld [vmem:[%s4094] sm:$0xf]
        %v4096 = vld [vmem:[%s4094 + $0x4] sm:$0xf]
        %v4097 = vld [vmem:[%s4094 + $0x8] sm:$0xf]
        %v4098 = vld [vmem:[%s4094 + $0xc] sm:$0xf]
        %v4099 = vld [vmem:[%s4094 + $0x10] sm:$0xf]
        %v4100 = vld [vmem:[%s4094 + $0x14] sm:$0xf]
        %v4101 = vld [vmem:[%s4094 + $0x18] sm:$0xf]
        %v4102 = vld [vmem:[%s4094 + $0x1c] sm:$0xf]
        %v4103 = vld [vmem:[%s4094 + $0x20] sm:$0xf]
        %v4104 = vld [vmem:[%s4094 + $0x24] sm:$0xf]
        %v4105 = vld [vmem:[%s4094 + $0x28] sm:$0xf]
        %v4106 = vld [vmem:[%s4094 + $0x2c] sm:$0xf]
        %v4107 = vld [vmem:[%s4094 + $0x30] sm:$0xf]
        %v4108 = vld [vmem:[%s4094 + $0x34] sm:$0xf]
        %v4109 = vld [vmem:[%s4094 + $0x38] sm:$0xf]
        %v4110 = vld [vmem:[%s4094 + $0x3c] sm:$0xf]
        %v4111 = vpack.c.bf16 %v4079, %v4078
        %v4112 = vpack.c.bf16 %v4081, %v4080
        %v4113 = vpack.c.bf16 %v4083, %v4082
        %v4114 = vpack.c.bf16 %v4085, %v4084
        %v4115 = vpack.c.bf16 %v4087, %v4086
        %v4116 = vpack.c.bf16 %v4089, %v4088
        %v4117 = vpack.c.bf16 %v4091, %v4090
        %v4118 = vpack.c.bf16 %v4093, %v4092
        %s4119 = scalar_lea.vmem %s14, 4
        %v4120 = vld [vmem:[%s4119] sm:$0x1]
        %v4122 = vperm.slane %v4120, 0
        %v4140 = vunpack.c.l.b16 %v4095
        %v4141 = vunpack.c.l.b16 %v4096
        %v4142 = vunpack.c.l.b16 %v4097
        %v4143 = vunpack.c.l.b16 %v4098
        %v4144 = vunpack.c.l.b16 %v4099
        %v4145 = vunpack.c.l.b16 %v4100
        %v4146 = vunpack.c.l.b16 %v4101
        %v4147 = vunpack.c.l.b16 %v4102
        %v4148 = vunpack.c.l.b16 %v4103
        %v4149 = vunpack.c.l.b16 %v4104
        %v4150 = vunpack.c.l.b16 %v4105
        %v4151 = vunpack.c.l.b16 %v4106
        %v4152 = vunpack.c.l.b16 %v4107
        %v4153 = vunpack.c.l.b16 %v4108
        %v4154 = vunpack.c.l.b16 %v4109
        %v4155 = vunpack.c.l.b16 %v4110
        %v4156 = vpack.c.b16 %v4141, %v4140
        %v4157 = vpack.c.b16 %v4143, %v4142
        %v4158 = vpack.c.b16 %v4145, %v4144
        %v4159 = vpack.c.b16 %v4147, %v4146
        %v4160 = vpack.c.b16 %v4149, %v4148
        %v4161 = vpack.c.b16 %v4151, %v4150
        %v4162 = vpack.c.b16 %v4153, %v4152
        %v4163 = vpack.c.b16 %v4155, %v4154
        %4172 = vmatpush.bf16.msra.mxu0 %v4163
        %4173 = vmatpush.bf16.msra.mxu0 %v4162
        %4174 = vmatpush.bf16.msra.mxu0 %v4161
        %4175 = vmatpush.bf16.msra.mxu0 %v4160
        %4176 = vmatpush.bf16.msra.mxu0 %v4159
        %4177 = vmatpush.bf16.msra.mxu0 %v4158
        %4178 = vmatpush.bf16.msra.mxu0 %v4157
        %4179 = vmatpush.bf16.msra.mxu0 %v4156
        %4180 = vmatmul.bf16.gmra.mxu0 %v4111
        %v4181 = vpop.f32.mrf.mxu0
        %v4182 = vadd.f32 %v4122, %v4181
        %v4183 = vpop.f32.mrf.mxu0
        %v4184 = vadd.f32 %v4122, %v4183
        %4185 = vmatmul.bf16.gmra.mxu0 %v4112
        %v4186 = vpop.f32.mrf.mxu0
        %v4187 = vadd.f32 %v4122, %v4186
        %v4188 = vpop.f32.mrf.mxu0
        %v4189 = vadd.f32 %v4122, %v4188
        %4190 = vmatmul.bf16.gmra.mxu0 %v4113
        %v4191 = vpop.f32.mrf.mxu0
        %v4192 = vadd.f32 %v4122, %v4191
        %v4193 = vpop.f32.mrf.mxu0
        %v4194 = vadd.f32 %v4122, %v4193
        %4195 = vmatmul.bf16.gmra.mxu0 %v4114
        %v4196 = vpop.f32.mrf.mxu0
        %v4197 = vadd.f32 %v4122, %v4196
        %v4198 = vpop.f32.mrf.mxu0
        %v4199 = vadd.f32 %v4122, %v4198
        %4200 = vmatmul.bf16.gmra.mxu0 %v4115
        %v4201 = vpop.f32.mrf.mxu0
        %v4202 = vadd.f32 %v4122, %v4201
        %v4203 = vpop.f32.mrf.mxu0
        %v4204 = vadd.f32 %v4122, %v4203
        %4205 = vmatmul.bf16.gmra.mxu0 %v4116
        %v4206 = vpop.f32.mrf.mxu0
        %v4207 = vadd.f32 %v4122, %v4206
        %v4208 = vpop.f32.mrf.mxu0
        %v4209 = vadd.f32 %v4122, %v4208
        %4210 = vmatmul.bf16.gmra.mxu0 %v4117
        %v4211 = vpop.f32.mrf.mxu0
        %v4212 = vadd.f32 %v4122, %v4211
        %v4213 = vpop.f32.mrf.mxu0
        %v4214 = vadd.f32 %v4122, %v4213
        %4215 = vmatmul.bf16.gmra.mxu0 %v4118
        %v4216 = vpop.f32.mrf.mxu0
        %v4217 = vadd.f32 %v4122, %v4216
        %v4218 = vpop.f32.mrf.mxu0
        %v4219 = vadd.f32 %v4122, %v4218
        %4220 = vdwg.mxu0
        %vm4221 = vcmp.gt.f32.partialorder %v4182, 0.0
        %vm4222 = vcmp.gt.f32.partialorder %v4184, 0.0
        %vm4223 = vcmp.gt.f32.partialorder %v4187, 0.0
        %vm4224 = vcmp.gt.f32.partialorder %v4189, 0.0
        %vm4225 = vcmp.gt.f32.partialorder %v4192, 0.0
        %vm4226 = vcmp.gt.f32.partialorder %v4194, 0.0
        %vm4227 = vcmp.gt.f32.partialorder %v4197, 0.0
        %vm4228 = vcmp.gt.f32.partialorder %v4199, 0.0
        %vm4229 = vcmp.gt.f32.partialorder %v4202, 0.0
        %vm4230 = vcmp.gt.f32.partialorder %v4204, 0.0
        %vm4231 = vcmp.gt.f32.partialorder %v4207, 0.0
        %vm4232 = vcmp.gt.f32.partialorder %v4209, 0.0
        %vm4233 = vcmp.gt.f32.partialorder %v4212, 0.0
        %vm4234 = vcmp.gt.f32.partialorder %v4214, 0.0
        %vm4235 = vcmp.gt.f32.partialorder %v4217, 0.0
        %vm4236 = vcmp.gt.f32.partialorder %v4219, 0.0
        %v4237 = vmul.f32 %v4182, 0.01
        %v4238 = vmul.f32 %v4184, 0.01
        %v4239 = vmul.f32 %v4187, 0.01
        %v4240 = vmul.f32 %v4189, 0.01
        %v4241 = vmul.f32 %v4192, 0.01
        %v4242 = vmul.f32 %v4194, 0.01
        %v4243 = vmul.f32 %v4197, 0.01
        %v4244 = vmul.f32 %v4199, 0.01
        %v4245 = vmul.f32 %v4202, 0.01
        %v4246 = vmul.f32 %v4204, 0.01
        %v4247 = vmul.f32 %v4207, 0.01
        %v4248 = vmul.f32 %v4209, 0.01
        %v4249 = vmul.f32 %v4212, 0.01
        %v4250 = vmul.f32 %v4214, 0.01
        %v4251 = vmul.f32 %v4217, 0.01
        %v4252 = vmul.f32 %v4219, 0.01
        %v4253 = vsel %vm4221, %v4182, %v4237
        %v4254 = vsel %vm4222, %v4184, %v4238
        %v4255 = vsel %vm4223, %v4187, %v4239
        %v4256 = vsel %vm4224, %v4189, %v4240
        %v4257 = vsel %vm4225, %v4192, %v4241
        %v4258 = vsel %vm4226, %v4194, %v4242
        %v4259 = vsel %vm4227, %v4197, %v4243
        %v4260 = vsel %vm4228, %v4199, %v4244
        %v4261 = vsel %vm4229, %v4202, %v4245
        %v4262 = vsel %vm4230, %v4204, %v4246
        %v4263 = vsel %vm4231, %v4207, %v4247
        %v4264 = vsel %vm4232, %v4209, %v4248
        %v4265 = vsel %vm4233, %v4212, %v4249
        %v4266 = vsel %vm4234, %v4214, %v4250
        %v4267 = vsel %vm4235, %v4217, %v4251
        %v4268 = vsel %vm4236, %v4219, %v4252
        %v4269 = vld [vmem:[#allocation14] sm:$0xf]
        %v4270 = vld [vmem:[#allocation14 + $0x4] sm:$0xf]
        %v4271 = vld [vmem:[#allocation14 + $0x8] sm:$0xf]
        %v4272 = vld [vmem:[#allocation14 + $0xc] sm:$0xf]
        %v4273 = vld [vmem:[#allocation14 + $0x10] sm:$0xf]
        %v4274 = vld [vmem:[#allocation14 + $0x14] sm:$0xf]
        %v4275 = vld [vmem:[#allocation14 + $0x18] sm:$0xf]
        %v4276 = vld [vmem:[#allocation14 + $0x1c] sm:$0xf]
        %v4277 = vld [vmem:[#allocation14 + $0x20] sm:$0xf]
        %v4278 = vld [vmem:[#allocation14 + $0x24] sm:$0xf]
        %v4279 = vld [vmem:[#allocation14 + $0x28] sm:$0xf]
        %v4280 = vld [vmem:[#allocation14 + $0x2c] sm:$0xf]
        %v4281 = vld [vmem:[#allocation14 + $0x30] sm:$0xf]
        %v4282 = vld [vmem:[#allocation14 + $0x34] sm:$0xf]
        %v4283 = vld [vmem:[#allocation14 + $0x38] sm:$0xf]
        %v4284 = vld [vmem:[#allocation14 + $0x3c] sm:$0xf]
        %v4285 = vpack.c.bf16 %v4254, %v4253
        %v4286 = vpack.c.bf16 %v4256, %v4255
        %v4287 = vpack.c.bf16 %v4258, %v4257
        %v4288 = vpack.c.bf16 %v4260, %v4259
        %v4289 = vpack.c.bf16 %v4262, %v4261
        %v4290 = vpack.c.bf16 %v4264, %v4263
        %v4291 = vpack.c.bf16 %v4266, %v4265
        %v4292 = vpack.c.bf16 %v4268, %v4267
        %v4293 = vld [vmem:[%s16] sm:$0x1]
        %v4295 = vperm.slane %v4293, 0
        %v4313 = vunpack.c.l.b16 %v4269
        %v4314 = vunpack.c.l.b16 %v4270
        %v4315 = vunpack.c.l.b16 %v4271
        %v4316 = vunpack.c.l.b16 %v4272
        %v4317 = vunpack.c.l.b16 %v4273
        %v4318 = vunpack.c.l.b16 %v4274
        %v4319 = vunpack.c.l.b16 %v4275
        %v4320 = vunpack.c.l.b16 %v4276
        %v4321 = vunpack.c.l.b16 %v4277
        %v4322 = vunpack.c.l.b16 %v4278
        %v4323 = vunpack.c.l.b16 %v4279
        %v4324 = vunpack.c.l.b16 %v4280
        %v4325 = vunpack.c.l.b16 %v4281
        %v4326 = vunpack.c.l.b16 %v4282
        %v4327 = vunpack.c.l.b16 %v4283
        %v4328 = vunpack.c.l.b16 %v4284
        %v4329 = vpack.c.b16 %v4314, %v4313
        %v4330 = vpack.c.b16 %v4316, %v4315
        %v4331 = vpack.c.b16 %v4318, %v4317
        %v4332 = vpack.c.b16 %v4320, %v4319
        %v4333 = vpack.c.b16 %v4322, %v4321
        %v4334 = vpack.c.b16 %v4324, %v4323
        %v4335 = vpack.c.b16 %v4326, %v4325
        %v4336 = vpack.c.b16 %v4328, %v4327
        %4345 = vmatpush.bf16.msra.mxu0 %v4336
        %4346 = vmatpush.bf16.msra.mxu0 %v4335
        %4347 = vmatpush.bf16.msra.mxu0 %v4334
        %4348 = vmatpush.bf16.msra.mxu0 %v4333
        %4349 = vmatpush.bf16.msra.mxu0 %v4332
        %4350 = vmatpush.bf16.msra.mxu0 %v4331
        %4351 = vmatpush.bf16.msra.mxu0 %v4330
        %4352 = vmatpush.bf16.msra.mxu0 %v4329
        %4353 = vmatmul.bf16.gmra.mxu0 %v4285
        %v4354 = vpop.f32.mrf.mxu0
        %v4355 = vadd.f32 %v4295, %v4354
        %v4356 = vpop.f32.mrf.mxu0
        %v4357 = vadd.f32 %v4295, %v4356
        %4358 = vmatmul.bf16.gmra.mxu0 %v4286
        %v4359 = vpop.f32.mrf.mxu0
        %v4360 = vadd.f32 %v4295, %v4359
        %v4361 = vpop.f32.mrf.mxu0
        %v4362 = vadd.f32 %v4295, %v4361
        %4363 = vmatmul.bf16.gmra.mxu0 %v4287
        %v4364 = vpop.f32.mrf.mxu0
        %v4365 = vadd.f32 %v4295, %v4364
        %v4366 = vpop.f32.mrf.mxu0
        %v4367 = vadd.f32 %v4295, %v4366
        %4368 = vmatmul.bf16.gmra.mxu0 %v4288
        %v4369 = vpop.f32.mrf.mxu0
        %v4370 = vadd.f32 %v4295, %v4369
        %v4371 = vpop.f32.mrf.mxu0
        %v4372 = vadd.f32 %v4295, %v4371
        %4373 = vmatmul.bf16.gmra.mxu0 %v4289
        %v4374 = vpop.f32.mrf.mxu0
        %v4375 = vadd.f32 %v4295, %v4374
        %v4376 = vpop.f32.mrf.mxu0
        %v4377 = vadd.f32 %v4295, %v4376
        %4378 = vmatmul.bf16.gmra.mxu0 %v4290
        %v4379 = vpop.f32.mrf.mxu0
        %v4380 = vadd.f32 %v4295, %v4379
        %v4381 = vpop.f32.mrf.mxu0
        %v4382 = vadd.f32 %v4295, %v4381
        %4383 = vmatmul.bf16.gmra.mxu0 %v4291
        %v4384 = vpop.f32.mrf.mxu0
        %v4385 = vadd.f32 %v4295, %v4384
        %v4386 = vpop.f32.mrf.mxu0
        %v4387 = vadd.f32 %v4295, %v4386
        %4388 = vmatmul.bf16.gmra.mxu0 %v4292
        %v4389 = vpop.f32.mrf.mxu0
        %v4390 = vadd.f32 %v4295, %v4389
        %v4391 = vpop.f32.mrf.mxu0
        %v4392 = vadd.f32 %v4295, %v4391
        %4393 = vdwg.mxu0
        %4394 = vst [vmem:[%s667] sm:$0xff] %v4355
        %4395 = vst [vmem:[%s667 + $0x8] sm:$0xff] %v4357
        %4396 = vst [vmem:[%s667 + $0x10] sm:$0xff] %v4360
        %4397 = vst [vmem:[%s667 + $0x18] sm:$0xff] %v4362
        %4398 = vst [vmem:[%s667 + $0x20] sm:$0xff] %v4365
        %4399 = vst [vmem:[%s667 + $0x28] sm:$0xff] %v4367
        %4400 = vst [vmem:[%s667 + $0x30] sm:$0xff] %v4370
        %4401 = vst [vmem:[%s667 + $0x38] sm:$0xff] %v4372
        %4402 = vst [vmem:[%s667 + $0x40] sm:$0xff] %v4375
        %4403 = vst [vmem:[%s667 + $0x48] sm:$0xff] %v4377
        %4404 = vst [vmem:[%s667 + $0x50] sm:$0xff] %v4380
        %4405 = vst [vmem:[%s667 + $0x58] sm:$0xff] %v4382
        %4406 = vst [vmem:[%s667 + $0x60] sm:$0xff] %v4385
        %4407 = vst [vmem:[%s667 + $0x68] sm:$0xff] %v4387
        %4408 = vst [vmem:[%s667 + $0x70] sm:$0xff] %v4390
        %4409 = vst [vmem:[%s667 + $0x78] sm:$0xff] %v4392
        %s4410 = sand.u32 %s406, 1
        %s4411 = scalar_lea.sflag [#allocation4], %s4410
        %s4412 = sand.u32 %s406, 1
        %s4413 = smul.addr %s4412, 128
        %s4414 = scalar_lea.vmem [#allocation16], %s4413
        // Predicated region
        $region121: #{tpu_custom_call.1} parent=87 // pred_check
          %p4415 = pneg %p416
        $region122: #{tpu_custom_call.1} parent=87 // pred_check_branch
          %4417 = sbr.rel (%p4415) target = $region124
        $region123: #{tpu_custom_call.1} parent=87 // pred_region
          %s4418 = smul.u32 16, %s36
          %4420 = vsyncadd %s4411, 0
          %s4421 = smul.addr %s4418, 8
          %s4422 = scalar_lea.hbm %s17, %s4421
          %s4423 = sshll.u32 %s4414, 4
          %s4424 = int_to_ptr.vmem [resolvable:$true] %s4423
          %s4425 = sshll.u32 %s4422, 4
          %s4426 = int_to_ptr.hbm [resolvable:$true] %s4425
          %4431 = dma.vmem_to_hbm [thread:$0]  %s4424, 2048, %s4426, %s4411, 128, 128, 8
        $region124: #{tpu_custom_call.1} parent=87 // pred_fallthru
          _
      $region88: #{tpu_custom_call.1} parent=5 // pred_fallthru
        _
      %p4432 = scmp.le.s32.totalorder 2, %s31
      // Predicated region
      $region125: #{tpu_custom_call.1} parent=5 // pred_check
        %p4433 = pneg %p4432
      $region126: #{tpu_custom_call.1} parent=5 // pred_check_branch
        %4435 = sbr.rel (%p4433) target = $region128
      $region127: #{tpu_custom_call.1} parent=5 // pred_region
        %s4436 = ssub.s32 %s31, 2
        // Predicated region
        $region129: #{tpu_custom_call.1} parent=127 // pred_check
          %p4437 = pneg %p422
        $region130: #{tpu_custom_call.1} parent=127 // pred_check_branch
          %4439 = sbr.rel (%p4437) target = $region132
        $region131: #{tpu_custom_call.1} parent=127 // pred_region
          %s4440 = sand.u32 %s407, 1
          %s4441 = scalar_lea.sflag [#allocation4], %s4440
          %s4442 = sand.u32 %s407, 1
          %s4443 = smul.addr %s4442, 128
          %s4444 = scalar_lea.vmem [#allocation16], %s4443
          %4446 = dma.done %s4441, 2048
        $region132: #{tpu_custom_call.1} parent=127 // pred_fallthru
          _
      $region128: #{tpu_custom_call.1} parent=5 // pred_fallthru
        _
    $region6: #{tpu_custom_call.1} parent=1 // loop_footer
      %s35 = sadd.s32 1, %s31
    $region7: #{tpu_custom_call.1} parent=1 // loop_footer_branch
      %30 = sbr.rel target = $region3
    $region8: #{tpu_custom_call.1} parent=1 // loop_exit
      _
    %4447 = vsyncpa [#allocation3], 1
    %s4448 = scalar_lea.sflag [#allocation3], 1
    %4449 = vsyncpa %s4448, 1
    %4450 = vsyncpa [#allocation6], 1
    %4451 = vsyncpa [#allocation9], 1
    %4452 = vsyncpa [#allocation12], 1
    %4453 = vsyncpa [#allocation15], 1
    %4454 = vsyncpa [#allocation4], 1
    %s4455 = scalar_lea.sflag [#allocation4], 1
    %4456 = vsyncpa %s4455, 1

</llo_original>
